<compile_context>
chip_gen: v7x
topology: tpu7x:2x2x1
jax: 0.10.0
libtpu: 0.0.40
codegen_flags: <defaults>
</compile_context>

<pallas_src>
import functools
import math

import jax
import jax.numpy as jnp
import numpy as np
from jax.experimental import pallas as pl
from jax.experimental.pallas import tpu as pltpu


def _mha_kernel(x_ref, wqkv_ref, bqkv_ref, wp_ref, bp_ref, o_ref,
                qkv_s, ho_s, *,
                num_heads: int, head_dim: int, block_batch: int,
                seq_len: int, emb_size: int):
    """One block of `block_batch` batch elements per grid step.

    qkv_s : VMEM scratch (M, 3E) bf16 — fused [Q | K | V] activations.
    ho_s  : VMEM scratch (M,  E) bf16 — per-head outputs at lane offset h*D
            (the 'b h n d -> b n (h d)' slab), so the output projection is
            ONE (M,E)x(E,E) MXU matmul with K = E.
    """
    H, D, Bb, N, E = num_heads, head_dim, block_batch, seq_len, emb_size
    M = Bb * N

    # (Bb, N, E) -> (M, E).  The wrapper only picks Bb > 1 when N % 8 == 0,
    # so this merge never crosses (8, 128) tile boundaries.
    x = x_ref[...].reshape(M, E)                                    # bf16

    # Fused QKV projection: one wide MXU matmul (bf16 in, f32 accumulate),
    # bias added and cast to bf16 ONCE, then parked in VMEM scratch so no
    # multi-MiB value stays live as SSA across the head loop (no spills).
    qkv = jnp.dot(x, wqkv_ref[...], preferred_element_type=jnp.float32)
    qkv_s[...] = (qkv + bqkv_ref[...]).astype(jnp.bfloat16)        # (M, 3E)

    # Per-head attention.  Short static unroll (H is small); per-iteration
    # live set is bounded because inputs are static slices of qkv_s and the
    # result goes straight back into the ho_s slab.
    # TODO(synk): for H >> 16 switch to lax.fori_loop(unroll=True) + pl.ds.
    for h in range(H):
        sl_q = slice(0 * E + h * D, 0 * E + (h + 1) * D)
        sl_k = slice(1 * E + h * D, 1 * E + (h + 1) * D)
        sl_v = slice(2 * E + h * D, 2 * E + (h + 1) * D)
        qh = qkv_s[:, sl_q].reshape(Bb, N, D)
        kh = qkv_s[:, sl_k].reshape(Bb, N, D)
        vh = qkv_s[:, sl_v].reshape(Bb, N, D)

        energy = jnp.einsum('bnd,bmd->bnm', qh, kh,
                            preferred_element_type=jnp.float32)    # (Bb,N,N)
        mx = jnp.max(energy, axis=-1, keepdims=True)
        p = jnp.exp(energy - mx)
        # Approx reciprocal runs on the EUP (free bundle slot); ~1e-3 rel
        # error on the softmax denominator — fine for this inference
        # forward; use exact reciprocal if this ever feeds training.
        inv = pl.reciprocal(jnp.sum(p, axis=-1, keepdims=True), approx=True)
        att = (p * inv).astype(jnp.bfloat16)                       # unscaled softmax
        ho = jnp.einsum('bnm,bmd->bnd', att, vh,
                        preferred_element_type=jnp.float32)        # (Bb,N,D)

        # 'b h n d -> b n (h d)': head h occupies lane columns [h*D,(h+1)*D).
        # TODO(synk): at D=64, write heads in pairs for 128-aligned unmasked
        # stores; per-head stores kept for simplicity.
        ho_s[:, h * D:(h + 1) * D] = ho.reshape(M, D).astype(jnp.bfloat16)

    # Output projection: one (M, E) x (E, E) matmul with K = E (full MXU
    # depth) instead of H K=D folds + per-head VALU accumulates.  wp_ref
    # already carries the post-softmax 1/sqrt(E) scale; bias added once, f32.
    out = jnp.dot(ho_s[...], wp_ref[...], preferred_element_type=jnp.float32)
    out = out + bp_ref[...]
    # NOTE: at the tiny test size (E=32) this store is lane-sparse; at real
    # ViT sizes (E=768) the last dim is a multiple of 128 (unmasked vst).
    o_ref[...] = out.reshape(Bb, N, E).astype(o_ref.dtype)


def _tpu_topology():
    """Best-effort (vmem_capacity_bytes, tensorcores_per_chip), safe fallbacks."""
    vmem_cap = 64 << 20            # conservative default (v7x per-TC size)
    try:
        vmem_cap = int(pltpu.get_tpu_info().vmem_capacity_bytes)
    except Exception:
        pass
    kind = ""
    try:
        kind = jax.devices()[0].device_kind.lower()
    except Exception:
        pass
    # v7x (and the megacore v4/v5p parts) expose 2 TensorCores per chip;
    # v5e / v6e are single-TC.
    n_tc = 2 if any(tag in kind for tag in ("v7", "v4", "v5p")) else 1
    return vmem_cap, n_tc


def _pick_block_batch(B: int, N: int, n_tc: int) -> int:
    """Largest divisor of B such that the (Bb,N,E)->(Bb*N,E) row merge stays
    layout-clean and, on 2-TC chips, the grid keeps both cores busy."""
    if N % 8 != 0:                 # merge would cross (8,128) tiles -> keep Bb=1
        return 1
    target_rows = 256 if n_tc >= 2 else 1024   # single-TC: fewer, bigger steps
    best = 1
    for bb in range(2, B + 1):
        if B % bb:
            continue
        if bb * N > target_rows:
            break
        if n_tc >= 2 and B // bb < 2:          # keep grid >= 2 for both TCs
            break
        best = bb
    return best


def _vmem_limit_bytes(Bb: int, N: int, E: int, vmem_cap: int) -> int:
    """Scoped-VMEM grant sized from the actual block footprint (+ headroom)."""
    M = Bb * N
    footprint = (
        2 * (Bb * N * E * 2)       # x block, bf16, double-buffered
        + 2 * (Bb * N * E * 4)     # out block, f32, double-buffered
        + E * 3 * E * 2            # fused Wqkv.T, bf16, single-buffered
        + E * E * 2                # (Wproj/sqrt(E)).T, bf16, single-buffered
        + 4 * (4 * E)              # biases, f32
        + M * 3 * E * 2            # qkv scratch slab, bf16
        + M * E * 2                # head-output slab, bf16
        + M * 3 * E * 4            # transient f32 qkv before the bf16 cast
    )
    limit = 2 * footprint + (8 << 20)          # 2x headroom + slack
    limit = max(limit, 32 << 20)               # above v5e's 16 MiB scoped default
    limit = min(limit, vmem_cap // 2)          # leave compiler headroom (<=32 MiB on v7x)
    return int(limit)


def multi_head_attention(x, params, *, num_heads: int):
    """x: (B, N, E) float32.  params: dict from prepare_params()."""
    B, N, E = x.shape
    H = num_heads
    D = E // H
    vmem_cap, n_tc = _tpu_topology()
    Bb = _pick_block_batch(B, N, n_tc)
    M = Bb * N

    kern = functools.partial(_mha_kernel, num_heads=H, head_dim=D,
                             block_batch=Bb, seq_len=N, emb_size=E)

    flops = (2 * B * N * E * (3 * E)           # fused QKV projection
             + 2 * 2 * B * H * N * N * D       # energy + att@V
             + 2 * B * N * E * E)              # output projection
    transcendentals = B * H * N * N            # exp
    bytes_accessed = (x.size * 2
                      + params["wqkv_t"].size * 2 + params["wp_t"].size * 2
                      + params["bqkv"].size * 4 + params["bp"].size * 4
                      + B * N * E * 4)
    cost = pl.CostEstimate(flops=flops, transcendentals=transcendentals,
                           bytes_accessed=bytes_accessed)

    def build(single_buffer_weights: bool):
        def wspec(shape):
            zero = lambda b, _n=len(shape): (0,) * _n
            if single_buffer_weights:
                # Grid-invariant operand: fetched once -> no second buffer.
                return pl.BlockSpec(shape, zero, pipeline_mode=pl.Buffered(1))
            return pl.BlockSpec(shape, zero)

        return pl.pallas_call(
            kern,
            out_shape=jax.ShapeDtypeStruct((B, N, E), jnp.float32),
            grid_spec=pltpu.PrefetchScalarGridSpec(
                num_scalar_prefetch=0,
                grid=(B // Bb,),
                in_specs=[
                    pl.BlockSpec((Bb, N, E), lambda b: (b, 0, 0)),   # x (bf16)
                    wspec((E, 3 * E)),                               # [Wq|Wk|Wv].T
                    wspec((1, 3 * E)),                               # fused qkv bias
                    wspec((E, E)),                                   # (Wproj/sqrt(E)).T
                    wspec((1, E)),                                   # proj bias
                ],
                out_specs=pl.BlockSpec((Bb, N, E), lambda b: (b, 0, 0)),
                scratch_shapes=[
                    pltpu.VMEM((M, 3 * E), jnp.bfloat16),            # qkv slab
                    pltpu.VMEM((M, E), jnp.bfloat16),                # head-output slab
                ],
            ),
            compiler_params=pltpu.CompilerParams(
                # TODO(synk): for B=1 on v7x, add a parallel Q-token grid axis
                # (or CORE_PARALLEL) so both TensorCores get work.
                dimension_semantics=("parallel",),
                vmem_limit_bytes=_vmem_limit_bytes(Bb, N, E, vmem_cap)),
            cost_estimate=cost,
        )

    args = (x.astype(jnp.bfloat16), params["wqkv_t"], params["bqkv"],
            params["wp_t"], params["bp"])
    try:
        return build(single_buffer_weights=True)(*args)
    except Exception:
        # Pallas version without BlockSpec(pipeline_mode=...): fall back to
        # default double-buffering of the grid-invariant weights.
        return build(single_buffer_weights=False)(*args)


def init_raw_params(key, emb_size: int):
    """Deterministic PyTorch-Linear-style init (raw, interleaved qkv)."""
    k1, k2, k3, k4 = jax.random.split(key, 4)
    bound = 1.0 / math.sqrt(emb_size)
    w_qkv = jax.random.uniform(k1, (3 * emb_size, emb_size), jnp.float32, -bound, bound)
    b_qkv = jax.random.uniform(k2, (3 * emb_size,), jnp.float32, -bound, bound)
    w_proj = jax.random.uniform(k3, (emb_size, emb_size), jnp.float32, -bound, bound)
    b_proj = jax.random.uniform(k4, (emb_size,), jnp.float32, -bound, bound)
    return w_qkv, b_qkv, w_proj, b_proj


def prepare_params(w_qkv, b_qkv, w_proj, b_proj):
    """De-interleave qkv, fuse & pre-transpose weights, fold the 1/sqrt(E)
    POST-softmax scale (reference-module quirk, not the usual pre-softmax
    1/sqrt(D)) into the projection weight.  Done once, by XLA."""
    E = w_proj.shape[0]
    # 'b n (h d qkv)': qkv is the fastest-varying axis of the 3E output
    # columns, so q/k/v rows of the PyTorch Linear are interleaved stride-3.
    wq, wk, wv = w_qkv[0::3], w_qkv[1::3], w_qkv[2::3]
    bq, bk, bv = b_qkv[0::3], b_qkv[1::3], b_qkv[2::3]
    wqkv_t = jnp.concatenate([wq.T, wk.T, wv.T], axis=1)             # (E, 3E)
    bqkv = jnp.concatenate([bq, bk, bv]).reshape(1, 3 * E)           # (1, 3E)
    wp_t = w_proj.T / (E ** 0.5)                                     # (E, E)
    return {
        "wqkv_t": wqkv_t.astype(jnp.bfloat16),
        "bqkv": bqkv.astype(jnp.float32),
        "wp_t": wp_t.astype(jnp.bfloat16),
        "bp": b_proj.reshape(1, E).astype(jnp.float32),
    }


def reference_forward(x, raw_params, num_heads: int):
    """Pure-JAX f32 replica of the PyTorch forward (for verification)."""
    w_qkv, b_qkv, w_proj, b_proj = raw_params
    B, N, E = x.shape
    D = E // num_heads
    qkv = x @ w_qkv.T + b_qkv                      # (B, N, 3E)
    qkv = qkv.reshape(B, N, num_heads, D, 3)       # (h d qkv) split
    qkv = jnp.transpose(qkv, (4, 0, 2, 1, 3))      # (qkv, B, h, N, D)
    q, k, v = qkv[0], qkv[1], qkv[2]
    energy = jnp.einsum("bhqd,bhkd->bhqk", q, k)
    att = jax.nn.softmax(energy, axis=-1) / (E ** 0.5)   # post-softmax scaling quirk
    out = jnp.einsum("bhal,bhlv->bhav", att, v)
    out = jnp.transpose(out, (0, 2, 1, 3)).reshape(B, N, E)
    return out @ w_proj.T + b_proj


if __name__ == "__main__":
    B, N, E, H = 2, 8, 32, 8
    key = jax.random.PRNGKey(0)
    kx, kp = jax.random.split(key)
    x = jax.random.normal(kx, (B, N, E), jnp.float32)

    raw = init_raw_params(kp, E)
    params = prepare_params(*raw)

    out = multi_head_attention(x, params, num_heads=H)
    out = jax.block_until_ready(out)

    ref = reference_forward(x, raw, num_heads=H)
    # bf16 MXU operands + approx reciprocal -> relaxed tolerance.
    np.testing.assert_allclose(np.asarray(out), np.asarray(ref),
                               rtol=2e-2, atol=2e-2)

    print("KERNEL_OK")
</pallas_src>

<mosaic_0001>
module attributes {stable_mosaic.version = 11 : i64} {
  func.func @_mha_kernel(%arg0: i32, %arg1: memref<2x8x32xbf16, #tpu.memory_space<vmem>>, %arg2: memref<32x96xbf16, #tpu.memory_space<vmem>>, %arg3: memref<1x96xf32, #tpu.memory_space<vmem>>, %arg4: memref<32x32xbf16, #tpu.memory_space<vmem>>, %arg5: memref<1x32xf32, #tpu.memory_space<vmem>>, %arg6: memref<2x8x32xf32, #tpu.memory_space<vmem>>, %arg7: memref<16x96xbf16, #tpu.memory_space<vmem>>, %arg8: memref<16x32xbf16, #tpu.memory_space<vmem>>) attributes {dimension_semantics = [#tpu.dimension_semantics<parallel>], iteration_bounds = array<i64: 1>, scalar_prefetch = 0 : i64, scratch_operands = 2 : i64, tpu.core_type = #tpu.core_type<tc>, window_params = [{transform_indices = @transform_0, window_bounds = array<i64: 2, 8, 32>}, {pipeline_mode = #tpu.pipeline_mode<synchronous>, transform_indices = @transform_1, window_bounds = array<i64: 32, 96>}, {pipeline_mode = #tpu.pipeline_mode<synchronous>, transform_indices = @transform_2, window_bounds = array<i64: 1, 96>}, {pipeline_mode = #tpu.pipeline_mode<synchronous>, transform_indices = @transform_3, window_bounds = array<i64: 32, 32>}, {pipeline_mode = #tpu.pipeline_mode<synchronous>, transform_indices = @transform_4, window_bounds = array<i64: 1, 32>}, {transform_indices = @transform_5, window_bounds = array<i64: 2, 8, 32>}]} {
    %c0 = arith.constant 0 : index
    %c0_0 = arith.constant 0 : index
    %c0_1 = arith.constant 0 : index
    %0 = vector.load %arg1[%c0, %c0_0, %c0_1] : memref<2x8x32xbf16, #tpu.memory_space<vmem>>, vector<2x8x32xbf16>
    %1 = vector.shape_cast %0 : vector<2x8x32xbf16> to vector<16x32xbf16>
    %c0_2 = arith.constant 0 : index
    %c0_3 = arith.constant 0 : index
    %2 = vector.load %arg2[%c0_2, %c0_3] : memref<32x96xbf16, #tpu.memory_space<vmem>>, vector<32x96xbf16>
    %cst = arith.constant dense<0.000000e+00> : vector<16x96xf32>
    %3 = tpu.matmul %1, %2, %cst {dimension_numbers = #tpu.dot_dimension_numbers<[1], [0], [0], [1], [0, 0, 1, 1], [], []>} : vector<16x32xbf16>, vector<32x96xbf16>, vector<16x96xf32> -> vector<16x96xf32>
    %c0_4 = arith.constant 0 : index
    %c0_5 = arith.constant 0 : index
    %4 = vector.load %arg3[%c0_4, %c0_5] : memref<1x96xf32, #tpu.memory_space<vmem>>, vector<1x96xf32>
    %5 = vector.broadcast %4 : vector<1x96xf32> to vector<16x96xf32>
    %6 = arith.addf %3, %5 : vector<16x96xf32>
    %7 = arith.truncf %6 : vector<16x96xf32> to vector<16x96xbf16>
    %c0_6 = arith.constant 0 : index
    %c0_7 = arith.constant 0 : index
    %8 = vector.load %arg7[%c0_6, %c0_7] : memref<16x96xbf16, #tpu.memory_space<vmem>>, vector<16x96xbf16>
    tpu.vector_store %arg7[%c0_6, %c0_7], %7 {strides = array<i32>} : memref<16x96xbf16, #tpu.memory_space<vmem>>, vector<16x96xbf16>,
    %c0_8 = arith.constant 0 : index
    %c0_9 = arith.constant 0 : index
    %9 = vector.load %arg7[%c0_8, %c0_9] : memref<16x96xbf16, #tpu.memory_space<vmem>>, vector<16x4xbf16>
    %10 = vector.shape_cast %9 : vector<16x4xbf16> to vector<2x8x4xbf16>
    %c0_10 = arith.constant 0 : index
    %c32 = arith.constant 32 : index
    %11 = vector.load %arg7[%c0_10, %c32] : memref<16x96xbf16, #tpu.memory_space<vmem>>, vector<16x4xbf16>
    %12 = vector.shape_cast %11 : vector<16x4xbf16> to vector<2x8x4xbf16>
    %c0_11 = arith.constant 0 : index
    %c64 = arith.constant 64 : index
    %13 = vector.load %arg7[%c0_11, %c64] : memref<16x96xbf16, #tpu.memory_space<vmem>>, vector<16x4xbf16>
    %14 = vector.shape_cast %13 : vector<16x4xbf16> to vector<2x8x4xbf16>
    "tpu.trace_start"() <{level = 10 : i32, message = "bnd,bmd->bnm"}> : () -> ()
    %cst_12 = arith.constant dense<0.000000e+00> : vector<2x8x8xf32>
    %15 = tpu.matmul %10, %12, %cst_12 {dimension_numbers = #tpu.dot_dimension_numbers<[2], [2], [1], [1], [0, 0, 0, 1, 1, 1], [0], [0]>} : vector<2x8x4xbf16>, vector<2x8x4xbf16>, vector<2x8x8xf32> -> vector<2x8x8xf32>
    "tpu.trace_stop"() : () -> ()
    %cst_13 = arith.constant dense<0xFF800000> : vector<2x8xf32>
    %16 = vector.multi_reduction <maximumf>, %15, %cst_13 [2] : vector<2x8x8xf32> to vector<2x8xf32>
    %17 = vector.shape_cast %16 : vector<2x8xf32> to vector<2x8x1xf32>
    %18 = vector.broadcast %17 : vector<2x8x1xf32> to vector<2x8x8xf32>
    %19 = arith.subf %15, %18 : vector<2x8x8xf32>
    %20 = math.exp %19 : vector<2x8x8xf32>
    %cst_14 = arith.constant dense<0.000000e+00> : vector<2x8xf32>
    %21 = vector.multi_reduction <add>, %20, %cst_14 [2] : vector<2x8x8xf32> to vector<2x8xf32>
    %22 = vector.shape_cast %21 : vector<2x8xf32> to vector<2x8x1xf32>
    %23 = tpu.reciprocal %22 {approx = true} : vector<2x8x1xf32> -> vector<2x8x1xf32>
    %24 = vector.broadcast %23 : vector<2x8x1xf32> to vector<2x8x8xf32>
    %25 = arith.mulf %20, %24 : vector<2x8x8xf32>
    %26 = arith.truncf %25 : vector<2x8x8xf32> to vector<2x8x8xbf16>
    "tpu.trace_start"() <{level = 10 : i32, message = "bnm,bmd->bnd"}> : () -> ()
    %cst_15 = arith.constant dense<0.000000e+00> : vector<2x8x4xf32>
    %27 = tpu.matmul %26, %14, %cst_15 {dimension_numbers = #tpu.dot_dimension_numbers<[2], [1], [1], [2], [0, 0, 0, 1, 1, 2], [0], [0]>} : vector<2x8x8xbf16>, vector<2x8x4xbf16>, vector<2x8x4xf32> -> vector<2x8x4xf32>
    "tpu.trace_stop"() : () -> ()
    %28 = vector.shape_cast %27 : vector<2x8x4xf32> to vector<16x4xf32>
    %29 = arith.truncf %28 : vector<16x4xf32> to vector<16x4xbf16>
    %c0_16 = arith.constant 0 : index
    %c0_17 = arith.constant 0 : index
    %30 = vector.load %arg8[%c0_16, %c0_17] : memref<16x32xbf16, #tpu.memory_space<vmem>>, vector<16x4xbf16>
    tpu.vector_store %arg8[%c0_16, %c0_17], %29 {strides = array<i32>} : memref<16x32xbf16, #tpu.memory_space<vmem>>, vector<16x4xbf16>,
    %c0_18 = arith.constant 0 : index
    %c4 = arith.constant 4 : index
    %31 = vector.load %arg7[%c0_18, %c4] : memref<16x96xbf16, #tpu.memory_space<vmem>>, vector<16x4xbf16>
    %32 = vector.shape_cast %31 : vector<16x4xbf16> to vector<2x8x4xbf16>
    %c0_19 = arith.constant 0 : index
    %c36 = arith.constant 36 : index
    %33 = vector.load %arg7[%c0_19, %c36] : memref<16x96xbf16, #tpu.memory_space<vmem>>, vector<16x4xbf16>
    %34 = vector.shape_cast %33 : vector<16x4xbf16> to vector<2x8x4xbf16>
    %c0_20 = arith.constant 0 : index
    %c68 = arith.constant 68 : index
    %35 = vector.load %arg7[%c0_20, %c68] : memref<16x96xbf16, #tpu.memory_space<vmem>>, vector<16x4xbf16>
    %36 = vector.shape_cast %35 : vector<16x4xbf16> to vector<2x8x4xbf16>
    "tpu.trace_start"() <{level = 10 : i32, message = "bnd,bmd->bnm"}> : () -> ()
    %cst_21 = arith.constant dense<0.000000e+00> : vector<2x8x8xf32>
    %37 = tpu.matmul %32, %34, %cst_21 {dimension_numbers = #tpu.dot_dimension_numbers<[2], [2], [1], [1], [0, 0, 0, 1, 1, 1], [0], [0]>} : vector<2x8x4xbf16>, vector<2x8x4xbf16>, vector<2x8x8xf32> -> vector<2x8x8xf32>
    "tpu.trace_stop"() : () -> ()
    %cst_22 = arith.constant dense<0xFF800000> : vector<2x8xf32>
    %38 = vector.multi_reduction <maximumf>, %37, %cst_22 [2] : vector<2x8x8xf32> to vector<2x8xf32>
    %39 = vector.shape_cast %38 : vector<2x8xf32> to vector<2x8x1xf32>
    %40 = vector.broadcast %39 : vector<2x8x1xf32> to vector<2x8x8xf32>
    %41 = arith.subf %37, %40 : vector<2x8x8xf32>
    %42 = math.exp %41 : vector<2x8x8xf32>
    %cst_23 = arith.constant dense<0.000000e+00> : vector<2x8xf32>
    %43 = vector.multi_reduction <add>, %42, %cst_23 [2] : vector<2x8x8xf32> to vector<2x8xf32>
    %44 = vector.shape_cast %43 : vector<2x8xf32> to vector<2x8x1xf32>
    %45 = tpu.reciprocal %44 {approx = true} : vector<2x8x1xf32> -> vector<2x8x1xf32>
    %46 = vector.broadcast %45 : vector<2x8x1xf32> to vector<2x8x8xf32>
    %47 = arith.mulf %42, %46 : vector<2x8x8xf32>
    %48 = arith.truncf %47 : vector<2x8x8xf32> to vector<2x8x8xbf16>
    "tpu.trace_start"() <{level = 10 : i32, message = "bnm,bmd->bnd"}> : () -> ()
    %cst_24 = arith.constant dense<0.000000e+00> : vector<2x8x4xf32>
    %49 = tpu.matmul %48, %36, %cst_24 {dimension_numbers = #tpu.dot_dimension_numbers<[2], [1], [1], [2], [0, 0, 0, 1, 1, 2], [0], [0]>} : vector<2x8x8xbf16>, vector<2x8x4xbf16>, vector<2x8x4xf32> -> vector<2x8x4xf32>
    "tpu.trace_stop"() : () -> ()
    %50 = vector.shape_cast %49 : vector<2x8x4xf32> to vector<16x4xf32>
    %51 = arith.truncf %50 : vector<16x4xf32> to vector<16x4xbf16>
    %c0_25 = arith.constant 0 : index
    %c4_26 = arith.constant 4 : index
    %52 = vector.load %arg8[%c0_25, %c4_26] : memref<16x32xbf16, #tpu.memory_space<vmem>>, vector<16x4xbf16>
    tpu.vector_store %arg8[%c0_25, %c4_26], %51 {strides = array<i32>} : memref<16x32xbf16, #tpu.memory_space<vmem>>, vector<16x4xbf16>,
    %c0_27 = arith.constant 0 : index
    %c8 = arith.constant 8 : index
    %53 = vector.load %arg7[%c0_27, %c8] : memref<16x96xbf16, #tpu.memory_space<vmem>>, vector<16x4xbf16>
    %54 = vector.shape_cast %53 : vector<16x4xbf16> to vector<2x8x4xbf16>
    %c0_28 = arith.constant 0 : index
    %c40 = arith.constant 40 : index
    %55 = vector.load %arg7[%c0_28, %c40] : memref<16x96xbf16, #tpu.memory_space<vmem>>, vector<16x4xbf16>
    %56 = vector.shape_cast %55 : vector<16x4xbf16> to vector<2x8x4xbf16>
    %c0_29 = arith.constant 0 : index
    %c72 = arith.constant 72 : index
    %57 = vector.load %arg7[%c0_29, %c72] : memref<16x96xbf16, #tpu.memory_space<vmem>>, vector<16x4xbf16>
    %58 = vector.shape_cast %57 : vector<16x4xbf16> to vector<2x8x4xbf16>
    "tpu.trace_start"() <{level = 10 : i32, message = "bnd,bmd->bnm"}> : () -> ()
    %cst_30 = arith.constant dense<0.000000e+00> : vector<2x8x8xf32>
    %59 = tpu.matmul %54, %56, %cst_30 {dimension_numbers = #tpu.dot_dimension_numbers<[2], [2], [1], [1], [0, 0, 0, 1, 1, 1], [0], [0]>} : vector<2x8x4xbf16>, vector<2x8x4xbf16>, vector<2x8x8xf32> -> vector<2x8x8xf32>
    "tpu.trace_stop"() : () -> ()
    %cst_31 = arith.constant dense<0xFF800000> : vector<2x8xf32>
    %60 = vector.multi_reduction <maximumf>, %59, %cst_31 [2] : vector<2x8x8xf32> to vector<2x8xf32>
    %61 = vector.shape_cast %60 : vector<2x8xf32> to vector<2x8x1xf32>
    %62 = vector.broadcast %61 : vector<2x8x1xf32> to vector<2x8x8xf32>
    %63 = arith.subf %59, %62 : vector<2x8x8xf32>
    %64 = math.exp %63 : vector<2x8x8xf32>
    %cst_32 = arith.constant dense<0.000000e+00> : vector<2x8xf32>
    %65 = vector.multi_reduction <add>, %64, %cst_32 [2] : vector<2x8x8xf32> to vector<2x8xf32>
    %66 = vector.shape_cast %65 : vector<2x8xf32> to vector<2x8x1xf32>
    %67 = tpu.reciprocal %66 {approx = true} : vector<2x8x1xf32> -> vector<2x8x1xf32>
    %68 = vector.broadcast %67 : vector<2x8x1xf32> to vector<2x8x8xf32>
    %69 = arith.mulf %64, %68 : vector<2x8x8xf32>
    %70 = arith.truncf %69 : vector<2x8x8xf32> to vector<2x8x8xbf16>
    "tpu.trace_start"() <{level = 10 : i32, message = "bnm,bmd->bnd"}> : () -> ()
    %cst_33 = arith.constant dense<0.000000e+00> : vector<2x8x4xf32>
    %71 = tpu.matmul %70, %58, %cst_33 {dimension_numbers = #tpu.dot_dimension_numbers<[2], [1], [1], [2], [0, 0, 0, 1, 1, 2], [0], [0]>} : vector<2x8x8xbf16>, vector<2x8x4xbf16>, vector<2x8x4xf32> -> vector<2x8x4xf32>
    "tpu.trace_stop"() : () -> ()
    %72 = vector.shape_cast %71 : vector<2x8x4xf32> to vector<16x4xf32>
    %73 = arith.truncf %72 : vector<16x4xf32> to vector<16x4xbf16>
    %c0_34 = arith.constant 0 : index
    %c8_35 = arith.constant 8 : index
    %74 = vector.load %arg8[%c0_34, %c8_35] : memref<16x32xbf16, #tpu.memory_space<vmem>>, vector<16x4xbf16>
    tpu.vector_store %arg8[%c0_34, %c8_35], %73 {strides = array<i32>} : memref<16x32xbf16, #tpu.memory_space<vmem>>, vector<16x4xbf16>,
    %c0_36 = arith.constant 0 : index
    %c12 = arith.constant 12 : index
    %75 = vector.load %arg7[%c0_36, %c12] : memref<16x96xbf16, #tpu.memory_space<vmem>>, vector<16x4xbf16>
    %76 = vector.shape_cast %75 : vector<16x4xbf16> to vector<2x8x4xbf16>
    %c0_37 = arith.constant 0 : index
    %c44 = arith.constant 44 : index
    %77 = vector.load %arg7[%c0_37, %c44] : memref<16x96xbf16, #tpu.memory_space<vmem>>, vector<16x4xbf16>
    %78 = vector.shape_cast %77 : vector<16x4xbf16> to vector<2x8x4xbf16>
    %c0_38 = arith.constant 0 : index
    %c76 = arith.constant 76 : index
    %79 = vector.load %arg7[%c0_38, %c76] : memref<16x96xbf16, #tpu.memory_space<vmem>>, vector<16x4xbf16>
    %80 = vector.shape_cast %79 : vector<16x4xbf16> to vector<2x8x4xbf16>
    "tpu.trace_start"() <{level = 10 : i32, message = "bnd,bmd->bnm"}> : () -> ()
    %cst_39 = arith.constant dense<0.000000e+00> : vector<2x8x8xf32>
    %81 = tpu.matmul %76, %78, %cst_39 {dimension_numbers = #tpu.dot_dimension_numbers<[2], [2], [1], [1], [0, 0, 0, 1, 1, 1], [0], [0]>} : vector<2x8x4xbf16>, vector<2x8x4xbf16>, vector<2x8x8xf32> -> vector<2x8x8xf32>
    "tpu.trace_stop"() : () -> ()
    %cst_40 = arith.constant dense<0xFF800000> : vector<2x8xf32>
    %82 = vector.multi_reduction <maximumf>, %81, %cst_40 [2] : vector<2x8x8xf32> to vector<2x8xf32>
    %83 = vector.shape_cast %82 : vector<2x8xf32> to vector<2x8x1xf32>
    %84 = vector.broadcast %83 : vector<2x8x1xf32> to vector<2x8x8xf32>
    %85 = arith.subf %81, %84 : vector<2x8x8xf32>
    %86 = math.exp %85 : vector<2x8x8xf32>
    %cst_41 = arith.constant dense<0.000000e+00> : vector<2x8xf32>
    %87 = vector.multi_reduction <add>, %86, %cst_41 [2] : vector<2x8x8xf32> to vector<2x8xf32>
    %88 = vector.shape_cast %87 : vector<2x8xf32> to vector<2x8x1xf32>
    %89 = tpu.reciprocal %88 {approx = true} : vector<2x8x1xf32> -> vector<2x8x1xf32>
    %90 = vector.broadcast %89 : vector<2x8x1xf32> to vector<2x8x8xf32>
    %91 = arith.mulf %86, %90 : vector<2x8x8xf32>
    %92 = arith.truncf %91 : vector<2x8x8xf32> to vector<2x8x8xbf16>
    "tpu.trace_start"() <{level = 10 : i32, message = "bnm,bmd->bnd"}> : () -> ()
    %cst_42 = arith.constant dense<0.000000e+00> : vector<2x8x4xf32>
    %93 = tpu.matmul %92, %80, %cst_42 {dimension_numbers = #tpu.dot_dimension_numbers<[2], [1], [1], [2], [0, 0, 0, 1, 1, 2], [0], [0]>} : vector<2x8x8xbf16>, vector<2x8x4xbf16>, vector<2x8x4xf32> -> vector<2x8x4xf32>
    "tpu.trace_stop"() : () -> ()
    %94 = vector.shape_cast %93 : vector<2x8x4xf32> to vector<16x4xf32>
    %95 = arith.truncf %94 : vector<16x4xf32> to vector<16x4xbf16>
    %c0_43 = arith.constant 0 : index
    %c12_44 = arith.constant 12 : index
    %96 = vector.load %arg8[%c0_43, %c12_44] : memref<16x32xbf16, #tpu.memory_space<vmem>>, vector<16x4xbf16>
    tpu.vector_store %arg8[%c0_43, %c12_44], %95 {strides = array<i32>} : memref<16x32xbf16, #tpu.memory_space<vmem>>, vector<16x4xbf16>,
    %c0_45 = arith.constant 0 : index
    %c16 = arith.constant 16 : index
    %97 = vector.load %arg7[%c0_45, %c16] : memref<16x96xbf16, #tpu.memory_space<vmem>>, vector<16x4xbf16>
    %98 = vector.shape_cast %97 : vector<16x4xbf16> to vector<2x8x4xbf16>
    %c0_46 = arith.constant 0 : index
    %c48 = arith.constant 48 : index
    %99 = vector.load %arg7[%c0_46, %c48] : memref<16x96xbf16, #tpu.memory_space<vmem>>, vector<16x4xbf16>
    %100 = vector.shape_cast %99 : vector<16x4xbf16> to vector<2x8x4xbf16>
    %c0_47 = arith.constant 0 : index
    %c80 = arith.constant 80 : index
    %101 = vector.load %arg7[%c0_47, %c80] : memref<16x96xbf16, #tpu.memory_space<vmem>>, vector<16x4xbf16>
    %102 = vector.shape_cast %101 : vector<16x4xbf16> to vector<2x8x4xbf16>
    "tpu.trace_start"() <{level = 10 : i32, message = "bnd,bmd->bnm"}> : () -> ()
    %cst_48 = arith.constant dense<0.000000e+00> : vector<2x8x8xf32>
    %103 = tpu.matmul %98, %100, %cst_48 {dimension_numbers = #tpu.dot_dimension_numbers<[2], [2], [1], [1], [0, 0, 0, 1, 1, 1], [0], [0]>} : vector<2x8x4xbf16>, vector<2x8x4xbf16>, vector<2x8x8xf32> -> vector<2x8x8xf32>
    "tpu.trace_stop"() : () -> ()
    %cst_49 = arith.constant dense<0xFF800000> : vector<2x8xf32>
    %104 = vector.multi_reduction <maximumf>, %103, %cst_49 [2] : vector<2x8x8xf32> to vector<2x8xf32>
    %105 = vector.shape_cast %104 : vector<2x8xf32> to vector<2x8x1xf32>
    %106 = vector.broadcast %105 : vector<2x8x1xf32> to vector<2x8x8xf32>
    %107 = arith.subf %103, %106 : vector<2x8x8xf32>
    %108 = math.exp %107 : vector<2x8x8xf32>
    %cst_50 = arith.constant dense<0.000000e+00> : vector<2x8xf32>
    %109 = vector.multi_reduction <add>, %108, %cst_50 [2] : vector<2x8x8xf32> to vector<2x8xf32>
    %110 = vector.shape_cast %109 : vector<2x8xf32> to vector<2x8x1xf32>
    %111 = tpu.reciprocal %110 {approx = true} : vector<2x8x1xf32> -> vector<2x8x1xf32>
    %112 = vector.broadcast %111 : vector<2x8x1xf32> to vector<2x8x8xf32>
    %113 = arith.mulf %108, %112 : vector<2x8x8xf32>
    %114 = arith.truncf %113 : vector<2x8x8xf32> to vector<2x8x8xbf16>
    "tpu.trace_start"() <{level = 10 : i32, message = "bnm,bmd->bnd"}> : () -> ()
    %cst_51 = arith.constant dense<0.000000e+00> : vector<2x8x4xf32>
    %115 = tpu.matmul %114, %102, %cst_51 {dimension_numbers = #tpu.dot_dimension_numbers<[2], [1], [1], [2], [0, 0, 0, 1, 1, 2], [0], [0]>} : vector<2x8x8xbf16>, vector<2x8x4xbf16>, vector<2x8x4xf32> -> vector<2x8x4xf32>
    "tpu.trace_stop"() : () -> ()
    %116 = vector.shape_cast %115 : vector<2x8x4xf32> to vector<16x4xf32>
    %117 = arith.truncf %116 : vector<16x4xf32> to vector<16x4xbf16>
    %c0_52 = arith.constant 0 : index
    %c16_53 = arith.constant 16 : index
    %118 = vector.load %arg8[%c0_52, %c16_53] : memref<16x32xbf16, #tpu.memory_space<vmem>>, vector<16x4xbf16>
    tpu.vector_store %arg8[%c0_52, %c16_53], %117 {strides = array<i32>} : memref<16x32xbf16, #tpu.memory_space<vmem>>, vector<16x4xbf16>,
    %c0_54 = arith.constant 0 : index
    %c20 = arith.constant 20 : index
    %119 = vector.load %arg7[%c0_54, %c20] : memref<16x96xbf16, #tpu.memory_space<vmem>>, vector<16x4xbf16>
    %120 = vector.shape_cast %119 : vector<16x4xbf16> to vector<2x8x4xbf16>
    %c0_55 = arith.constant 0 : index
    %c52 = arith.constant 52 : index
    %121 = vector.load %arg7[%c0_55, %c52] : memref<16x96xbf16, #tpu.memory_space<vmem>>, vector<16x4xbf16>
    %122 = vector.shape_cast %121 : vector<16x4xbf16> to vector<2x8x4xbf16>
    %c0_56 = arith.constant 0 : index
    %c84 = arith.constant 84 : index
    %123 = vector.load %arg7[%c0_56, %c84] : memref<16x96xbf16, #tpu.memory_space<vmem>>, vector<16x4xbf16>
    %124 = vector.shape_cast %123 : vector<16x4xbf16> to vector<2x8x4xbf16>
    "tpu.trace_start"() <{level = 10 : i32, message = "bnd,bmd->bnm"}> : () -> ()
    %cst_57 = arith.constant dense<0.000000e+00> : vector<2x8x8xf32>
    %125 = tpu.matmul %120, %122, %cst_57 {dimension_numbers = #tpu.dot_dimension_numbers<[2], [2], [1], [1], [0, 0, 0, 1, 1, 1], [0], [0]>} : vector<2x8x4xbf16>, vector<2x8x4xbf16>, vector<2x8x8xf32> -> vector<2x8x8xf32>
    "tpu.trace_stop"() : () -> ()
    %cst_58 = arith.constant dense<0xFF800000> : vector<2x8xf32>
    %126 = vector.multi_reduction <maximumf>, %125, %cst_58 [2] : vector<2x8x8xf32> to vector<2x8xf32>
    %127 = vector.shape_cast %126 : vector<2x8xf32> to vector<2x8x1xf32>
    %128 = vector.broadcast %127 : vector<2x8x1xf32> to vector<2x8x8xf32>
    %129 = arith.subf %125, %128 : vector<2x8x8xf32>
    %130 = math.exp %129 : vector<2x8x8xf32>
    %cst_59 = arith.constant dense<0.000000e+00> : vector<2x8xf32>
    %131 = vector.multi_reduction <add>, %130, %cst_59 [2] : vector<2x8x8xf32> to vector<2x8xf32>
    %132 = vector.shape_cast %131 : vector<2x8xf32> to vector<2x8x1xf32>
    %133 = tpu.reciprocal %132 {approx = true} : vector<2x8x1xf32> -> vector<2x8x1xf32>
    %134 = vector.broadcast %133 : vector<2x8x1xf32> to vector<2x8x8xf32>
    %135 = arith.mulf %130, %134 : vector<2x8x8xf32>
    %136 = arith.truncf %135 : vector<2x8x8xf32> to vector<2x8x8xbf16>
    "tpu.trace_start"() <{level = 10 : i32, message = "bnm,bmd->bnd"}> : () -> ()
    %cst_60 = arith.constant dense<0.000000e+00> : vector<2x8x4xf32>
    %137 = tpu.matmul %136, %124, %cst_60 {dimension_numbers = #tpu.dot_dimension_numbers<[2], [1], [1], [2], [0, 0, 0, 1, 1, 2], [0], [0]>} : vector<2x8x8xbf16>, vector<2x8x4xbf16>, vector<2x8x4xf32> -> vector<2x8x4xf32>
    "tpu.trace_stop"() : () -> ()
    %138 = vector.shape_cast %137 : vector<2x8x4xf32> to vector<16x4xf32>
    %139 = arith.truncf %138 : vector<16x4xf32> to vector<16x4xbf16>
    %c0_61 = arith.constant 0 : index
    %c20_62 = arith.constant 20 : index
    %140 = vector.load %arg8[%c0_61, %c20_62] : memref<16x32xbf16, #tpu.memory_space<vmem>>, vector<16x4xbf16>
    tpu.vector_store %arg8[%c0_61, %c20_62], %139 {strides = array<i32>} : memref<16x32xbf16, #tpu.memory_space<vmem>>, vector<16x4xbf16>,
    %c0_63 = arith.constant 0 : index
    %c24 = arith.constant 24 : index
    %141 = vector.load %arg7[%c0_63, %c24] : memref<16x96xbf16, #tpu.memory_space<vmem>>, vector<16x4xbf16>
    %142 = vector.shape_cast %141 : vector<16x4xbf16> to vector<2x8x4xbf16>
    %c0_64 = arith.constant 0 : index
    %c56 = arith.constant 56 : index
    %143 = vector.load %arg7[%c0_64, %c56] : memref<16x96xbf16, #tpu.memory_space<vmem>>, vector<16x4xbf16>
    %144 = vector.shape_cast %143 : vector<16x4xbf16> to vector<2x8x4xbf16>
    %c0_65 = arith.constant 0 : index
    %c88 = arith.constant 88 : index
    %145 = vector.load %arg7[%c0_65, %c88] : memref<16x96xbf16, #tpu.memory_space<vmem>>, vector<16x4xbf16>
    %146 = vector.shape_cast %145 : vector<16x4xbf16> to vector<2x8x4xbf16>
    "tpu.trace_start"() <{level = 10 : i32, message = "bnd,bmd->bnm"}> : () -> ()
    %cst_66 = arith.constant dense<0.000000e+00> : vector<2x8x8xf32>
    %147 = tpu.matmul %142, %144, %cst_66 {dimension_numbers = #tpu.dot_dimension_numbers<[2], [2], [1], [1], [0, 0, 0, 1, 1, 1], [0], [0]>} : vector<2x8x4xbf16>, vector<2x8x4xbf16>, vector<2x8x8xf32> -> vector<2x8x8xf32>
    "tpu.trace_stop"() : () -> ()
    %cst_67 = arith.constant dense<0xFF800000> : vector<2x8xf32>
    %148 = vector.multi_reduction <maximumf>, %147, %cst_67 [2] : vector<2x8x8xf32> to vector<2x8xf32>
    %149 = vector.shape_cast %148 : vector<2x8xf32> to vector<2x8x1xf32>
    %150 = vector.broadcast %149 : vector<2x8x1xf32> to vector<2x8x8xf32>
    %151 = arith.subf %147, %150 : vector<2x8x8xf32>
    %152 = math.exp %151 : vector<2x8x8xf32>
    %cst_68 = arith.constant dense<0.000000e+00> : vector<2x8xf32>
    %153 = vector.multi_reduction <add>, %152, %cst_68 [2] : vector<2x8x8xf32> to vector<2x8xf32>
    %154 = vector.shape_cast %153 : vector<2x8xf32> to vector<2x8x1xf32>
    %155 = tpu.reciprocal %154 {approx = true} : vector<2x8x1xf32> -> vector<2x8x1xf32>
    %156 = vector.broadcast %155 : vector<2x8x1xf32> to vector<2x8x8xf32>
    %157 = arith.mulf %152, %156 : vector<2x8x8xf32>
    %158 = arith.truncf %157 : vector<2x8x8xf32> to vector<2x8x8xbf16>
    "tpu.trace_start"() <{level = 10 : i32, message = "bnm,bmd->bnd"}> : () -> ()
    %cst_69 = arith.constant dense<0.000000e+00> : vector<2x8x4xf32>
    %159 = tpu.matmul %158, %146, %cst_69 {dimension_numbers = #tpu.dot_dimension_numbers<[2], [1], [1], [2], [0, 0, 0, 1, 1, 2], [0], [0]>} : vector<2x8x8xbf16>, vector<2x8x4xbf16>, vector<2x8x4xf32> -> vector<2x8x4xf32>
    "tpu.trace_stop"() : () -> ()
    %160 = vector.shape_cast %159 : vector<2x8x4xf32> to vector<16x4xf32>
    %161 = arith.truncf %160 : vector<16x4xf32> to vector<16x4xbf16>
    %c0_70 = arith.constant 0 : index
    %c24_71 = arith.constant 24 : index
    %162 = vector.load %arg8[%c0_70, %c24_71] : memref<16x32xbf16, #tpu.memory_space<vmem>>, vector<16x4xbf16>
    tpu.vector_store %arg8[%c0_70, %c24_71], %161 {strides = array<i32>} : memref<16x32xbf16, #tpu.memory_space<vmem>>, vector<16x4xbf16>,
    %c0_72 = arith.constant 0 : index
    %c28 = arith.constant 28 : index
    %163 = vector.load %arg7[%c0_72, %c28] : memref<16x96xbf16, #tpu.memory_space<vmem>>, vector<16x4xbf16>
    %164 = vector.shape_cast %163 : vector<16x4xbf16> to vector<2x8x4xbf16>
    %c0_73 = arith.constant 0 : index
    %c60 = arith.constant 60 : index
    %165 = vector.load %arg7[%c0_73, %c60] : memref<16x96xbf16, #tpu.memory_space<vmem>>, vector<16x4xbf16>
    %166 = vector.shape_cast %165 : vector<16x4xbf16> to vector<2x8x4xbf16>
    %c0_74 = arith.constant 0 : index
    %c92 = arith.constant 92 : index
    %167 = vector.load %arg7[%c0_74, %c92] : memref<16x96xbf16, #tpu.memory_space<vmem>>, vector<16x4xbf16>
    %168 = vector.shape_cast %167 : vector<16x4xbf16> to vector<2x8x4xbf16>
    "tpu.trace_start"() <{level = 10 : i32, message = "bnd,bmd->bnm"}> : () -> ()
    %cst_75 = arith.constant dense<0.000000e+00> : vector<2x8x8xf32>
    %169 = tpu.matmul %164, %166, %cst_75 {dimension_numbers = #tpu.dot_dimension_numbers<[2], [2], [1], [1], [0, 0, 0, 1, 1, 1], [0], [0]>} : vector<2x8x4xbf16>, vector<2x8x4xbf16>, vector<2x8x8xf32> -> vector<2x8x8xf32>
    "tpu.trace_stop"() : () -> ()
    %cst_76 = arith.constant dense<0xFF800000> : vector<2x8xf32>
    %170 = vector.multi_reduction <maximumf>, %169, %cst_76 [2] : vector<2x8x8xf32> to vector<2x8xf32>
    %171 = vector.shape_cast %170 : vector<2x8xf32> to vector<2x8x1xf32>
    %172 = vector.broadcast %171 : vector<2x8x1xf32> to vector<2x8x8xf32>
    %173 = arith.subf %169, %172 : vector<2x8x8xf32>
    %174 = math.exp %173 : vector<2x8x8xf32>
    %cst_77 = arith.constant dense<0.000000e+00> : vector<2x8xf32>
    %175 = vector.multi_reduction <add>, %174, %cst_77 [2] : vector<2x8x8xf32> to vector<2x8xf32>
    %176 = vector.shape_cast %175 : vector<2x8xf32> to vector<2x8x1xf32>
    %177 = tpu.reciprocal %176 {approx = true} : vector<2x8x1xf32> -> vector<2x8x1xf32>
    %178 = vector.broadcast %177 : vector<2x8x1xf32> to vector<2x8x8xf32>
    %179 = arith.mulf %174, %178 : vector<2x8x8xf32>
    %180 = arith.truncf %179 : vector<2x8x8xf32> to vector<2x8x8xbf16>
    "tpu.trace_start"() <{level = 10 : i32, message = "bnm,bmd->bnd"}> : () -> ()
    %cst_78 = arith.constant dense<0.000000e+00> : vector<2x8x4xf32>
    %181 = tpu.matmul %180, %168, %cst_78 {dimension_numbers = #tpu.dot_dimension_numbers<[2], [1], [1], [2], [0, 0, 0, 1, 1, 2], [0], [0]>} : vector<2x8x8xbf16>, vector<2x8x4xbf16>, vector<2x8x4xf32> -> vector<2x8x4xf32>
    "tpu.trace_stop"() : () -> ()
    %182 = vector.shape_cast %181 : vector<2x8x4xf32> to vector<16x4xf32>
    %183 = arith.truncf %182 : vector<16x4xf32> to vector<16x4xbf16>
    %c0_79 = arith.constant 0 : index
    %c28_80 = arith.constant 28 : index
    %184 = vector.load %arg8[%c0_79, %c28_80] : memref<16x32xbf16, #tpu.memory_space<vmem>>, vector<16x4xbf16>
    tpu.vector_store %arg8[%c0_79, %c28_80], %183 {strides = array<i32>} : memref<16x32xbf16, #tpu.memory_space<vmem>>, vector<16x4xbf16>,
    %c0_81 = arith.constant 0 : index
    %c0_82 = arith.constant 0 : index
    %185 = vector.load %arg8[%c0_81, %c0_82] : memref<16x32xbf16, #tpu.memory_space<vmem>>, vector<16x32xbf16>
    %c0_83 = arith.constant 0 : index
    %c0_84 = arith.constant 0 : index
    %186 = vector.load %arg4[%c0_83, %c0_84] : memref<32x32xbf16, #tpu.memory_space<vmem>>, vector<32x32xbf16>
    %cst_85 = arith.constant dense<0.000000e+00> : vector<16x32xf32>
    %187 = tpu.matmul %185, %186, %cst_85 {dimension_numbers = #tpu.dot_dimension_numbers<[1], [0], [0], [1], [0, 0, 1, 1], [], []>} : vector<16x32xbf16>, vector<32x32xbf16>, vector<16x32xf32> -> vector<16x32xf32>
    %c0_86 = arith.constant 0 : index
    %c0_87 = arith.constant 0 : index
    %188 = vector.load %arg5[%c0_86, %c0_87] : memref<1x32xf32, #tpu.memory_space<vmem>>, vector<1x32xf32>
    %189 = vector.broadcast %188 : vector<1x32xf32> to vector<16x32xf32>
    %190 = arith.addf %187, %189 : vector<16x32xf32>
    %191 = vector.shape_cast %190 : vector<16x32xf32> to vector<2x8x32xf32>
    %c0_88 = arith.constant 0 : index
    %c0_89 = arith.constant 0 : index
    %c0_90 = arith.constant 0 : index
    %192 = vector.load %arg6[%c0_88, %c0_89, %c0_90] : memref<2x8x32xf32, #tpu.memory_space<vmem>>, vector<2x8x32xf32>
    tpu.vector_store %arg6[%c0_88, %c0_89, %c0_90], %191 {strides = array<i32>} : memref<2x8x32xf32, #tpu.memory_space<vmem>>, vector<2x8x32xf32>,
    return
  }
  func.func @transform_0(%arg0: i32) -> (i32, i32, i32) {
    %c0_i32 = arith.constant 0 : i32
    %c0_i32_0 = arith.constant 0 : i32
    %c0_i32_1 = arith.constant 0 : i32
    return %arg0, %c0_i32, %c0_i32_0 : i32, i32, i32
  }
  func.func @transform_1(%arg0: i32) -> (i32, i32) {
    %c0_i32 = arith.constant 0 : i32
    %c0_i32_0 = arith.constant 0 : i32
    %c0_i32_1 = arith.constant 0 : i32
    return %c0_i32, %c0_i32_0 : i32, i32
  }
  func.func @transform_2(%arg0: i32) -> (i32, i32) {
    %c0_i32 = arith.constant 0 : i32
    %c0_i32_0 = arith.constant 0 : i32
    %c0_i32_1 = arith.constant 0 : i32
    return %c0_i32, %c0_i32_0 : i32, i32
  }
  func.func @transform_3(%arg0: i32) -> (i32, i32) {
    %c0_i32 = arith.constant 0 : i32
    %c0_i32_0 = arith.constant 0 : i32
    %c0_i32_1 = arith.constant 0 : i32
    return %c0_i32, %c0_i32_0 : i32, i32
  }
  func.func @transform_4(%arg0: i32) -> (i32, i32) {
    %c0_i32 = arith.constant 0 : i32
    %c0_i32_0 = arith.constant 0 : i32
    %c0_i32_1 = arith.constant 0 : i32
    return %c0_i32, %c0_i32_0 : i32, i32
  }
  func.func @transform_5(%arg0: i32) -> (i32, i32, i32) {
    %c0_i32 = arith.constant 0 : i32
    %c0_i32_0 = arith.constant 0 : i32
    %c0_i32_1 = arith.constant 0 : i32
    return %arg0, %c0_i32, %c0_i32_0 : i32, i32, i32
  }
}

module attributes {stable_mosaic.version = 11 : i64} {
  func.func @_mha_kernel(%arg0: i32, %arg1: memref<2x8x32xbf16, #tpu.memory_space<vmem>>, %arg2: memref<32x96xbf16, #tpu.memory_space<vmem>>, %arg3: memref<1x96xf32, #tpu.memory_space<vmem>>, %arg4: memref<32x32xbf16, #tpu.memory_space<vmem>>, %arg5: memref<1x32xf32, #tpu.memory_space<vmem>>, %arg6: memref<2x8x32xf32, #tpu.memory_space<vmem>>, %arg7: memref<16x96xbf16, #tpu.memory_space<vmem>>, %arg8: memref<16x32xbf16, #tpu.memory_space<vmem>>) attributes {dimension_semantics = [#tpu.dimension_semantics<parallel>], iteration_bounds = array<i64: 1>, scalar_prefetch = 0 : i64, scratch_operands = 2 : i64, tpu.core_type = #tpu.core_type<tc>, window_params = [{transform_indices = @transform_0, window_bounds = array<i64: 2, 8, 32>}, {pipeline_mode = #tpu.pipeline_mode<synchronous>, transform_indices = @transform_1, window_bounds = array<i64: 32, 96>}, {pipeline_mode = #tpu.pipeline_mode<synchronous>, transform_indices = @transform_2, window_bounds = array<i64: 1, 96>}, {pipeline_mode = #tpu.pipeline_mode<synchronous>, transform_indices = @transform_3, window_bounds = array<i64: 32, 32>}, {pipeline_mode = #tpu.pipeline_mode<synchronous>, transform_indices = @transform_4, window_bounds = array<i64: 1, 32>}, {transform_indices = @transform_5, window_bounds = array<i64: 2, 8, 32>}]} {
    %c0 = arith.constant 0 : index
    %c0_0 = arith.constant 0 : index
    %c0_1 = arith.constant 0 : index
    %0 = vector.load %arg1[%c0, %c0_0, %c0_1] : memref<2x8x32xbf16, #tpu.memory_space<vmem>>, vector<2x8x32xbf16>
    %1 = vector.shape_cast %0 : vector<2x8x32xbf16> to vector<16x32xbf16>
    %c0_2 = arith.constant 0 : index
    %c0_3 = arith.constant 0 : index
    %2 = vector.load %arg2[%c0_2, %c0_3] : memref<32x96xbf16, #tpu.memory_space<vmem>>, vector<32x96xbf16>
    %cst = arith.constant dense<0.000000e+00> : vector<16x96xf32>
    %3 = tpu.matmul %1, %2, %cst {dimension_numbers = #tpu.dot_dimension_numbers<[1], [0], [0], [1], [0, 0, 1, 1], [], []>} : vector<16x32xbf16>, vector<32x96xbf16>, vector<16x96xf32> -> vector<16x96xf32>
    %c0_4 = arith.constant 0 : index
    %c0_5 = arith.constant 0 : index
    %4 = vector.load %arg3[%c0_4, %c0_5] : memref<1x96xf32, #tpu.memory_space<vmem>>, vector<1x96xf32>
    %5 = vector.broadcast %4 : vector<1x96xf32> to vector<16x96xf32>
    %6 = arith.addf %3, %5 : vector<16x96xf32>
    %7 = arith.truncf %6 : vector<16x96xf32> to vector<16x96xbf16>
    %c0_6 = arith.constant 0 : index
    %c0_7 = arith.constant 0 : index
    %8 = vector.load %arg7[%c0_6, %c0_7] : memref<16x96xbf16, #tpu.memory_space<vmem>>, vector<16x96xbf16>
    tpu.vector_store %arg7[%c0_6, %c0_7], %7 {strides = array<i32>} : memref<16x96xbf16, #tpu.memory_space<vmem>>, vector<16x96xbf16>,
    %c0_8 = arith.constant 0 : index
    %c0_9 = arith.constant 0 : index
    %9 = vector.load %arg7[%c0_8, %c0_9] : memref<16x96xbf16, #tpu.memory_space<vmem>>, vector<16x4xbf16>
    %10 = vector.shape_cast %9 : vector<16x4xbf16> to vector<2x8x4xbf16>
    %c0_10 = arith.constant 0 : index
    %c32 = arith.constant 32 : index
    %11 = vector.load %arg7[%c0_10, %c32] : memref<16x96xbf16, #tpu.memory_space<vmem>>, vector<16x4xbf16>
    %12 = vector.shape_cast %11 : vector<16x4xbf16> to vector<2x8x4xbf16>
    %c0_11 = arith.constant 0 : index
    %c64 = arith.constant 64 : index
    %13 = vector.load %arg7[%c0_11, %c64] : memref<16x96xbf16, #tpu.memory_space<vmem>>, vector<16x4xbf16>
    %14 = vector.shape_cast %13 : vector<16x4xbf16> to vector<2x8x4xbf16>
    "tpu.trace_start"() <{level = 10 : i32, message = "bnd,bmd->bnm"}> : () -> ()
    %cst_12 = arith.constant dense<0.000000e+00> : vector<2x8x8xf32>
    %15 = tpu.matmul %10, %12, %cst_12 {dimension_numbers = #tpu.dot_dimension_numbers<[2], [2], [1], [1], [0, 0, 0, 1, 1, 1], [0], [0]>} : vector<2x8x4xbf16>, vector<2x8x4xbf16>, vector<2x8x8xf32> -> vector<2x8x8xf32>
    "tpu.trace_stop"() : () -> ()
    %cst_13 = arith.constant dense<0xFF800000> : vector<2x8xf32>
    %16 = vector.multi_reduction <maximumf>, %15, %cst_13 [2] : vector<2x8x8xf32> to vector<2x8xf32>
    %17 = vector.shape_cast %16 : vector<2x8xf32> to vector<2x8x1xf32>
    %18 = vector.broadcast %17 : vector<2x8x1xf32> to vector<2x8x8xf32>
    %19 = arith.subf %15, %18 : vector<2x8x8xf32>
    %20 = math.exp %19 : vector<2x8x8xf32>
    %cst_14 = arith.constant dense<0.000000e+00> : vector<2x8xf32>
    %21 = vector.multi_reduction <add>, %20, %cst_14 [2] : vector<2x8x8xf32> to vector<2x8xf32>
    %22 = vector.shape_cast %21 : vector<2x8xf32> to vector<2x8x1xf32>
    %23 = tpu.reciprocal %22 {approx = true} : vector<2x8x1xf32> -> vector<2x8x1xf32>
    %24 = vector.broadcast %23 : vector<2x8x1xf32> to vector<2x8x8xf32>
    %25 = arith.mulf %20, %24 : vector<2x8x8xf32>
    %26 = arith.truncf %25 : vector<2x8x8xf32> to vector<2x8x8xbf16>
    "tpu.trace_start"() <{level = 10 : i32, message = "bnm,bmd->bnd"}> : () -> ()
    %cst_15 = arith.constant dense<0.000000e+00> : vector<2x8x4xf32>
    %27 = tpu.matmul %26, %14, %cst_15 {dimension_numbers = #tpu.dot_dimension_numbers<[2], [1], [1], [2], [0, 0, 0, 1, 1, 2], [0], [0]>} : vector<2x8x8xbf16>, vector<2x8x4xbf16>, vector<2x8x4xf32> -> vector<2x8x4xf32>
    "tpu.trace_stop"() : () -> ()
    %28 = vector.shape_cast %27 : vector<2x8x4xf32> to vector<16x4xf32>
    %29 = arith.truncf %28 : vector<16x4xf32> to vector<16x4xbf16>
    %c0_16 = arith.constant 0 : index
    %c0_17 = arith.constant 0 : index
    %30 = vector.load %arg8[%c0_16, %c0_17] : memref<16x32xbf16, #tpu.memory_space<vmem>>, vector<16x4xbf16>
    tpu.vector_store %arg8[%c0_16, %c0_17], %29 {strides = array<i32>} : memref<16x32xbf16, #tpu.memory_space<vmem>>, vector<16x4xbf16>,
    %c0_18 = arith.constant 0 : index
    %c4 = arith.constant 4 : index
    %31 = vector.load %arg7[%c0_18, %c4] : memref<16x96xbf16, #tpu.memory_space<vmem>>, vector<16x4xbf16>
    %32 = vector.shape_cast %31 : vector<16x4xbf16> to vector<2x8x4xbf16>
    %c0_19 = arith.constant 0 : index
    %c36 = arith.constant 36 : index
    %33 = vector.load %arg7[%c0_19, %c36] : memref<16x96xbf16, #tpu.memory_space<vmem>>, vector<16x4xbf16>
    %34 = vector.shape_cast %33 : vector<16x4xbf16> to vector<2x8x4xbf16>
    %c0_20 = arith.constant 0 : index
    %c68 = arith.constant 68 : index
    %35 = vector.load %arg7[%c0_20, %c68] : memref<16x96xbf16, #tpu.memory_space<vmem>>, vector<16x4xbf16>
    %36 = vector.shape_cast %35 : vector<16x4xbf16> to vector<2x8x4xbf16>
    "tpu.trace_start"() <{level = 10 : i32, message = "bnd,bmd->bnm"}> : () -> ()
    %cst_21 = arith.constant dense<0.000000e+00> : vector<2x8x8xf32>
    %37 = tpu.matmul %32, %34, %cst_21 {dimension_numbers = #tpu.dot_dimension_numbers<[2], [2], [1], [1], [0, 0, 0, 1, 1, 1], [0], [0]>} : vector<2x8x4xbf16>, vector<2x8x4xbf16>, vector<2x8x8xf32> -> vector<2x8x8xf32>
    "tpu.trace_stop"() : () -> ()
    %cst_22 = arith.constant dense<0xFF800000> : vector<2x8xf32>
    %38 = vector.multi_reduction <maximumf>, %37, %cst_22 [2] : vector<2x8x8xf32> to vector<2x8xf32>
    %39 = vector.shape_cast %38 : vector<2x8xf32> to vector<2x8x1xf32>
    %40 = vector.broadcast %39 : vector<2x8x1xf32> to vector<2x8x8xf32>
    %41 = arith.subf %37, %40 : vector<2x8x8xf32>
    %42 = math.exp %41 : vector<2x8x8xf32>
    %cst_23 = arith.constant dense<0.000000e+00> : vector<2x8xf32>
    %43 = vector.multi_reduction <add>, %42, %cst_23 [2] : vector<2x8x8xf32> to vector<2x8xf32>
    %44 = vector.shape_cast %43 : vector<2x8xf32> to vector<2x8x1xf32>
    %45 = tpu.reciprocal %44 {approx = true} : vector<2x8x1xf32> -> vector<2x8x1xf32>
    %46 = vector.broadcast %45 : vector<2x8x1xf32> to vector<2x8x8xf32>
    %47 = arith.mulf %42, %46 : vector<2x8x8xf32>
    %48 = arith.truncf %47 : vector<2x8x8xf32> to vector<2x8x8xbf16>
    "tpu.trace_start"() <{level = 10 : i32, message = "bnm,bmd->bnd"}> : () -> ()
    %cst_24 = arith.constant dense<0.000000e+00> : vector<2x8x4xf32>
    %49 = tpu.matmul %48, %36, %cst_24 {dimension_numbers = #tpu.dot_dimension_numbers<[2], [1], [1], [2], [0, 0, 0, 1, 1, 2], [0], [0]>} : vector<2x8x8xbf16>, vector<2x8x4xbf16>, vector<2x8x4xf32> -> vector<2x8x4xf32>
    "tpu.trace_stop"() : () -> ()
    %50 = vector.shape_cast %49 : vector<2x8x4xf32> to vector<16x4xf32>
    %51 = arith.truncf %50 : vector<16x4xf32> to vector<16x4xbf16>
    %c0_25 = arith.constant 0 : index
    %c4_26 = arith.constant 4 : index
    %52 = vector.load %arg8[%c0_25, %c4_26] : memref<16x32xbf16, #tpu.memory_space<vmem>>, vector<16x4xbf16>
    tpu.vector_store %arg8[%c0_25, %c4_26], %51 {strides = array<i32>} : memref<16x32xbf16, #tpu.memory_space<vmem>>, vector<16x4xbf16>,
    %c0_27 = arith.constant 0 : index
    %c8 = arith.constant 8 : index
    %53 = vector.load %arg7[%c0_27, %c8] : memref<16x96xbf16, #tpu.memory_space<vmem>>, vector<16x4xbf16>
    %54 = vector.shape_cast %53 : vector<16x4xbf16> to vector<2x8x4xbf16>
    %c0_28 = arith.constant 0 : index
    %c40 = arith.constant 40 : index
    %55 = vector.load %arg7[%c0_28, %c40] : memref<16x96xbf16, #tpu.memory_space<vmem>>, vector<16x4xbf16>
    %56 = vector.shape_cast %55 : vector<16x4xbf16> to vector<2x8x4xbf16>
    %c0_29 = arith.constant 0 : index
    %c72 = arith.constant 72 : index
    %57 = vector.load %arg7[%c0_29, %c72] : memref<16x96xbf16, #tpu.memory_space<vmem>>, vector<16x4xbf16>
    %58 = vector.shape_cast %57 : vector<16x4xbf16> to vector<2x8x4xbf16>
    "tpu.trace_start"() <{level = 10 : i32, message = "bnd,bmd->bnm"}> : () -> ()
    %cst_30 = arith.constant dense<0.000000e+00> : vector<2x8x8xf32>
    %59 = tpu.matmul %54, %56, %cst_30 {dimension_numbers = #tpu.dot_dimension_numbers<[2], [2], [1], [1], [0, 0, 0, 1, 1, 1], [0], [0]>} : vector<2x8x4xbf16>, vector<2x8x4xbf16>, vector<2x8x8xf32> -> vector<2x8x8xf32>
    "tpu.trace_stop"() : () -> ()
    %cst_31 = arith.constant dense<0xFF800000> : vector<2x8xf32>
    %60 = vector.multi_reduction <maximumf>, %59, %cst_31 [2] : vector<2x8x8xf32> to vector<2x8xf32>
    %61 = vector.shape_cast %60 : vector<2x8xf32> to vector<2x8x1xf32>
    %62 = vector.broadcast %61 : vector<2x8x1xf32> to vector<2x8x8xf32>
    %63 = arith.subf %59, %62 : vector<2x8x8xf32>
    %64 = math.exp %63 : vector<2x8x8xf32>
    %cst_32 = arith.constant dense<0.000000e+00> : vector<2x8xf32>
    %65 = vector.multi_reduction <add>, %64, %cst_32 [2] : vector<2x8x8xf32> to vector<2x8xf32>
    %66 = vector.shape_cast %65 : vector<2x8xf32> to vector<2x8x1xf32>
    %67 = tpu.reciprocal %66 {approx = true} : vector<2x8x1xf32> -> vector<2x8x1xf32>
    %68 = vector.broadcast %67 : vector<2x8x1xf32> to vector<2x8x8xf32>
    %69 = arith.mulf %64, %68 : vector<2x8x8xf32>
    %70 = arith.truncf %69 : vector<2x8x8xf32> to vector<2x8x8xbf16>
    "tpu.trace_start"() <{level = 10 : i32, message = "bnm,bmd->bnd"}> : () -> ()
    %cst_33 = arith.constant dense<0.000000e+00> : vector<2x8x4xf32>
    %71 = tpu.matmul %70, %58, %cst_33 {dimension_numbers = #tpu.dot_dimension_numbers<[2], [1], [1], [2], [0, 0, 0, 1, 1, 2], [0], [0]>} : vector<2x8x8xbf16>, vector<2x8x4xbf16>, vector<2x8x4xf32> -> vector<2x8x4xf32>
    "tpu.trace_stop"() : () -> ()
    %72 = vector.shape_cast %71 : vector<2x8x4xf32> to vector<16x4xf32>
    %73 = arith.truncf %72 : vector<16x4xf32> to vector<16x4xbf16>
    %c0_34 = arith.constant 0 : index
    %c8_35 = arith.constant 8 : index
    %74 = vector.load %arg8[%c0_34, %c8_35] : memref<16x32xbf16, #tpu.memory_space<vmem>>, vector<16x4xbf16>
    tpu.vector_store %arg8[%c0_34, %c8_35], %73 {strides = array<i32>} : memref<16x32xbf16, #tpu.memory_space<vmem>>, vector<16x4xbf16>,
    %c0_36 = arith.constant 0 : index
    %c12 = arith.constant 12 : index
    %75 = vector.load %arg7[%c0_36, %c12] : memref<16x96xbf16, #tpu.memory_space<vmem>>, vector<16x4xbf16>
    %76 = vector.shape_cast %75 : vector<16x4xbf16> to vector<2x8x4xbf16>
    %c0_37 = arith.constant 0 : index
    %c44 = arith.constant 44 : index
    %77 = vector.load %arg7[%c0_37, %c44] : memref<16x96xbf16, #tpu.memory_space<vmem>>, vector<16x4xbf16>
    %78 = vector.shape_cast %77 : vector<16x4xbf16> to vector<2x8x4xbf16>
    %c0_38 = arith.constant 0 : index
    %c76 = arith.constant 76 : index
    %79 = vector.load %arg7[%c0_38, %c76] : memref<16x96xbf16, #tpu.memory_space<vmem>>, vector<16x4xbf16>
    %80 = vector.shape_cast %79 : vector<16x4xbf16> to vector<2x8x4xbf16>
    "tpu.trace_start"() <{level = 10 : i32, message = "bnd,bmd->bnm"}> : () -> ()
    %cst_39 = arith.constant dense<0.000000e+00> : vector<2x8x8xf32>
    %81 = tpu.matmul %76, %78, %cst_39 {dimension_numbers = #tpu.dot_dimension_numbers<[2], [2], [1], [1], [0, 0, 0, 1, 1, 1], [0], [0]>} : vector<2x8x4xbf16>, vector<2x8x4xbf16>, vector<2x8x8xf32> -> vector<2x8x8xf32>
    "tpu.trace_stop"() : () -> ()
    %cst_40 = arith.constant dense<0xFF800000> : vector<2x8xf32>
    %82 = vector.multi_reduction <maximumf>, %81, %cst_40 [2] : vector<2x8x8xf32> to vector<2x8xf32>
    %83 = vector.shape_cast %82 : vector<2x8xf32> to vector<2x8x1xf32>
    %84 = vector.broadcast %83 : vector<2x8x1xf32> to vector<2x8x8xf32>
    %85 = arith.subf %81, %84 : vector<2x8x8xf32>
    %86 = math.exp %85 : vector<2x8x8xf32>
    %cst_41 = arith.constant dense<0.000000e+00> : vector<2x8xf32>
    %87 = vector.multi_reduction <add>, %86, %cst_41 [2] : vector<2x8x8xf32> to vector<2x8xf32>
    %88 = vector.shape_cast %87 : vector<2x8xf32> to vector<2x8x1xf32>
    %89 = tpu.reciprocal %88 {approx = true} : vector<2x8x1xf32> -> vector<2x8x1xf32>
    %90 = vector.broadcast %89 : vector<2x8x1xf32> to vector<2x8x8xf32>
    %91 = arith.mulf %86, %90 : vector<2x8x8xf32>
    %92 = arith.truncf %91 : vector<2x8x8xf32> to vector<2x8x8xbf16>
    "tpu.trace_start"() <{level = 10 : i32, message = "bnm,bmd->bnd"}> : () -> ()
    %cst_42 = arith.constant dense<0.000000e+00> : vector<2x8x4xf32>
    %93 = tpu.matmul %92, %80, %cst_42 {dimension_numbers = #tpu.dot_dimension_numbers<[2], [1], [1], [2], [0, 0, 0, 1, 1, 2], [0], [0]>} : vector<2x8x8xbf16>, vector<2x8x4xbf16>, vector<2x8x4xf32> -> vector<2x8x4xf32>
    "tpu.trace_stop"() : () -> ()
    %94 = vector.shape_cast %93 : vector<2x8x4xf32> to vector<16x4xf32>
    %95 = arith.truncf %94 : vector<16x4xf32> to vector<16x4xbf16>
    %c0_43 = arith.constant 0 : index
    %c12_44 = arith.constant 12 : index
    %96 = vector.load %arg8[%c0_43, %c12_44] : memref<16x32xbf16, #tpu.memory_space<vmem>>, vector<16x4xbf16>
    tpu.vector_store %arg8[%c0_43, %c12_44], %95 {strides = array<i32>} : memref<16x32xbf16, #tpu.memory_space<vmem>>, vector<16x4xbf16>,
    %c0_45 = arith.constant 0 : index
    %c16 = arith.constant 16 : index
    %97 = vector.load %arg7[%c0_45, %c16] : memref<16x96xbf16, #tpu.memory_space<vmem>>, vector<16x4xbf16>
    %98 = vector.shape_cast %97 : vector<16x4xbf16> to vector<2x8x4xbf16>
    %c0_46 = arith.constant 0 : index
    %c48 = arith.constant 48 : index
    %99 = vector.load %arg7[%c0_46, %c48] : memref<16x96xbf16, #tpu.memory_space<vmem>>, vector<16x4xbf16>
    %100 = vector.shape_cast %99 : vector<16x4xbf16> to vector<2x8x4xbf16>
    %c0_47 = arith.constant 0 : index
    %c80 = arith.constant 80 : index
    %101 = vector.load %arg7[%c0_47, %c80] : memref<16x96xbf16, #tpu.memory_space<vmem>>, vector<16x4xbf16>
    %102 = vector.shape_cast %101 : vector<16x4xbf16> to vector<2x8x4xbf16>
    "tpu.trace_start"() <{level = 10 : i32, message = "bnd,bmd->bnm"}> : () -> ()
    %cst_48 = arith.constant dense<0.000000e+00> : vector<2x8x8xf32>
    %103 = tpu.matmul %98, %100, %cst_48 {dimension_numbers = #tpu.dot_dimension_numbers<[2], [2], [1], [1], [0, 0, 0, 1, 1, 1], [0], [0]>} : vector<2x8x4xbf16>, vector<2x8x4xbf16>, vector<2x8x8xf32> -> vector<2x8x8xf32>
    "tpu.trace_stop"() : () -> ()
    %cst_49 = arith.constant dense<0xFF800000> : vector<2x8xf32>
    %104 = vector.multi_reduction <maximumf>, %103, %cst_49 [2] : vector<2x8x8xf32> to vector<2x8xf32>
    %105 = vector.shape_cast %104 : vector<2x8xf32> to vector<2x8x1xf32>
    %106 = vector.broadcast %105 : vector<2x8x1xf32> to vector<2x8x8xf32>
    %107 = arith.subf %103, %106 : vector<2x8x8xf32>
    %108 = math.exp %107 : vector<2x8x8xf32>
    %cst_50 = arith.constant dense<0.000000e+00> : vector<2x8xf32>
    %109 = vector.multi_reduction <add>, %108, %cst_50 [2] : vector<2x8x8xf32> to vector<2x8xf32>
    %110 = vector.shape_cast %109 : vector<2x8xf32> to vector<2x8x1xf32>
    %111 = tpu.reciprocal %110 {approx = true} : vector<2x8x1xf32> -> vector<2x8x1xf32>
    %112 = vector.broadcast %111 : vector<2x8x1xf32> to vector<2x8x8xf32>
    %113 = arith.mulf %108, %112 : vector<2x8x8xf32>
    %114 = arith.truncf %113 : vector<2x8x8xf32> to vector<2x8x8xbf16>
    "tpu.trace_start"() <{level = 10 : i32, message = "bnm,bmd->bnd"}> : () -> ()
    %cst_51 = arith.constant dense<0.000000e+00> : vector<2x8x4xf32>
    %115 = tpu.matmul %114, %102, %cst_51 {dimension_numbers = #tpu.dot_dimension_numbers<[2], [1], [1], [2], [0, 0, 0, 1, 1, 2], [0], [0]>} : vector<2x8x8xbf16>, vector<2x8x4xbf16>, vector<2x8x4xf32> -> vector<2x8x4xf32>
    "tpu.trace_stop"() : () -> ()
    %116 = vector.shape_cast %115 : vector<2x8x4xf32> to vector<16x4xf32>
    %117 = arith.truncf %116 : vector<16x4xf32> to vector<16x4xbf16>
    %c0_52 = arith.constant 0 : index
    %c16_53 = arith.constant 16 : index
    %118 = vector.load %arg8[%c0_52, %c16_53] : memref<16x32xbf16, #tpu.memory_space<vmem>>, vector<16x4xbf16>
    tpu.vector_store %arg8[%c0_52, %c16_53], %117 {strides = array<i32>} : memref<16x32xbf16, #tpu.memory_space<vmem>>, vector<16x4xbf16>,
    %c0_54 = arith.constant 0 : index
    %c20 = arith.constant 20 : index
    %119 = vector.load %arg7[%c0_54, %c20] : memref<16x96xbf16, #tpu.memory_space<vmem>>, vector<16x4xbf16>
    %120 = vector.shape_cast %119 : vector<16x4xbf16> to vector<2x8x4xbf16>
    %c0_55 = arith.constant 0 : index
    %c52 = arith.constant 52 : index
    %121 = vector.load %arg7[%c0_55, %c52] : memref<16x96xbf16, #tpu.memory_space<vmem>>, vector<16x4xbf16>
    %122 = vector.shape_cast %121 : vector<16x4xbf16> to vector<2x8x4xbf16>
    %c0_56 = arith.constant 0 : index
    %c84 = arith.constant 84 : index
    %123 = vector.load %arg7[%c0_56, %c84] : memref<16x96xbf16, #tpu.memory_space<vmem>>, vector<16x4xbf16>
    %124 = vector.shape_cast %123 : vector<16x4xbf16> to vector<2x8x4xbf16>
    "tpu.trace_start"() <{level = 10 : i32, message = "bnd,bmd->bnm"}> : () -> ()
    %cst_57 = arith.constant dense<0.000000e+00> : vector<2x8x8xf32>
    %125 = tpu.matmul %120, %122, %cst_57 {dimension_numbers = #tpu.dot_dimension_numbers<[2], [2], [1], [1], [0, 0, 0, 1, 1, 1], [0], [0]>} : vector<2x8x4xbf16>, vector<2x8x4xbf16>, vector<2x8x8xf32> -> vector<2x8x8xf32>
    "tpu.trace_stop"() : () -> ()
    %cst_58 = arith.constant dense<0xFF800000> : vector<2x8xf32>
    %126 = vector.multi_reduction <maximumf>, %125, %cst_58 [2] : vector<2x8x8xf32> to vector<2x8xf32>
    %127 = vector.shape_cast %126 : vector<2x8xf32> to vector<2x8x1xf32>
    %128 = vector.broadcast %127 : vector<2x8x1xf32> to vector<2x8x8xf32>
    %129 = arith.subf %125, %128 : vector<2x8x8xf32>
    %130 = math.exp %129 : vector<2x8x8xf32>
    %cst_59 = arith.constant dense<0.000000e+00> : vector<2x8xf32>
    %131 = vector.multi_reduction <add>, %130, %cst_59 [2] : vector<2x8x8xf32> to vector<2x8xf32>
    %132 = vector.shape_cast %131 : vector<2x8xf32> to vector<2x8x1xf32>
    %133 = tpu.reciprocal %132 {approx = true} : vector<2x8x1xf32> -> vector<2x8x1xf32>
    %134 = vector.broadcast %133 : vector<2x8x1xf32> to vector<2x8x8xf32>
    %135 = arith.mulf %130, %134 : vector<2x8x8xf32>
    %136 = arith.truncf %135 : vector<2x8x8xf32> to vector<2x8x8xbf16>
    "tpu.trace_start"() <{level = 10 : i32, message = "bnm,bmd->bnd"}> : () -> ()
    %cst_60 = arith.constant dense<0.000000e+00> : vector<2x8x4xf32>
    %137 = tpu.matmul %136, %124, %cst_60 {dimension_numbers = #tpu.dot_dimension_numbers<[2], [1], [1], [2], [0, 0, 0, 1, 1, 2], [0], [0]>} : vector<2x8x8xbf16>, vector<2x8x4xbf16>, vector<2x8x4xf32> -> vector<2x8x4xf32>
    "tpu.trace_stop"() : () -> ()
    %138 = vector.shape_cast %137 : vector<2x8x4xf32> to vector<16x4xf32>
    %139 = arith.truncf %138 : vector<16x4xf32> to vector<16x4xbf16>
    %c0_61 = arith.constant 0 : index
    %c20_62 = arith.constant 20 : index
    %140 = vector.load %arg8[%c0_61, %c20_62] : memref<16x32xbf16, #tpu.memory_space<vmem>>, vector<16x4xbf16>
    tpu.vector_store %arg8[%c0_61, %c20_62], %139 {strides = array<i32>} : memref<16x32xbf16, #tpu.memory_space<vmem>>, vector<16x4xbf16>,
    %c0_63 = arith.constant 0 : index
    %c24 = arith.constant 24 : index
    %141 = vector.load %arg7[%c0_63, %c24] : memref<16x96xbf16, #tpu.memory_space<vmem>>, vector<16x4xbf16>
    %142 = vector.shape_cast %141 : vector<16x4xbf16> to vector<2x8x4xbf16>
    %c0_64 = arith.constant 0 : index
    %c56 = arith.constant 56 : index
    %143 = vector.load %arg7[%c0_64, %c56] : memref<16x96xbf16, #tpu.memory_space<vmem>>, vector<16x4xbf16>
    %144 = vector.shape_cast %143 : vector<16x4xbf16> to vector<2x8x4xbf16>
    %c0_65 = arith.constant 0 : index
    %c88 = arith.constant 88 : index
    %145 = vector.load %arg7[%c0_65, %c88] : memref<16x96xbf16, #tpu.memory_space<vmem>>, vector<16x4xbf16>
    %146 = vector.shape_cast %145 : vector<16x4xbf16> to vector<2x8x4xbf16>
    "tpu.trace_start"() <{level = 10 : i32, message = "bnd,bmd->bnm"}> : () -> ()
    %cst_66 = arith.constant dense<0.000000e+00> : vector<2x8x8xf32>
    %147 = tpu.matmul %142, %144, %cst_66 {dimension_numbers = #tpu.dot_dimension_numbers<[2], [2], [1], [1], [0, 0, 0, 1, 1, 1], [0], [0]>} : vector<2x8x4xbf16>, vector<2x8x4xbf16>, vector<2x8x8xf32> -> vector<2x8x8xf32>
    "tpu.trace_stop"() : () -> ()
    %cst_67 = arith.constant dense<0xFF800000> : vector<2x8xf32>
    %148 = vector.multi_reduction <maximumf>, %147, %cst_67 [2] : vector<2x8x8xf32> to vector<2x8xf32>
    %149 = vector.shape_cast %148 : vector<2x8xf32> to vector<2x8x1xf32>
    %150 = vector.broadcast %149 : vector<2x8x1xf32> to vector<2x8x8xf32>
    %151 = arith.subf %147, %150 : vector<2x8x8xf32>
    %152 = math.exp %151 : vector<2x8x8xf32>
    %cst_68 = arith.constant dense<0.000000e+00> : vector<2x8xf32>
    %153 = vector.multi_reduction <add>, %152, %cst_68 [2] : vector<2x8x8xf32> to vector<2x8xf32>
    %154 = vector.shape_cast %153 : vector<2x8xf32> to vector<2x8x1xf32>
    %155 = tpu.reciprocal %154 {approx = true} : vector<2x8x1xf32> -> vector<2x8x1xf32>
    %156 = vector.broadcast %155 : vector<2x8x1xf32> to vector<2x8x8xf32>
    %157 = arith.mulf %152, %156 : vector<2x8x8xf32>
    %158 = arith.truncf %157 : vector<2x8x8xf32> to vector<2x8x8xbf16>
    "tpu.trace_start"() <{level = 10 : i32, message = "bnm,bmd->bnd"}> : () -> ()
    %cst_69 = arith.constant dense<0.000000e+00> : vector<2x8x4xf32>
    %159 = tpu.matmul %158, %146, %cst_69 {dimension_numbers = #tpu.dot_dimension_numbers<[2], [1], [1], [2], [0, 0, 0, 1, 1, 2], [0], [0]>} : vector<2x8x8xbf16>, vector<2x8x4xbf16>, vector<2x8x4xf32> -> vector<2x8x4xf32>
    "tpu.trace_stop"() : () -> ()
    %160 = vector.shape_cast %159 : vector<2x8x4xf32> to vector<16x4xf32>
    %161 = arith.truncf %160 : vector<16x4xf32> to vector<16x4xbf16>
    %c0_70 = arith.constant 0 : index
    %c24_71 = arith.constant 24 : index
    %162 = vector.load %arg8[%c0_70, %c24_71] : memref<16x32xbf16, #tpu.memory_space<vmem>>, vector<16x4xbf16>
    tpu.vector_store %arg8[%c0_70, %c24_71], %161 {strides = array<i32>} : memref<16x32xbf16, #tpu.memory_space<vmem>>, vector<16x4xbf16>,
    %c0_72 = arith.constant 0 : index
    %c28 = arith.constant 28 : index
    %163 = vector.load %arg7[%c0_72, %c28] : memref<16x96xbf16, #tpu.memory_space<vmem>>, vector<16x4xbf16>
    %164 = vector.shape_cast %163 : vector<16x4xbf16> to vector<2x8x4xbf16>
    %c0_73 = arith.constant 0 : index
    %c60 = arith.constant 60 : index
    %165 = vector.load %arg7[%c0_73, %c60] : memref<16x96xbf16, #tpu.memory_space<vmem>>, vector<16x4xbf16>
    %166 = vector.shape_cast %165 : vector<16x4xbf16> to vector<2x8x4xbf16>
    %c0_74 = arith.constant 0 : index
    %c92 = arith.constant 92 : index
    %167 = vector.load %arg7[%c0_74, %c92] : memref<16x96xbf16, #tpu.memory_space<vmem>>, vector<16x4xbf16>
    %168 = vector.shape_cast %167 : vector<16x4xbf16> to vector<2x8x4xbf16>
    "tpu.trace_start"() <{level = 10 : i32, message = "bnd,bmd->bnm"}> : () -> ()
    %cst_75 = arith.constant dense<0.000000e+00> : vector<2x8x8xf32>
    %169 = tpu.matmul %164, %166, %cst_75 {dimension_numbers = #tpu.dot_dimension_numbers<[2], [2], [1], [1], [0, 0, 0, 1, 1, 1], [0], [0]>} : vector<2x8x4xbf16>, vector<2x8x4xbf16>, vector<2x8x8xf32> -> vector<2x8x8xf32>
    "tpu.trace_stop"() : () -> ()
    %cst_76 = arith.constant dense<0xFF800000> : vector<2x8xf32>
    %170 = vector.multi_reduction <maximumf>, %169, %cst_76 [2] : vector<2x8x8xf32> to vector<2x8xf32>
    %171 = vector.shape_cast %170 : vector<2x8xf32> to vector<2x8x1xf32>
    %172 = vector.broadcast %171 : vector<2x8x1xf32> to vector<2x8x8xf32>
    %173 = arith.subf %169, %172 : vector<2x8x8xf32>
    %174 = math.exp %173 : vector<2x8x8xf32>
    %cst_77 = arith.constant dense<0.000000e+00> : vector<2x8xf32>
    %175 = vector.multi_reduction <add>, %174, %cst_77 [2] : vector<2x8x8xf32> to vector<2x8xf32>
    %176 = vector.shape_cast %175 : vector<2x8xf32> to vector<2x8x1xf32>
    %177 = tpu.reciprocal %176 {approx = true} : vector<2x8x1xf32> -> vector<2x8x1xf32>
    %178 = vector.broadcast %177 : vector<2x8x1xf32> to vector<2x8x8xf32>
    %179 = arith.mulf %174, %178 : vector<2x8x8xf32>
    %180 = arith.truncf %179 : vector<2x8x8xf32> to vector<2x8x8xbf16>
    "tpu.trace_start"() <{level = 10 : i32, message = "bnm,bmd->bnd"}> : () -> ()
    %cst_78 = arith.constant dense<0.000000e+00> : vector<2x8x4xf32>
    %181 = tpu.matmul %180, %168, %cst_78 {dimension_numbers = #tpu.dot_dimension_numbers<[2], [1], [1], [2], [0, 0, 0, 1, 1, 2], [0], [0]>} : vector<2x8x8xbf16>, vector<2x8x4xbf16>, vector<2x8x4xf32> -> vector<2x8x4xf32>
    "tpu.trace_stop"() : () -> ()
    %182 = vector.shape_cast %181 : vector<2x8x4xf32> to vector<16x4xf32>
    %183 = arith.truncf %182 : vector<16x4xf32> to vector<16x4xbf16>
    %c0_79 = arith.constant 0 : index
    %c28_80 = arith.constant 28 : index
    %184 = vector.load %arg8[%c0_79, %c28_80] : memref<16x32xbf16, #tpu.memory_space<vmem>>, vector<16x4xbf16>
    tpu.vector_store %arg8[%c0_79, %c28_80], %183 {strides = array<i32>} : memref<16x32xbf16, #tpu.memory_space<vmem>>, vector<16x4xbf16>,
    %c0_81 = arith.constant 0 : index
    %c0_82 = arith.constant 0 : index
    %185 = vector.load %arg8[%c0_81, %c0_82] : memref<16x32xbf16, #tpu.memory_space<vmem>>, vector<16x32xbf16>
    %c0_83 = arith.constant 0 : index
    %c0_84 = arith.constant 0 : index
    %186 = vector.load %arg4[%c0_83, %c0_84] : memref<32x32xbf16, #tpu.memory_space<vmem>>, vector<32x32xbf16>
    %cst_85 = arith.constant dense<0.000000e+00> : vector<16x32xf32>
    %187 = tpu.matmul %185, %186, %cst_85 {dimension_numbers = #tpu.dot_dimension_numbers<[1], [0], [0], [1], [0, 0, 1, 1], [], []>} : vector<16x32xbf16>, vector<32x32xbf16>, vector<16x32xf32> -> vector<16x32xf32>
    %c0_86 = arith.constant 0 : index
    %c0_87 = arith.constant 0 : index
    %188 = vector.load %arg5[%c0_86, %c0_87] : memref<1x32xf32, #tpu.memory_space<vmem>>, vector<1x32xf32>
    %189 = vector.broadcast %188 : vector<1x32xf32> to vector<16x32xf32>
    %190 = arith.addf %187, %189 : vector<16x32xf32>
    %191 = vector.shape_cast %190 : vector<16x32xf32> to vector<2x8x32xf32>
    %c0_88 = arith.constant 0 : index
    %c0_89 = arith.constant 0 : index
    %c0_90 = arith.constant 0 : index
    %192 = vector.load %arg6[%c0_88, %c0_89, %c0_90] : memref<2x8x32xf32, #tpu.memory_space<vmem>>, vector<2x8x32xf32>
    tpu.vector_store %arg6[%c0_88, %c0_89, %c0_90], %191 {strides = array<i32>} : memref<2x8x32xf32, #tpu.memory_space<vmem>>, vector<2x8x32xf32>,
    return
  }
  func.func @transform_0(%arg0: i32) -> (i32, i32, i32) {
    %c0_i32 = arith.constant 0 : i32
    %c0_i32_0 = arith.constant 0 : i32
    %c0_i32_1 = arith.constant 0 : i32
    return %arg0, %c0_i32, %c0_i32_0 : i32, i32, i32
  }
  func.func @transform_1(%arg0: i32) -> (i32, i32) {
    %c0_i32 = arith.constant 0 : i32
    %c0_i32_0 = arith.constant 0 : i32
    %c0_i32_1 = arith.constant 0 : i32
    return %c0_i32, %c0_i32_0 : i32, i32
  }
  func.func @transform_2(%arg0: i32) -> (i32, i32) {
    %c0_i32 = arith.constant 0 : i32
    %c0_i32_0 = arith.constant 0 : i32
    %c0_i32_1 = arith.constant 0 : i32
    return %c0_i32, %c0_i32_0 : i32, i32
  }
  func.func @transform_3(%arg0: i32) -> (i32, i32) {
    %c0_i32 = arith.constant 0 : i32
    %c0_i32_0 = arith.constant 0 : i32
    %c0_i32_1 = arith.constant 0 : i32
    return %c0_i32, %c0_i32_0 : i32, i32
  }
  func.func @transform_4(%arg0: i32) -> (i32, i32) {
    %c0_i32 = arith.constant 0 : i32
    %c0_i32_0 = arith.constant 0 : i32
    %c0_i32_1 = arith.constant 0 : i32
    return %c0_i32, %c0_i32_0 : i32, i32
  }
  func.func @transform_5(%arg0: i32) -> (i32, i32, i32) {
    %c0_i32 = arith.constant 0 : i32
    %c0_i32_0 = arith.constant 0 : i32
    %c0_i32_1 = arith.constant 0 : i32
    return %arg0, %c0_i32, %c0_i32_0 : i32, i32, i32
  }
}

</mosaic_0001>

<llo_original>
// kernel: tpu_custom_call.1
$region0: #{tpu_custom_call.1}
  #allocation0 [shape = 'u32[]', space=smem, size = 0x4, offset = 0x4, fixed_abs, tag = 'smem constant byte address 0x4 - core index']
  #allocation1 [shape = 'u32[144,128]{1,0:T(1,128)}', space=vmem, size = 0x12000, scoped, tag = 'internal scratch']
  #allocation2 [shape = 'bf16[16,96]{1,0:T(16,128)(2,1)}', space=vmem, size = 0x1000, scoped, tag = 'scratch operand']
  #allocation3 [shape = 'bf16[16,32]{1,0:T(16,128)(2,1)}', space=vmem, size = 0x1000, scoped, tag = 'scratch operand']
  %s0 = inlined_call_operand.hbm [shape: bf16[2,8,32], index: 0, kind: input, shape index: {}]
  %s1 = inlined_call_operand.hbm [shape: bf16[32,96], index: 1, kind: input, shape index: {}]
  %s2 = inlined_call_operand.vmem [shape: f32[1,96], index: 2, kind: input, shape index: {}]
  %s3 = inlined_call_operand.hbm [shape: bf16[32,32], index: 3, kind: input, shape index: {}]
  %s4 = inlined_call_operand.vmem [shape: f32[1,32], index: 4, kind: input, shape index: {}]
  %s5 = inlined_call_operand.hbm [shape: f32[2,8,32], index: 5, kind: output, shape index: {}]
  %s6 = sld [smem:[#allocation0]]
  $region42: #{tpu_custom_call.1} parent=0
    _
  %s8 = ssub.s32 1, %s6
  %s9 = scalar_select 0, %s8, %s6
  $region1: #{tpu_custom_call.1} parent=0
    #allocation4 [shape = 'u8[4096]{0}', space=vmem, size = 0x1000, scoped, tag = 'input window, operand 0, single buffered']
    #allocation5 [shape = 's32[1]{0}', space=sflag, size = 0x4, scoped, tag = 'scoped memory for tpu_custom_call.1']
    #allocation6 [shape = 's32[1]{0}', space=sflag, size = 0x4, scoped, tag = 'scoped memory for tpu_custom_call.1']
    #allocation7 [shape = 'u8[8192]{0}', space=vmem, size = 0x2000, scoped, tag = 'input window, operand 1, single buffered']
    #allocation8 [shape = 's32[1]{0}', space=sflag, size = 0x4, scoped, tag = 'scoped memory for tpu_custom_call.1']
    #allocation9 [shape = 'u8[8192]{0}', space=vmem, size = 0x2000, scoped, tag = 'input window, operand 3, single buffered']
    #allocation10 [shape = 'u8[8192]{0}', space=vmem, size = 0x2000, scoped, tag = 'output window, operand 0, single buffered']
    %10 = vsyncpa [#allocation5], 0
    %11 = vsyncpa [#allocation8], 0
    %12 = vsyncpa [#allocation6], 0
    // Predicated region
    $region2: #{tpu_custom_call.1} parent=1 // pred_check
      _
    $region3: #{tpu_custom_call.1} parent=1 // pred_check_branch
      %14 = sbr.rel (0) target = $region5
    $region4: #{tpu_custom_call.1} parent=1 // pred_region
      %s16 = ssub.s32 128, 128
      %17 = vsyncadd [#allocation5], %s16
      %s18 = sshll.u32 [#allocation4], 4
      %s19 = int_to_ptr.vmem [resolvable:$true] %s18
      %24 = dma.hbm_to_vmem [thread:$0]  %s0, 128, %s19, [#allocation5], 64, 64, 4
    $region5: #{tpu_custom_call.1} parent=1 // pred_fallthru
      _
    // Predicated region
    $region6: #{tpu_custom_call.1} parent=1 // pred_check
      _
    $region7: #{tpu_custom_call.1} parent=1 // pred_check_branch
      %26 = sbr.rel (0) target = $region9
    $region8: #{tpu_custom_call.1} parent=1 // pred_region
      %s28 = ssub.s32 256, 256
      %29 = vsyncadd [#allocation8], %s28
      %s30 = sshll.u32 [#allocation7], 4
      %s31 = int_to_ptr.vmem [resolvable:$true] %s30
      %36 = dma.hbm_to_vmem [thread:$0]  %s1, 256, %s31, [#allocation8], 64, 64, 4
    $region9: #{tpu_custom_call.1} parent=1 // pred_fallthru
      _
    // Predicated region
    $region10: #{tpu_custom_call.1} parent=1 // pred_check
      _
    $region11: #{tpu_custom_call.1} parent=1 // pred_check_branch
      %38 = sbr.rel (0) target = $region13
    $region12: #{tpu_custom_call.1} parent=1 // pred_region
      _
    $region13: #{tpu_custom_call.1} parent=1 // pred_fallthru
      _
    // Predicated region
    $region14: #{tpu_custom_call.1} parent=1 // pred_check
      _
    $region15: #{tpu_custom_call.1} parent=1 // pred_check_branch
      %40 = sbr.rel (0) target = $region17
    $region16: #{tpu_custom_call.1} parent=1 // pred_region
      %s42 = ssub.s32 256, 256
      %43 = vsyncadd [#allocation8], %s42
      %s44 = sshll.u32 [#allocation9], 4
      %s45 = int_to_ptr.vmem [resolvable:$true] %s44
      %50 = dma.hbm_to_vmem [thread:$0]  %s3, 256, %s45, [#allocation8], 64, 64, 4
    $region17: #{tpu_custom_call.1} parent=1 // pred_fallthru
      _
    // Predicated region
    $region18: #{tpu_custom_call.1} parent=1 // pred_check
      _
    $region19: #{tpu_custom_call.1} parent=1 // pred_check_branch
      %52 = sbr.rel (0) target = $region21
    $region20: #{tpu_custom_call.1} parent=1 // pred_region
      _
    $region21: #{tpu_custom_call.1} parent=1 // pred_fallthru
      _
    // Predicated region
    $region22: #{tpu_custom_call.1} parent=1 // pred_check
      _
    $region23: #{tpu_custom_call.1} parent=1 // pred_check_branch
      %54 = sbr.rel (0) target = $region25
    $region24: #{tpu_custom_call.1} parent=1 // pred_region
      %55 = dma.done [#allocation5], 128
    $region25: #{tpu_custom_call.1} parent=1 // pred_fallthru
      _
    // Predicated region
    $region26: #{tpu_custom_call.1} parent=1 // pred_check
      _
    $region27: #{tpu_custom_call.1} parent=1 // pred_check_branch
      %57 = sbr.rel (0) target = $region29
    $region28: #{tpu_custom_call.1} parent=1 // pred_region
      %58 = dma.done [#allocation8], 256
    $region29: #{tpu_custom_call.1} parent=1 // pred_fallthru
      _
    // Predicated region
    $region30: #{tpu_custom_call.1} parent=1 // pred_check
      _
    $region31: #{tpu_custom_call.1} parent=1 // pred_check_branch
      %60 = sbr.rel (0) target = $region33
    $region32: #{tpu_custom_call.1} parent=1 // pred_region
      %61 = dma.done [#allocation8], 256
    $region33: #{tpu_custom_call.1} parent=1 // pred_fallthru
      _
    %v63 = vld [vmem:[#allocation4] sm:$0xf]
    %v64 = vld [vmem:[#allocation4 + $0x4] sm:$0xf]
    %v65 = vld [vmem:[#allocation7] sm:$0xf]
    %v66 = vld [vmem:[#allocation7 + $0x4] sm:$0xf]
    %v67 = vld [vmem:[#allocation7 + $0x8] sm:$0xf]
    %v68 = vld [vmem:[#allocation7 + $0xc] sm:$0xf]
    %v69 = vld [vmem:[%s2] sm:$0x1]
    %v71 = vlaneseq
    %v72 = vshrl.u32 %v71, 7
    %v73 = vsub.s32 0, %v72
    %v74 = vrot.slane %v69, %v73
    %v78 = vunpack.c.l.b16 %v63
    %v79 = vunpack.c.l.b16 %v64
    %v80 = vpack.c.b16 %v79, %v78
    %v85 = vunpack.c.l.b16 %v65
    %v86 = vunpack.c.l.b16 %v66
    %v87 = vunpack.c.l.b16 %v67
    %v88 = vunpack.c.l.b16 %v68
    %v89 = vpack.c.b16 %v86, %v85
    %v90 = vpack.c.b16 %v88, %v87
    %vm93 = vcmask 261120
    %v95 = vsel %vm93, %v80, 0
    %97 = vmatprep.subr.bf16.mxu0 0
    %98 = vmatpush1.bf16.msra.mxu0 %v89
    %99 = vmatprep.subr.bf16.mxu0 0
    %100 = vmatpush1.bf16.msra.mxu0 %v90
    %101 = vmatprep.subr.bf16.mxu0 0
    %102 = vmatpush1.bf16.msra.mxu0 0
    %103 = vmatprep.subr.bf16.mxu0 0
    %104 = vmatpush1.bf16.msra.mxu0 0
    %105 = vmatprep.subr.bf16.mxu0 0
    %106 = vmatpush1.bf16.msra.mxu0 0
    %107 = vmatprep.subr.bf16.mxu0 0
    %108 = vmatpush1.bf16.msra.mxu0 0
    %109 = vmatprep.subr.bf16.mxu0 0
    %110 = vmatpush1.bf16.msra.mxu0 0
    %111 = vmatprep.subr.bf16.mxu0 0
    %112 = vmatpush1.bf16.msra.mxu0 0
    %113 = vmatprep.subr.bf16.mxu0 0
    %114 = vmatpush1.bf16.msra.mxu0 0
    %115 = vmatprep.subr.bf16.mxu0 0
    %116 = vmatpush1.bf16.msra.mxu0 0
    %117 = vmatprep.subr.bf16.mxu0 0
    %118 = vmatpush1.bf16.msra.mxu0 0
    %119 = vmatprep.subr.bf16.mxu0 0
    %120 = vmatpush1.bf16.msra.mxu0 0
    %121 = vmatprep.subr.bf16.mxu0 0
    %122 = vmatpush1.bf16.msra.mxu0 0
    %123 = vmatprep.subr.bf16.mxu0 0
    %124 = vmatpush1.bf16.msra.mxu0 0
    %125 = vmatprep.subr.bf16.mxu0 0
    %126 = vmatpush1.bf16.msra.mxu0 0
    %127 = vmatprep.subr.bf16.mxu0 0
    %128 = vmatpush1.bf16.msra.mxu0 0
    %129 = vmatprep.mubr.bf16.mxu0 0
    %130 = vmatmul.mubr.bf16.gmra.mrb[0].mxu0 %v95
    %v131 = vpop.f32.mrb[0].mxu0
    %v132 = vadd.f32 %v74, %v131
    %v133 = vpop.f32.mrb[0].mxu0
    %v134 = vpop.f32.mrb[0].mxu0
    %v135 = vadd.f32 %v74, %v134
    %v136 = vpop.f32.mrb[0].mxu0
    %137 = vdwg.mxu0
    %v138 = vpack.c.bf16 %v135, %v132
    %vm139 = vcmask 785408
    %140 = vst.msk [vmem:[#allocation2] sm:$0xff] %vm139, %v138
    %v141 = vld [vmem:[#allocation2] sm:$0xff]
    %v143 = vunpack.c.l.b16 %v141
    %v144 = vunpack.c.h.b16 %v141
    %v145 = vpack.c.b16 %v143, %v143
    %v146 = vpack.c.b16 %v144, %v144
    %147 = vrot.lane.b32.xlu0 %v145, 96
    %v148 = vpop.permute.xlu0 %147
    %vm149 = vcmask 31744
    %v151 = vsel %vm149, %v145, 0
    %v154 = vsel %vm149, %v148, 0
    %156 = vmatprep.subr.bf16.mxu0 0
    %157 = vmatpush1.bf16.xpose.msra.mxu0 %v154
    %158 = vmatprep.subr.bf16.mxu0 0
    %159 = vmatpush1.bf16.xpose.msra.mxu0 0
    %160 = vmatprep.subr.bf16.mxu0 0
    %161 = vmatpush1.bf16.xpose.msra.mxu0 0
    %162 = vmatprep.subr.bf16.mxu0 0
    %163 = vmatpush1.bf16.xpose.msra.mxu0 0
    %164 = vmatprep.subr.bf16.mxu0 0
    %165 = vmatpush1.bf16.xpose.msra.mxu0 0
    %166 = vmatprep.subr.bf16.mxu0 0
    %167 = vmatpush1.bf16.xpose.msra.mxu0 0
    %168 = vmatprep.subr.bf16.mxu0 0
    %169 = vmatpush1.bf16.xpose.msra.mxu0 0
    %170 = vmatprep.subr.bf16.mxu0 0
    %171 = vmatpush1.bf16.xpose.msra.mxu0 0
    %172 = vmatprep.subr.bf16.mxu0 0
    %173 = vmatpush1.bf16.xpose.msra.mxu0 0
    %174 = vmatprep.subr.bf16.mxu0 0
    %175 = vmatpush1.bf16.xpose.msra.mxu0 0
    %176 = vmatprep.subr.bf16.mxu0 0
    %177 = vmatpush1.bf16.xpose.msra.mxu0 0
    %178 = vmatprep.subr.bf16.mxu0 0
    %179 = vmatpush1.bf16.xpose.msra.mxu0 0
    %180 = vmatprep.subr.bf16.mxu0 0
    %181 = vmatpush1.bf16.xpose.msra.mxu0 0
    %182 = vmatprep.subr.bf16.mxu0 0
    %183 = vmatpush1.bf16.xpose.msra.mxu0 0
    %184 = vmatprep.subr.bf16.mxu0 0
    %185 = vmatpush1.bf16.xpose.msra.mxu0 0
    %186 = vmatprep.subr.bf16.mxu0 0
    %187 = vmatpush1.bf16.xpose.msra.mxu0 0
    %188 = vmatprep.mubr.bf16.mxu0 0
    %189 = vmatmul.mubr.bf16.gmra.mrb[0].mxu0 %v151
    %v190 = vpop.f32.mrb[0].mxu0
    %v191 = vadd.f32 0.0, %v190
    %v192 = vpop.f32.mrb[0].mxu0
    %v193 = vpop.f32.mrb[0].mxu0
    %v194 = vpop.f32.mrb[0].mxu0
    %195 = vdwg.mxu0
    %196 = vrot.lane.b32.xlu0 %v146, 96
    %v197 = vpop.permute.xlu0 %196
    %v199 = vsel %vm149, %v146, 0
    %v202 = vsel %vm149, %v197, 0
    %204 = vmatprep.subr.bf16.mxu0 0
    %205 = vmatpush1.bf16.xpose.msra.mxu0 %v202
    %206 = vmatprep.subr.bf16.mxu0 0
    %207 = vmatpush1.bf16.xpose.msra.mxu0 0
    %208 = vmatprep.subr.bf16.mxu0 0
    %209 = vmatpush1.bf16.xpose.msra.mxu0 0
    %210 = vmatprep.subr.bf16.mxu0 0
    %211 = vmatpush1.bf16.xpose.msra.mxu0 0
    %212 = vmatprep.subr.bf16.mxu0 0
    %213 = vmatpush1.bf16.xpose.msra.mxu0 0
    %214 = vmatprep.subr.bf16.mxu0 0
    %215 = vmatpush1.bf16.xpose.msra.mxu0 0
    %216 = vmatprep.subr.bf16.mxu0 0
    %217 = vmatpush1.bf16.xpose.msra.mxu0 0
    %218 = vmatprep.subr.bf16.mxu0 0
    %219 = vmatpush1.bf16.xpose.msra.mxu0 0
    %220 = vmatprep.subr.bf16.mxu0 0
    %221 = vmatpush1.bf16.xpose.msra.mxu0 0
    %222 = vmatprep.subr.bf16.mxu0 0
    %223 = vmatpush1.bf16.xpose.msra.mxu0 0
    %224 = vmatprep.subr.bf16.mxu0 0
    %225 = vmatpush1.bf16.xpose.msra.mxu0 0
    %226 = vmatprep.subr.bf16.mxu0 0
    %227 = vmatpush1.bf16.xpose.msra.mxu0 0
    %228 = vmatprep.subr.bf16.mxu0 0
    %229 = vmatpush1.bf16.xpose.msra.mxu0 0
    %230 = vmatprep.subr.bf16.mxu0 0
    %231 = vmatpush1.bf16.xpose.msra.mxu0 0
    %232 = vmatprep.subr.bf16.mxu0 0
    %233 = vmatpush1.bf16.xpose.msra.mxu0 0
    %234 = vmatprep.subr.bf16.mxu0 0
    %235 = vmatpush1.bf16.xpose.msra.mxu0 0
    %236 = vmatprep.mubr.bf16.mxu0 0
    %237 = vmatmul.mubr.bf16.gmra.mrb[0].mxu0 %v199
    %v238 = vpop.f32.mrb[0].mxu0
    %v239 = vadd.f32 0.0, %v238
    %v240 = vpop.f32.mrb[0].mxu0
    %v241 = vpop.f32.mrb[0].mxu0
    %v242 = vpop.f32.mrb[0].mxu0
    %243 = vdwg.mxu0
    %vm244 = vcmask 64512
    %v245 = vsel %vm244, %v191, -inf
    %246 = vmax.xlane.f32.xlu0 %v245
    %v247 = vpop.xlane.xlu0 %246
    %v248 = vsel %vm244, %v239, -inf
    %249 = vmax.xlane.f32.xlu0 %v248
    %v250 = vpop.xlane.xlu0 %249
    %v251 = vsub.f32 %v191, %v247
    %v252 = vsub.f32 %v239, %v250
    %v253 = vmul.f32 %v251, 1.442695
    %v254 = vpow.pop %v253
    %v255 = vmul.f32 %v252, 1.442695
    %v256 = vpow.pop %v255
    %v257 = vsel %vm244, %v254, 0.0
    %258 = vadd.xlane.f32.xlu0 %v257
    %v259 = vpop.xlane.xlu0 %258
    %v260 = vsel %vm244, %v256, 0.0
    %261 = vadd.xlane.f32.xlu0 %v260
    %v262 = vpop.xlane.xlu0 %261
    %v263 = vrcp.pop %v259
    %v264 = vrcp.pop %v262
    %v265 = vmul.f32 %v254, %v263
    %v266 = vmul.f32 %v256, %v264
    %v267 = vpack.c.bf16 %v265, %v265
    %v268 = vpack.c.bf16 %v266, %v266
    %269 = vrot.lane.b32.xlu0 %v145, 64
    %v270 = vpop.permute.xlu0 %269
    %v272 = vsel %vm244, %v267, 0
    %vm274 = vcmask 1043456
    %v276 = vsel %vm274, %v270, 0
    %278 = vmatprep.subr.bf16.mxu0 0
    %279 = vmatpush1.bf16.msra.mxu0 %v276
    %280 = vmatprep.subr.bf16.mxu0 0
    %281 = vmatpush1.bf16.msra.mxu0 0
    %282 = vmatprep.subr.bf16.mxu0 0
    %283 = vmatpush1.bf16.msra.mxu0 0
    %284 = vmatprep.subr.bf16.mxu0 0
    %285 = vmatpush1.bf16.msra.mxu0 0
    %286 = vmatprep.subr.bf16.mxu0 0
    %287 = vmatpush1.bf16.msra.mxu0 0
    %288 = vmatprep.subr.bf16.mxu0 0
    %289 = vmatpush1.bf16.msra.mxu0 0
    %290 = vmatprep.subr.bf16.mxu0 0
    %291 = vmatpush1.bf16.msra.mxu0 0
    %292 = vmatprep.subr.bf16.mxu0 0
    %293 = vmatpush1.bf16.msra.mxu0 0
    %294 = vmatprep.subr.bf16.mxu0 0
    %295 = vmatpush1.bf16.msra.mxu0 0
    %296 = vmatprep.subr.bf16.mxu0 0
    %297 = vmatpush1.bf16.msra.mxu0 0
    %298 = vmatprep.subr.bf16.mxu0 0
    %299 = vmatpush1.bf16.msra.mxu0 0
    %300 = vmatprep.subr.bf16.mxu0 0
    %301 = vmatpush1.bf16.msra.mxu0 0
    %302 = vmatprep.subr.bf16.mxu0 0
    %303 = vmatpush1.bf16.msra.mxu0 0
    %304 = vmatprep.subr.bf16.mxu0 0
    %305 = vmatpush1.bf16.msra.mxu0 0
    %306 = vmatprep.subr.bf16.mxu0 0
    %307 = vmatpush1.bf16.msra.mxu0 0
    %308 = vmatprep.subr.bf16.mxu0 0
    %309 = vmatpush1.bf16.msra.mxu0 0
    %310 = vmatprep.mubr.bf16.mxu0 0
    %311 = vmatmul.mubr.bf16.gmra.mrb[0].mxu0 %v272
    %v312 = vpop.f32.mrb[0].mxu0
    %v313 = vadd.f32 0.0, %v312
    %v314 = vpop.f32.mrb[0].mxu0
    %v315 = vpop.f32.mrb[0].mxu0
    %v316 = vpop.f32.mrb[0].mxu0
    %317 = vdwg.mxu0
    %318 = vrot.lane.b32.xlu0 %v146, 64
    %v319 = vpop.permute.xlu0 %318
    %v321 = vsel %vm244, %v268, 0
    %v324 = vsel %vm274, %v319, 0
    %326 = vmatprep.subr.bf16.mxu0 0
    %327 = vmatpush1.bf16.msra.mxu0 %v324
    %328 = vmatprep.subr.bf16.mxu0 0
    %329 = vmatpush1.bf16.msra.mxu0 0
    %330 = vmatprep.subr.bf16.mxu0 0
    %331 = vmatpush1.bf16.msra.mxu0 0
    %332 = vmatprep.subr.bf16.mxu0 0
    %333 = vmatpush1.bf16.msra.mxu0 0
    %334 = vmatprep.subr.bf16.mxu0 0
    %335 = vmatpush1.bf16.msra.mxu0 0
    %336 = vmatprep.subr.bf16.mxu0 0
    %337 = vmatpush1.bf16.msra.mxu0 0
    %338 = vmatprep.subr.bf16.mxu0 0
    %339 = vmatpush1.bf16.msra.mxu0 0
    %340 = vmatprep.subr.bf16.mxu0 0
    %341 = vmatpush1.bf16.msra.mxu0 0
    %342 = vmatprep.subr.bf16.mxu0 0
    %343 = vmatpush1.bf16.msra.mxu0 0
    %344 = vmatprep.subr.bf16.mxu0 0
    %345 = vmatpush1.bf16.msra.mxu0 0
    %346 = vmatprep.subr.bf16.mxu0 0
    %347 = vmatpush1.bf16.msra.mxu0 0
    %348 = vmatprep.subr.bf16.mxu0 0
    %349 = vmatpush1.bf16.msra.mxu0 0
    %350 = vmatprep.subr.bf16.mxu0 0
    %351 = vmatpush1.bf16.msra.mxu0 0
    %352 = vmatprep.subr.bf16.mxu0 0
    %353 = vmatpush1.bf16.msra.mxu0 0
    %354 = vmatprep.subr.bf16.mxu0 0
    %355 = vmatpush1.bf16.msra.mxu0 0
    %356 = vmatprep.subr.bf16.mxu0 0
    %357 = vmatpush1.bf16.msra.mxu0 0
    %358 = vmatprep.mubr.bf16.mxu0 0
    %359 = vmatmul.mubr.bf16.gmra.mrb[0].mxu0 %v321
    %v360 = vpop.f32.mrb[0].mxu0
    %v361 = vadd.f32 0.0, %v360
    %v362 = vpop.f32.mrb[0].mxu0
    %v363 = vpop.f32.mrb[0].mxu0
    %v364 = vpop.f32.mrb[0].mxu0
    %365 = vdwg.mxu0
    %v366 = vpack.c.bf16 %v361, %v313
    %367 = vst.msk [vmem:[#allocation3] sm:$0xff] %vm149, %v366
    %v368 = vld [vmem:[#allocation2] sm:$0xff]
    %v370 = vunpack.c.l.b16 %v368
    %v371 = vunpack.c.h.b16 %v368
    %v372 = vpack.c.b16 %v370, %v370
    %373 = vrot.lane.b32.xlu0 %v372, 124
    %v374 = vpop.permute.xlu0 %373
    %375 = vrot.lane.b32.xlu0 %v372, 92
    %v376 = vpop.permute.xlu0 %375
    %v378 = vsel %vm149, %v374, 0
    %v381 = vsel %vm149, %v376, 0
    %383 = vmatprep.subr.bf16.mxu0 0
    %384 = vmatpush1.bf16.xpose.msra.mxu0 %v381
    %385 = vmatprep.subr.bf16.mxu0 0
    %386 = vmatpush1.bf16.xpose.msra.mxu0 0
    %387 = vmatprep.subr.bf16.mxu0 0
    %388 = vmatpush1.bf16.xpose.msra.mxu0 0
    %389 = vmatprep.subr.bf16.mxu0 0
    %390 = vmatpush1.bf16.xpose.msra.mxu0 0
    %391 = vmatprep.subr.bf16.mxu0 0
    %392 = vmatpush1.bf16.xpose.msra.mxu0 0
    %393 = vmatprep.subr.bf16.mxu0 0
    %394 = vmatpush1.bf16.xpose.msra.mxu0 0
    %395 = vmatprep.subr.bf16.mxu0 0
    %396 = vmatpush1.bf16.xpose.msra.mxu0 0
    %397 = vmatprep.subr.bf16.mxu0 0
    %398 = vmatpush1.bf16.xpose.msra.mxu0 0
    %399 = vmatprep.subr.bf16.mxu0 0
    %400 = vmatpush1.bf16.xpose.msra.mxu0 0
    %401 = vmatprep.subr.bf16.mxu0 0
    %402 = vmatpush1.bf16.xpose.msra.mxu0 0
    %403 = vmatprep.subr.bf16.mxu0 0
    %404 = vmatpush1.bf16.xpose.msra.mxu0 0
    %405 = vmatprep.subr.bf16.mxu0 0
    %406 = vmatpush1.bf16.xpose.msra.mxu0 0
    %407 = vmatprep.subr.bf16.mxu0 0
    %408 = vmatpush1.bf16.xpose.msra.mxu0 0
    %409 = vmatprep.subr.bf16.mxu0 0
    %410 = vmatpush1.bf16.xpose.msra.mxu0 0
    %411 = vmatprep.subr.bf16.mxu0 0
    %412 = vmatpush1.bf16.xpose.msra.mxu0 0
    %413 = vmatprep.subr.bf16.mxu0 0
    %414 = vmatpush1.bf16.xpose.msra.mxu0 0
    %415 = vmatprep.mubr.bf16.mxu0 0
    %416 = vmatmul.mubr.bf16.gmra.mrb[0].mxu0 %v378
    %v417 = vpop.f32.mrb[0].mxu0
    %v418 = vadd.f32 0.0, %v417
    %v419 = vpop.f32.mrb[0].mxu0
    %v420 = vpop.f32.mrb[0].mxu0
    %v421 = vpop.f32.mrb[0].mxu0
    %422 = vdwg.mxu0
    %v423 = vpack.c.b16 %v371, %v371
    %424 = vrot.lane.b32.xlu0 %v423, 124
    %v425 = vpop.permute.xlu0 %424
    %426 = vrot.lane.b32.xlu0 %v423, 92
    %v427 = vpop.permute.xlu0 %426
    %v429 = vsel %vm149, %v425, 0
    %v432 = vsel %vm149, %v427, 0
    %434 = vmatprep.subr.bf16.mxu0 0
    %435 = vmatpush1.bf16.xpose.msra.mxu0 %v432
    %436 = vmatprep.subr.bf16.mxu0 0
    %437 = vmatpush1.bf16.xpose.msra.mxu0 0
    %438 = vmatprep.subr.bf16.mxu0 0
    %439 = vmatpush1.bf16.xpose.msra.mxu0 0
    %440 = vmatprep.subr.bf16.mxu0 0
    %441 = vmatpush1.bf16.xpose.msra.mxu0 0
    %442 = vmatprep.subr.bf16.mxu0 0
    %443 = vmatpush1.bf16.xpose.msra.mxu0 0
    %444 = vmatprep.subr.bf16.mxu0 0
    %445 = vmatpush1.bf16.xpose.msra.mxu0 0
    %446 = vmatprep.subr.bf16.mxu0 0
    %447 = vmatpush1.bf16.xpose.msra.mxu0 0
    %448 = vmatprep.subr.bf16.mxu0 0
    %449 = vmatpush1.bf16.xpose.msra.mxu0 0
    %450 = vmatprep.subr.bf16.mxu0 0
    %451 = vmatpush1.bf16.xpose.msra.mxu0 0
    %452 = vmatprep.subr.bf16.mxu0 0
    %453 = vmatpush1.bf16.xpose.msra.mxu0 0
    %454 = vmatprep.subr.bf16.mxu0 0
    %455 = vmatpush1.bf16.xpose.msra.mxu0 0
    %456 = vmatprep.subr.bf16.mxu0 0
    %457 = vmatpush1.bf16.xpose.msra.mxu0 0
    %458 = vmatprep.subr.bf16.mxu0 0
    %459 = vmatpush1.bf16.xpose.msra.mxu0 0
    %460 = vmatprep.subr.bf16.mxu0 0
    %461 = vmatpush1.bf16.xpose.msra.mxu0 0
    %462 = vmatprep.subr.bf16.mxu0 0
    %463 = vmatpush1.bf16.xpose.msra.mxu0 0
    %464 = vmatprep.subr.bf16.mxu0 0
    %465 = vmatpush1.bf16.xpose.msra.mxu0 0
    %466 = vmatprep.mubr.bf16.mxu0 0
    %467 = vmatmul.mubr.bf16.gmra.mrb[0].mxu0 %v429
    %v468 = vpop.f32.mrb[0].mxu0
    %v469 = vadd.f32 0.0, %v468
    %v470 = vpop.f32.mrb[0].mxu0
    %v471 = vpop.f32.mrb[0].mxu0
    %v472 = vpop.f32.mrb[0].mxu0
    %473 = vdwg.mxu0
    %v474 = vsel %vm244, %v418, -inf
    %475 = vmax.xlane.f32.xlu0 %v474
    %v476 = vpop.xlane.xlu0 %475
    %v477 = vsel %vm244, %v469, -inf
    %478 = vmax.xlane.f32.xlu0 %v477
    %v479 = vpop.xlane.xlu0 %478
    %v480 = vsub.f32 %v418, %v476
    %v481 = vsub.f32 %v469, %v479
    %v482 = vmul.f32 %v480, 1.442695
    %v483 = vpow.pop %v482
    %v484 = vmul.f32 %v481, 1.442695
    %v485 = vpow.pop %v484
    %v486 = vsel %vm244, %v483, 0.0
    %487 = vadd.xlane.f32.xlu0 %v486
    %v488 = vpop.xlane.xlu0 %487
    %v489 = vsel %vm244, %v485, 0.0
    %490 = vadd.xlane.f32.xlu0 %v489
    %v491 = vpop.xlane.xlu0 %490
    %v492 = vrcp.pop %v488
    %v493 = vrcp.pop %v491
    %v494 = vmul.f32 %v483, %v492
    %v495 = vmul.f32 %v485, %v493
    %v496 = vpack.c.bf16 %v494, %v494
    %v497 = vpack.c.bf16 %v495, %v495
    %498 = vrot.lane.b32.xlu0 %v372, 60
    %v499 = vpop.permute.xlu0 %498
    %v501 = vsel %vm244, %v496, 0
    %v504 = vsel %vm274, %v499, 0
    %506 = vmatprep.subr.bf16.mxu0 0
    %507 = vmatpush1.bf16.msra.mxu0 %v504
    %508 = vmatprep.subr.bf16.mxu0 0
    %509 = vmatpush1.bf16.msra.mxu0 0
    %510 = vmatprep.subr.bf16.mxu0 0
    %511 = vmatpush1.bf16.msra.mxu0 0
    %512 = vmatprep.subr.bf16.mxu0 0
    %513 = vmatpush1.bf16.msra.mxu0 0
    %514 = vmatprep.subr.bf16.mxu0 0
    %515 = vmatpush1.bf16.msra.mxu0 0
    %516 = vmatprep.subr.bf16.mxu0 0
    %517 = vmatpush1.bf16.msra.mxu0 0
    %518 = vmatprep.subr.bf16.mxu0 0
    %519 = vmatpush1.bf16.msra.mxu0 0
    %520 = vmatprep.subr.bf16.mxu0 0
    %521 = vmatpush1.bf16.msra.mxu0 0
    %522 = vmatprep.subr.bf16.mxu0 0
    %523 = vmatpush1.bf16.msra.mxu0 0
    %524 = vmatprep.subr.bf16.mxu0 0
    %525 = vmatpush1.bf16.msra.mxu0 0
    %526 = vmatprep.subr.bf16.mxu0 0
    %527 = vmatpush1.bf16.msra.mxu0 0
    %528 = vmatprep.subr.bf16.mxu0 0
    %529 = vmatpush1.bf16.msra.mxu0 0
    %530 = vmatprep.subr.bf16.mxu0 0
    %531 = vmatpush1.bf16.msra.mxu0 0
    %532 = vmatprep.subr.bf16.mxu0 0
    %533 = vmatpush1.bf16.msra.mxu0 0
    %534 = vmatprep.subr.bf16.mxu0 0
    %535 = vmatpush1.bf16.msra.mxu0 0
    %536 = vmatprep.subr.bf16.mxu0 0
    %537 = vmatpush1.bf16.msra.mxu0 0
    %538 = vmatprep.mubr.bf16.mxu0 0
    %539 = vmatmul.mubr.bf16.gmra.mrb[0].mxu0 %v501
    %v540 = vpop.f32.mrb[0].mxu0
    %v541 = vadd.f32 0.0, %v540
    %v542 = vpop.f32.mrb[0].mxu0
    %v543 = vpop.f32.mrb[0].mxu0
    %v544 = vpop.f32.mrb[0].mxu0
    %545 = vdwg.mxu0
    %546 = vrot.lane.b32.xlu0 %v423, 60
    %v547 = vpop.permute.xlu0 %546
    %v549 = vsel %vm244, %v497, 0
    %v552 = vsel %vm274, %v547, 0
    %554 = vmatprep.subr.bf16.mxu0 0
    %555 = vmatpush1.bf16.msra.mxu0 %v552
    %556 = vmatprep.subr.bf16.mxu0 0
    %557 = vmatpush1.bf16.msra.mxu0 0
    %558 = vmatprep.subr.bf16.mxu0 0
    %559 = vmatpush1.bf16.msra.mxu0 0
    %560 = vmatprep.subr.bf16.mxu0 0
    %561 = vmatpush1.bf16.msra.mxu0 0
    %562 = vmatprep.subr.bf16.mxu0 0
    %563 = vmatpush1.bf16.msra.mxu0 0
    %564 = vmatprep.subr.bf16.mxu0 0
    %565 = vmatpush1.bf16.msra.mxu0 0
    %566 = vmatprep.subr.bf16.mxu0 0
    %567 = vmatpush1.bf16.msra.mxu0 0
    %568 = vmatprep.subr.bf16.mxu0 0
    %569 = vmatpush1.bf16.msra.mxu0 0
    %570 = vmatprep.subr.bf16.mxu0 0
    %571 = vmatpush1.bf16.msra.mxu0 0
    %572 = vmatprep.subr.bf16.mxu0 0
    %573 = vmatpush1.bf16.msra.mxu0 0
    %574 = vmatprep.subr.bf16.mxu0 0
    %575 = vmatpush1.bf16.msra.mxu0 0
    %576 = vmatprep.subr.bf16.mxu0 0
    %577 = vmatpush1.bf16.msra.mxu0 0
    %578 = vmatprep.subr.bf16.mxu0 0
    %579 = vmatpush1.bf16.msra.mxu0 0
    %580 = vmatprep.subr.bf16.mxu0 0
    %581 = vmatpush1.bf16.msra.mxu0 0
    %582 = vmatprep.subr.bf16.mxu0 0
    %583 = vmatpush1.bf16.msra.mxu0 0
    %584 = vmatprep.subr.bf16.mxu0 0
    %585 = vmatpush1.bf16.msra.mxu0 0
    %586 = vmatprep.mubr.bf16.mxu0 0
    %587 = vmatmul.mubr.bf16.gmra.mrb[0].mxu0 %v549
    %v588 = vpop.f32.mrb[0].mxu0
    %v589 = vadd.f32 0.0, %v588
    %v590 = vpop.f32.mrb[0].mxu0
    %v591 = vpop.f32.mrb[0].mxu0
    %v592 = vpop.f32.mrb[0].mxu0
    %593 = vdwg.mxu0
    %v594 = vpack.c.bf16 %v589, %v541
    %596 = vrot.lane.b32.xlu0 %v594, 4
    %v597 = vpop.permute.xlu0 %596
    %vm599 = vcmask 64544
    %600 = vst.msk [vmem:[#allocation3] sm:$0xff] %vm599, %v597
    %v601 = vld [vmem:[#allocation2] sm:$0xff]
    %v603 = vunpack.c.l.b16 %v601
    %v604 = vunpack.c.h.b16 %v601
    %v605 = vpack.c.b16 %v603, %v603
    %606 = vrot.lane.b32.xlu0 %v605, 120
    %v607 = vpop.permute.xlu0 %606
    %608 = vrot.lane.b32.xlu0 %v605, 88
    %v609 = vpop.permute.xlu0 %608
    %v611 = vsel %vm149, %v607, 0
    %v614 = vsel %vm149, %v609, 0
    %616 = vmatprep.subr.bf16.mxu0 0
    %617 = vmatpush1.bf16.xpose.msra.mxu0 %v614
    %618 = vmatprep.subr.bf16.mxu0 0
    %619 = vmatpush1.bf16.xpose.msra.mxu0 0
    %620 = vmatprep.subr.bf16.mxu0 0
    %621 = vmatpush1.bf16.xpose.msra.mxu0 0
    %622 = vmatprep.subr.bf16.mxu0 0
    %623 = vmatpush1.bf16.xpose.msra.mxu0 0
    %624 = vmatprep.subr.bf16.mxu0 0
    %625 = vmatpush1.bf16.xpose.msra.mxu0 0
    %626 = vmatprep.subr.bf16.mxu0 0
    %627 = vmatpush1.bf16.xpose.msra.mxu0 0
    %628 = vmatprep.subr.bf16.mxu0 0
    %629 = vmatpush1.bf16.xpose.msra.mxu0 0
    %630 = vmatprep.subr.bf16.mxu0 0
    %631 = vmatpush1.bf16.xpose.msra.mxu0 0
    %632 = vmatprep.subr.bf16.mxu0 0
    %633 = vmatpush1.bf16.xpose.msra.mxu0 0
    %634 = vmatprep.subr.bf16.mxu0 0
    %635 = vmatpush1.bf16.xpose.msra.mxu0 0
    %636 = vmatprep.subr.bf16.mxu0 0
    %637 = vmatpush1.bf16.xpose.msra.mxu0 0
    %638 = vmatprep.subr.bf16.mxu0 0
    %639 = vmatpush1.bf16.xpose.msra.mxu0 0
    %640 = vmatprep.subr.bf16.mxu0 0
    %641 = vmatpush1.bf16.xpose.msra.mxu0 0
    %642 = vmatprep.subr.bf16.mxu0 0
    %643 = vmatpush1.bf16.xpose.msra.mxu0 0
    %644 = vmatprep.subr.bf16.mxu0 0
    %645 = vmatpush1.bf16.xpose.msra.mxu0 0
    %646 = vmatprep.subr.bf16.mxu0 0
    %647 = vmatpush1.bf16.xpose.msra.mxu0 0
    %648 = vmatprep.mubr.bf16.mxu0 0
    %649 = vmatmul.mubr.bf16.gmra.mrb[0].mxu0 %v611
    %v650 = vpop.f32.mrb[0].mxu0
    %v651 = vadd.f32 0.0, %v650
    %v652 = vpop.f32.mrb[0].mxu0
    %v653 = vpop.f32.mrb[0].mxu0
    %v654 = vpop.f32.mrb[0].mxu0
    %655 = vdwg.mxu0
    %v656 = vpack.c.b16 %v604, %v604
    %657 = vrot.lane.b32.xlu0 %v656, 120
    %v658 = vpop.permute.xlu0 %657
    %659 = vrot.lane.b32.xlu0 %v656, 88
    %v660 = vpop.permute.xlu0 %659
    %v662 = vsel %vm149, %v658, 0
    %v665 = vsel %vm149, %v660, 0
    %667 = vmatprep.subr.bf16.mxu0 0
    %668 = vmatpush1.bf16.xpose.msra.mxu0 %v665
    %669 = vmatprep.subr.bf16.mxu0 0
    %670 = vmatpush1.bf16.xpose.msra.mxu0 0
    %671 = vmatprep.subr.bf16.mxu0 0
    %672 = vmatpush1.bf16.xpose.msra.mxu0 0
    %673 = vmatprep.subr.bf16.mxu0 0
    %674 = vmatpush1.bf16.xpose.msra.mxu0 0
    %675 = vmatprep.subr.bf16.mxu0 0
    %676 = vmatpush1.bf16.xpose.msra.mxu0 0
    %677 = vmatprep.subr.bf16.mxu0 0
    %678 = vmatpush1.bf16.xpose.msra.mxu0 0
    %679 = vmatprep.subr.bf16.mxu0 0
    %680 = vmatpush1.bf16.xpose.msra.mxu0 0
    %681 = vmatprep.subr.bf16.mxu0 0
    %682 = vmatpush1.bf16.xpose.msra.mxu0 0
    %683 = vmatprep.subr.bf16.mxu0 0
    %684 = vmatpush1.bf16.xpose.msra.mxu0 0
    %685 = vmatprep.subr.bf16.mxu0 0
    %686 = vmatpush1.bf16.xpose.msra.mxu0 0
    %687 = vmatprep.subr.bf16.mxu0 0
    %688 = vmatpush1.bf16.xpose.msra.mxu0 0
    %689 = vmatprep.subr.bf16.mxu0 0
    %690 = vmatpush1.bf16.xpose.msra.mxu0 0
    %691 = vmatprep.subr.bf16.mxu0 0
    %692 = vmatpush1.bf16.xpose.msra.mxu0 0
    %693 = vmatprep.subr.bf16.mxu0 0
    %694 = vmatpush1.bf16.xpose.msra.mxu0 0
    %695 = vmatprep.subr.bf16.mxu0 0
    %696 = vmatpush1.bf16.xpose.msra.mxu0 0
    %697 = vmatprep.subr.bf16.mxu0 0
    %698 = vmatpush1.bf16.xpose.msra.mxu0 0
    %699 = vmatprep.mubr.bf16.mxu0 0
    %700 = vmatmul.mubr.bf16.gmra.mrb[0].mxu0 %v662
    %v701 = vpop.f32.mrb[0].mxu0
    %v702 = vadd.f32 0.0, %v701
    %v703 = vpop.f32.mrb[0].mxu0
    %v704 = vpop.f32.mrb[0].mxu0
    %v705 = vpop.f32.mrb[0].mxu0
    %706 = vdwg.mxu0
    %v707 = vsel %vm244, %v651, -inf
    %708 = vmax.xlane.f32.xlu0 %v707
    %v709 = vpop.xlane.xlu0 %708
    %v710 = vsel %vm244, %v702, -inf
    %711 = vmax.xlane.f32.xlu0 %v710
    %v712 = vpop.xlane.xlu0 %711
    %v713 = vsub.f32 %v651, %v709
    %v714 = vsub.f32 %v702, %v712
    %v715 = vmul.f32 %v713, 1.442695
    %v716 = vpow.pop %v715
    %v717 = vmul.f32 %v714, 1.442695
    %v718 = vpow.pop %v717
    %v719 = vsel %vm244, %v716, 0.0
    %720 = vadd.xlane.f32.xlu0 %v719
    %v721 = vpop.xlane.xlu0 %720
    %v722 = vsel %vm244, %v718, 0.0
    %723 = vadd.xlane.f32.xlu0 %v722
    %v724 = vpop.xlane.xlu0 %723
    %v725 = vrcp.pop %v721
    %v726 = vrcp.pop %v724
    %v727 = vmul.f32 %v716, %v725
    %v728 = vmul.f32 %v718, %v726
    %v729 = vpack.c.bf16 %v727, %v727
    %v730 = vpack.c.bf16 %v728, %v728
    %731 = vrot.lane.b32.xlu0 %v605, 56
    %v732 = vpop.permute.xlu0 %731
    %v734 = vsel %vm244, %v729, 0
    %v737 = vsel %vm274, %v732, 0
    %739 = vmatprep.subr.bf16.mxu0 0
    %740 = vmatpush1.bf16.msra.mxu0 %v737
    %741 = vmatprep.subr.bf16.mxu0 0
    %742 = vmatpush1.bf16.msra.mxu0 0
    %743 = vmatprep.subr.bf16.mxu0 0
    %744 = vmatpush1.bf16.msra.mxu0 0
    %745 = vmatprep.subr.bf16.mxu0 0
    %746 = vmatpush1.bf16.msra.mxu0 0
    %747 = vmatprep.subr.bf16.mxu0 0
    %748 = vmatpush1.bf16.msra.mxu0 0
    %749 = vmatprep.subr.bf16.mxu0 0
    %750 = vmatpush1.bf16.msra.mxu0 0
    %751 = vmatprep.subr.bf16.mxu0 0
    %752 = vmatpush1.bf16.msra.mxu0 0
    %753 = vmatprep.subr.bf16.mxu0 0
    %754 = vmatpush1.bf16.msra.mxu0 0
    %755 = vmatprep.subr.bf16.mxu0 0
    %756 = vmatpush1.bf16.msra.mxu0 0
    %757 = vmatprep.subr.bf16.mxu0 0
    %758 = vmatpush1.bf16.msra.mxu0 0
    %759 = vmatprep.subr.bf16.mxu0 0
    %760 = vmatpush1.bf16.msra.mxu0 0
    %761 = vmatprep.subr.bf16.mxu0 0
    %762 = vmatpush1.bf16.msra.mxu0 0
    %763 = vmatprep.subr.bf16.mxu0 0
    %764 = vmatpush1.bf16.msra.mxu0 0
    %765 = vmatprep.subr.bf16.mxu0 0
    %766 = vmatpush1.bf16.msra.mxu0 0
    %767 = vmatprep.subr.bf16.mxu0 0
    %768 = vmatpush1.bf16.msra.mxu0 0
    %769 = vmatprep.subr.bf16.mxu0 0
    %770 = vmatpush1.bf16.msra.mxu0 0
    %771 = vmatprep.mubr.bf16.mxu0 0
    %772 = vmatmul.mubr.bf16.gmra.mrb[0].mxu0 %v734
    %v773 = vpop.f32.mrb[0].mxu0
    %v774 = vadd.f32 0.0, %v773
    %v775 = vpop.f32.mrb[0].mxu0
    %v776 = vpop.f32.mrb[0].mxu0
    %v777 = vpop.f32.mrb[0].mxu0
    %778 = vdwg.mxu0
    %779 = vrot.lane.b32.xlu0 %v656, 56
    %v780 = vpop.permute.xlu0 %779
    %v782 = vsel %vm244, %v730, 0
    %v785 = vsel %vm274, %v780, 0
    %787 = vmatprep.subr.bf16.mxu0 0
    %788 = vmatpush1.bf16.msra.mxu0 %v785
    %789 = vmatprep.subr.bf16.mxu0 0
    %790 = vmatpush1.bf16.msra.mxu0 0
    %791 = vmatprep.subr.bf16.mxu0 0
    %792 = vmatpush1.bf16.msra.mxu0 0
    %793 = vmatprep.subr.bf16.mxu0 0
    %794 = vmatpush1.bf16.msra.mxu0 0
    %795 = vmatprep.subr.bf16.mxu0 0
    %796 = vmatpush1.bf16.msra.mxu0 0
    %797 = vmatprep.subr.bf16.mxu0 0
    %798 = vmatpush1.bf16.msra.mxu0 0
    %799 = vmatprep.subr.bf16.mxu0 0
    %800 = vmatpush1.bf16.msra.mxu0 0
    %801 = vmatprep.subr.bf16.mxu0 0
    %802 = vmatpush1.bf16.msra.mxu0 0
    %803 = vmatprep.subr.bf16.mxu0 0
    %804 = vmatpush1.bf16.msra.mxu0 0
    %805 = vmatprep.subr.bf16.mxu0 0
    %806 = vmatpush1.bf16.msra.mxu0 0
    %807 = vmatprep.subr.bf16.mxu0 0
    %808 = vmatpush1.bf16.msra.mxu0 0
    %809 = vmatprep.subr.bf16.mxu0 0
    %810 = vmatpush1.bf16.msra.mxu0 0
    %811 = vmatprep.subr.bf16.mxu0 0
    %812 = vmatpush1.bf16.msra.mxu0 0
    %813 = vmatprep.subr.bf16.mxu0 0
    %814 = vmatpush1.bf16.msra.mxu0 0
    %815 = vmatprep.subr.bf16.mxu0 0
    %816 = vmatpush1.bf16.msra.mxu0 0
    %817 = vmatprep.subr.bf16.mxu0 0
    %818 = vmatpush1.bf16.msra.mxu0 0
    %819 = vmatprep.mubr.bf16.mxu0 0
    %820 = vmatmul.mubr.bf16.gmra.mrb[0].mxu0 %v782
    %v821 = vpop.f32.mrb[0].mxu0
    %v822 = vadd.f32 0.0, %v821
    %v823 = vpop.f32.mrb[0].mxu0
    %v824 = vpop.f32.mrb[0].mxu0
    %v825 = vpop.f32.mrb[0].mxu0
    %826 = vdwg.mxu0
    %v827 = vpack.c.bf16 %v822, %v774
    %829 = vrot.lane.b32.xlu0 %v827, 8
    %v830 = vpop.permute.xlu0 %829
    %vm832 = vcmask 97344
    %833 = vst.msk [vmem:[#allocation3] sm:$0xff] %vm832, %v830
    %v834 = vld [vmem:[#allocation2] sm:$0xff]
    %v836 = vunpack.c.l.b16 %v834
    %v837 = vunpack.c.h.b16 %v834
    %v838 = vpack.c.b16 %v836, %v836
    %839 = vrot.lane.b32.xlu0 %v838, 116
    %v840 = vpop.permute.xlu0 %839
    %841 = vrot.lane.b32.xlu0 %v838, 84
    %v842 = vpop.permute.xlu0 %841
    %v844 = vsel %vm149, %v840, 0
    %v847 = vsel %vm149, %v842, 0
    %849 = vmatprep.subr.bf16.mxu0 0
    %850 = vmatpush1.bf16.xpose.msra.mxu0 %v847
    %851 = vmatprep.subr.bf16.mxu0 0
    %852 = vmatpush1.bf16.xpose.msra.mxu0 0
    %853 = vmatprep.subr.bf16.mxu0 0
    %854 = vmatpush1.bf16.xpose.msra.mxu0 0
    %855 = vmatprep.subr.bf16.mxu0 0
    %856 = vmatpush1.bf16.xpose.msra.mxu0 0
    %857 = vmatprep.subr.bf16.mxu0 0
    %858 = vmatpush1.bf16.xpose.msra.mxu0 0
    %859 = vmatprep.subr.bf16.mxu0 0
    %860 = vmatpush1.bf16.xpose.msra.mxu0 0
    %861 = vmatprep.subr.bf16.mxu0 0
    %862 = vmatpush1.bf16.xpose.msra.mxu0 0
    %863 = vmatprep.subr.bf16.mxu0 0
    %864 = vmatpush1.bf16.xpose.msra.mxu0 0
    %865 = vmatprep.subr.bf16.mxu0 0
    %866 = vmatpush1.bf16.xpose.msra.mxu0 0
    %867 = vmatprep.subr.bf16.mxu0 0
    %868 = vmatpush1.bf16.xpose.msra.mxu0 0
    %869 = vmatprep.subr.bf16.mxu0 0
    %870 = vmatpush1.bf16.xpose.msra.mxu0 0
    %871 = vmatprep.subr.bf16.mxu0 0
    %872 = vmatpush1.bf16.xpose.msra.mxu0 0
    %873 = vmatprep.subr.bf16.mxu0 0
    %874 = vmatpush1.bf16.xpose.msra.mxu0 0
    %875 = vmatprep.subr.bf16.mxu0 0
    %876 = vmatpush1.bf16.xpose.msra.mxu0 0
    %877 = vmatprep.subr.bf16.mxu0 0
    %878 = vmatpush1.bf16.xpose.msra.mxu0 0
    %879 = vmatprep.subr.bf16.mxu0 0
    %880 = vmatpush1.bf16.xpose.msra.mxu0 0
    %881 = vmatprep.mubr.bf16.mxu0 0
    %882 = vmatmul.mubr.bf16.gmra.mrb[0].mxu0 %v844
    %v883 = vpop.f32.mrb[0].mxu0
    %v884 = vadd.f32 0.0, %v883
    %v885 = vpop.f32.mrb[0].mxu0
    %v886 = vpop.f32.mrb[0].mxu0
    %v887 = vpop.f32.mrb[0].mxu0
    %888 = vdwg.mxu0
    %v889 = vpack.c.b16 %v837, %v837
    %890 = vrot.lane.b32.xlu0 %v889, 116
    %v891 = vpop.permute.xlu0 %890
    %892 = vrot.lane.b32.xlu0 %v889, 84
    %v893 = vpop.permute.xlu0 %892
    %v895 = vsel %vm149, %v891, 0
    %v898 = vsel %vm149, %v893, 0
    %900 = vmatprep.subr.bf16.mxu0 0
    %901 = vmatpush1.bf16.xpose.msra.mxu0 %v898
    %902 = vmatprep.subr.bf16.mxu0 0
    %903 = vmatpush1.bf16.xpose.msra.mxu0 0
    %904 = vmatprep.subr.bf16.mxu0 0
    %905 = vmatpush1.bf16.xpose.msra.mxu0 0
    %906 = vmatprep.subr.bf16.mxu0 0
    %907 = vmatpush1.bf16.xpose.msra.mxu0 0
    %908 = vmatprep.subr.bf16.mxu0 0
    %909 = vmatpush1.bf16.xpose.msra.mxu0 0
    %910 = vmatprep.subr.bf16.mxu0 0
    %911 = vmatpush1.bf16.xpose.msra.mxu0 0
    %912 = vmatprep.subr.bf16.mxu0 0
    %913 = vmatpush1.bf16.xpose.msra.mxu0 0
    %914 = vmatprep.subr.bf16.mxu0 0
    %915 = vmatpush1.bf16.xpose.msra.mxu0 0
    %916 = vmatprep.subr.bf16.mxu0 0
    %917 = vmatpush1.bf16.xpose.msra.mxu0 0
    %918 = vmatprep.subr.bf16.mxu0 0
    %919 = vmatpush1.bf16.xpose.msra.mxu0 0
    %920 = vmatprep.subr.bf16.mxu0 0
    %921 = vmatpush1.bf16.xpose.msra.mxu0 0
    %922 = vmatprep.subr.bf16.mxu0 0
    %923 = vmatpush1.bf16.xpose.msra.mxu0 0
    %924 = vmatprep.subr.bf16.mxu0 0
    %925 = vmatpush1.bf16.xpose.msra.mxu0 0
    %926 = vmatprep.subr.bf16.mxu0 0
    %927 = vmatpush1.bf16.xpose.msra.mxu0 0
    %928 = vmatprep.subr.bf16.mxu0 0
    %929 = vmatpush1.bf16.xpose.msra.mxu0 0
    %930 = vmatprep.subr.bf16.mxu0 0
    %931 = vmatpush1.bf16.xpose.msra.mxu0 0
    %932 = vmatprep.mubr.bf16.mxu0 0
    %933 = vmatmul.mubr.bf16.gmra.mrb[0].mxu0 %v895
    %v934 = vpop.f32.mrb[0].mxu0
    %v935 = vadd.f32 0.0, %v934
    %v936 = vpop.f32.mrb[0].mxu0
    %v937 = vpop.f32.mrb[0].mxu0
    %v938 = vpop.f32.mrb[0].mxu0
    %939 = vdwg.mxu0
    %v940 = vsel %vm244, %v884, -inf
    %941 = vmax.xlane.f32.xlu0 %v940
    %v942 = vpop.xlane.xlu0 %941
    %v943 = vsel %vm244, %v935, -inf
    %944 = vmax.xlane.f32.xlu0 %v943
    %v945 = vpop.xlane.xlu0 %944
    %v946 = vsub.f32 %v884, %v942
    %v947 = vsub.f32 %v935, %v945
    %v948 = vmul.f32 %v946, 1.442695
    %v949 = vpow.pop %v948
    %v950 = vmul.f32 %v947, 1.442695
    %v951 = vpow.pop %v950
    %v952 = vsel %vm244, %v949, 0.0
    %953 = vadd.xlane.f32.xlu0 %v952
    %v954 = vpop.xlane.xlu0 %953
    %v955 = vsel %vm244, %v951, 0.0
    %956 = vadd.xlane.f32.xlu0 %v955
    %v957 = vpop.xlane.xlu0 %956
    %v958 = vrcp.pop %v954
    %v959 = vrcp.pop %v957
    %v960 = vmul.f32 %v949, %v958
    %v961 = vmul.f32 %v951, %v959
    %v962 = vpack.c.bf16 %v960, %v960
    %v963 = vpack.c.bf16 %v961, %v961
    %964 = vrot.lane.b32.xlu0 %v838, 52
    %v965 = vpop.permute.xlu0 %964
    %v967 = vsel %vm244, %v962, 0
    %v970 = vsel %vm274, %v965, 0
    %972 = vmatprep.subr.bf16.mxu0 0
    %973 = vmatpush1.bf16.msra.mxu0 %v970
    %974 = vmatprep.subr.bf16.mxu0 0
    %975 = vmatpush1.bf16.msra.mxu0 0
    %976 = vmatprep.subr.bf16.mxu0 0
    %977 = vmatpush1.bf16.msra.mxu0 0
    %978 = vmatprep.subr.bf16.mxu0 0
    %979 = vmatpush1.bf16.msra.mxu0 0
    %980 = vmatprep.subr.bf16.mxu0 0
    %981 = vmatpush1.bf16.msra.mxu0 0
    %982 = vmatprep.subr.bf16.mxu0 0
    %983 = vmatpush1.bf16.msra.mxu0 0
    %984 = vmatprep.subr.bf16.mxu0 0
    %985 = vmatpush1.bf16.msra.mxu0 0
    %986 = vmatprep.subr.bf16.mxu0 0
    %987 = vmatpush1.bf16.msra.mxu0 0
    %988 = vmatprep.subr.bf16.mxu0 0
    %989 = vmatpush1.bf16.msra.mxu0 0
    %990 = vmatprep.subr.bf16.mxu0 0
    %991 = vmatpush1.bf16.msra.mxu0 0
    %992 = vmatprep.subr.bf16.mxu0 0
    %993 = vmatpush1.bf16.msra.mxu0 0
    %994 = vmatprep.subr.bf16.mxu0 0
    %995 = vmatpush1.bf16.msra.mxu0 0
    %996 = vmatprep.subr.bf16.mxu0 0
    %997 = vmatpush1.bf16.msra.mxu0 0
    %998 = vmatprep.subr.bf16.mxu0 0
    %999 = vmatpush1.bf16.msra.mxu0 0
    %1000 = vmatprep.subr.bf16.mxu0 0
    %1001 = vmatpush1.bf16.msra.mxu0 0
    %1002 = vmatprep.subr.bf16.mxu0 0
    %1003 = vmatpush1.bf16.msra.mxu0 0
    %1004 = vmatprep.mubr.bf16.mxu0 0
    %1005 = vmatmul.mubr.bf16.gmra.mrb[0].mxu0 %v967
    %v1006 = vpop.f32.mrb[0].mxu0
    %v1007 = vadd.f32 0.0, %v1006
    %v1008 = vpop.f32.mrb[0].mxu0
    %v1009 = vpop.f32.mrb[0].mxu0
    %v1010 = vpop.f32.mrb[0].mxu0
    %1011 = vdwg.mxu0
    %1012 = vrot.lane.b32.xlu0 %v889, 52
    %v1013 = vpop.permute.xlu0 %1012
    %v1015 = vsel %vm244, %v963, 0
    %v1018 = vsel %vm274, %v1013, 0
    %1020 = vmatprep.subr.bf16.mxu0 0
    %1021 = vmatpush1.bf16.msra.mxu0 %v1018
    %1022 = vmatprep.subr.bf16.mxu0 0
    %1023 = vmatpush1.bf16.msra.mxu0 0
    %1024 = vmatprep.subr.bf16.mxu0 0
    %1025 = vmatpush1.bf16.msra.mxu0 0
    %1026 = vmatprep.subr.bf16.mxu0 0
    %1027 = vmatpush1.bf16.msra.mxu0 0
    %1028 = vmatprep.subr.bf16.mxu0 0
    %1029 = vmatpush1.bf16.msra.mxu0 0
    %1030 = vmatprep.subr.bf16.mxu0 0
    %1031 = vmatpush1.bf16.msra.mxu0 0
    %1032 = vmatprep.subr.bf16.mxu0 0
    %1033 = vmatpush1.bf16.msra.mxu0 0
    %1034 = vmatprep.subr.bf16.mxu0 0
    %1035 = vmatpush1.bf16.msra.mxu0 0
    %1036 = vmatprep.subr.bf16.mxu0 0
    %1037 = vmatpush1.bf16.msra.mxu0 0
    %1038 = vmatprep.subr.bf16.mxu0 0
    %1039 = vmatpush1.bf16.msra.mxu0 0
    %1040 = vmatprep.subr.bf16.mxu0 0
    %1041 = vmatpush1.bf16.msra.mxu0 0
    %1042 = vmatprep.subr.bf16.mxu0 0
    %1043 = vmatpush1.bf16.msra.mxu0 0
    %1044 = vmatprep.subr.bf16.mxu0 0
    %1045 = vmatpush1.bf16.msra.mxu0 0
    %1046 = vmatprep.subr.bf16.mxu0 0
    %1047 = vmatpush1.bf16.msra.mxu0 0
    %1048 = vmatprep.subr.bf16.mxu0 0
    %1049 = vmatpush1.bf16.msra.mxu0 0
    %1050 = vmatprep.subr.bf16.mxu0 0
    %1051 = vmatpush1.bf16.msra.mxu0 0
    %1052 = vmatprep.mubr.bf16.mxu0 0
    %1053 = vmatmul.mubr.bf16.gmra.mrb[0].mxu0 %v1015
    %v1054 = vpop.f32.mrb[0].mxu0
    %v1055 = vadd.f32 0.0, %v1054
    %v1056 = vpop.f32.mrb[0].mxu0
    %v1057 = vpop.f32.mrb[0].mxu0
    %v1058 = vpop.f32.mrb[0].mxu0
    %1059 = vdwg.mxu0
    %v1060 = vpack.c.bf16 %v1055, %v1007
    %1062 = vrot.lane.b32.xlu0 %v1060, 12
    %v1063 = vpop.permute.xlu0 %1062
    %vm1065 = vcmask 130144
    %1066 = vst.msk [vmem:[#allocation3] sm:$0xff] %vm1065, %v1063
    %v1067 = vld [vmem:[#allocation2] sm:$0xff]
    %v1069 = vunpack.c.l.b16 %v1067
    %v1070 = vunpack.c.h.b16 %v1067
    %v1071 = vpack.c.b16 %v1069, %v1069
    %1072 = vrot.lane.b32.xlu0 %v1071, 112
    %v1073 = vpop.permute.xlu0 %1072
    %1074 = vrot.lane.b32.xlu0 %v1071, 80
    %v1075 = vpop.permute.xlu0 %1074
    %v1077 = vsel %vm149, %v1073, 0
    %v1080 = vsel %vm149, %v1075, 0
    %1082 = vmatprep.subr.bf16.mxu0 0
    %1083 = vmatpush1.bf16.xpose.msra.mxu0 %v1080
    %1084 = vmatprep.subr.bf16.mxu0 0
    %1085 = vmatpush1.bf16.xpose.msra.mxu0 0
    %1086 = vmatprep.subr.bf16.mxu0 0
    %1087 = vmatpush1.bf16.xpose.msra.mxu0 0
    %1088 = vmatprep.subr.bf16.mxu0 0
    %1089 = vmatpush1.bf16.xpose.msra.mxu0 0
    %1090 = vmatprep.subr.bf16.mxu0 0
    %1091 = vmatpush1.bf16.xpose.msra.mxu0 0
    %1092 = vmatprep.subr.bf16.mxu0 0
    %1093 = vmatpush1.bf16.xpose.msra.mxu0 0
    %1094 = vmatprep.subr.bf16.mxu0 0
    %1095 = vmatpush1.bf16.xpose.msra.mxu0 0
    %1096 = vmatprep.subr.bf16.mxu0 0
    %1097 = vmatpush1.bf16.xpose.msra.mxu0 0
    %1098 = vmatprep.subr.bf16.mxu0 0
    %1099 = vmatpush1.bf16.xpose.msra.mxu0 0
    %1100 = vmatprep.subr.bf16.mxu0 0
    %1101 = vmatpush1.bf16.xpose.msra.mxu0 0
    %1102 = vmatprep.subr.bf16.mxu0 0
    %1103 = vmatpush1.bf16.xpose.msra.mxu0 0
    %1104 = vmatprep.subr.bf16.mxu0 0
    %1105 = vmatpush1.bf16.xpose.msra.mxu0 0
    %1106 = vmatprep.subr.bf16.mxu0 0
    %1107 = vmatpush1.bf16.xpose.msra.mxu0 0
    %1108 = vmatprep.subr.bf16.mxu0 0
    %1109 = vmatpush1.bf16.xpose.msra.mxu0 0
    %1110 = vmatprep.subr.bf16.mxu0 0
    %1111 = vmatpush1.bf16.xpose.msra.mxu0 0
    %1112 = vmatprep.subr.bf16.mxu0 0
    %1113 = vmatpush1.bf16.xpose.msra.mxu0 0
    %1114 = vmatprep.mubr.bf16.mxu0 0
    %1115 = vmatmul.mubr.bf16.gmra.mrb[0].mxu0 %v1077
    %v1116 = vpop.f32.mrb[0].mxu0
    %v1117 = vadd.f32 0.0, %v1116
    %v1118 = vpop.f32.mrb[0].mxu0
    %v1119 = vpop.f32.mrb[0].mxu0
    %v1120 = vpop.f32.mrb[0].mxu0
    %1121 = vdwg.mxu0
    %v1122 = vpack.c.b16 %v1070, %v1070
    %1123 = vrot.lane.b32.xlu0 %v1122, 112
    %v1124 = vpop.permute.xlu0 %1123
    %1125 = vrot.lane.b32.xlu0 %v1122, 80
    %v1126 = vpop.permute.xlu0 %1125
    %v1128 = vsel %vm149, %v1124, 0
    %v1131 = vsel %vm149, %v1126, 0
    %1133 = vmatprep.subr.bf16.mxu0 0
    %1134 = vmatpush1.bf16.xpose.msra.mxu0 %v1131
    %1135 = vmatprep.subr.bf16.mxu0 0
    %1136 = vmatpush1.bf16.xpose.msra.mxu0 0
    %1137 = vmatprep.subr.bf16.mxu0 0
    %1138 = vmatpush1.bf16.xpose.msra.mxu0 0
    %1139 = vmatprep.subr.bf16.mxu0 0
    %1140 = vmatpush1.bf16.xpose.msra.mxu0 0
    %1141 = vmatprep.subr.bf16.mxu0 0
    %1142 = vmatpush1.bf16.xpose.msra.mxu0 0
    %1143 = vmatprep.subr.bf16.mxu0 0
    %1144 = vmatpush1.bf16.xpose.msra.mxu0 0
    %1145 = vmatprep.subr.bf16.mxu0 0
    %1146 = vmatpush1.bf16.xpose.msra.mxu0 0
    %1147 = vmatprep.subr.bf16.mxu0 0
    %1148 = vmatpush1.bf16.xpose.msra.mxu0 0
    %1149 = vmatprep.subr.bf16.mxu0 0
    %1150 = vmatpush1.bf16.xpose.msra.mxu0 0
    %1151 = vmatprep.subr.bf16.mxu0 0
    %1152 = vmatpush1.bf16.xpose.msra.mxu0 0
    %1153 = vmatprep.subr.bf16.mxu0 0
    %1154 = vmatpush1.bf16.xpose.msra.mxu0 0
    %1155 = vmatprep.subr.bf16.mxu0 0
    %1156 = vmatpush1.bf16.xpose.msra.mxu0 0
    %1157 = vmatprep.subr.bf16.mxu0 0
    %1158 = vmatpush1.bf16.xpose.msra.mxu0 0
    %1159 = vmatprep.subr.bf16.mxu0 0
    %1160 = vmatpush1.bf16.xpose.msra.mxu0 0
    %1161 = vmatprep.subr.bf16.mxu0 0
    %1162 = vmatpush1.bf16.xpose.msra.mxu0 0
    %1163 = vmatprep.subr.bf16.mxu0 0
    %1164 = vmatpush1.bf16.xpose.msra.mxu0 0
    %1165 = vmatprep.mubr.bf16.mxu0 0
    %1166 = vmatmul.mubr.bf16.gmra.mrb[0].mxu0 %v1128
    %v1167 = vpop.f32.mrb[0].mxu0
    %v1168 = vadd.f32 0.0, %v1167
    %v1169 = vpop.f32.mrb[0].mxu0
    %v1170 = vpop.f32.mrb[0].mxu0
    %v1171 = vpop.f32.mrb[0].mxu0
    %1172 = vdwg.mxu0
    %v1173 = vsel %vm244, %v1117, -inf
    %1174 = vmax.xlane.f32.xlu0 %v1173
    %v1175 = vpop.xlane.xlu0 %1174
    %v1176 = vsel %vm244, %v1168, -inf
    %1177 = vmax.xlane.f32.xlu0 %v1176
    %v1178 = vpop.xlane.xlu0 %1177
    %v1179 = vsub.f32 %v1117, %v1175
    %v1180 = vsub.f32 %v1168, %v1178
    %v1181 = vmul.f32 %v1179, 1.442695
    %v1182 = vpow.pop %v1181
    %v1183 = vmul.f32 %v1180, 1.442695
    %v1184 = vpow.pop %v1183
    %v1185 = vsel %vm244, %v1182, 0.0
    %1186 = vadd.xlane.f32.xlu0 %v1185
    %v1187 = vpop.xlane.xlu0 %1186
    %v1188 = vsel %vm244, %v1184, 0.0
    %1189 = vadd.xlane.f32.xlu0 %v1188
    %v1190 = vpop.xlane.xlu0 %1189
    %v1191 = vrcp.pop %v1187
    %v1192 = vrcp.pop %v1190
    %v1193 = vmul.f32 %v1182, %v1191
    %v1194 = vmul.f32 %v1184, %v1192
    %v1195 = vpack.c.bf16 %v1193, %v1193
    %v1196 = vpack.c.bf16 %v1194, %v1194
    %1197 = vrot.lane.b32.xlu0 %v1071, 48
    %v1198 = vpop.permute.xlu0 %1197
    %v1200 = vsel %vm244, %v1195, 0
    %v1203 = vsel %vm274, %v1198, 0
    %1205 = vmatprep.subr.bf16.mxu0 0
    %1206 = vmatpush1.bf16.msra.mxu0 %v1203
    %1207 = vmatprep.subr.bf16.mxu0 0
    %1208 = vmatpush1.bf16.msra.mxu0 0
    %1209 = vmatprep.subr.bf16.mxu0 0
    %1210 = vmatpush1.bf16.msra.mxu0 0
    %1211 = vmatprep.subr.bf16.mxu0 0
    %1212 = vmatpush1.bf16.msra.mxu0 0
    %1213 = vmatprep.subr.bf16.mxu0 0
    %1214 = vmatpush1.bf16.msra.mxu0 0
    %1215 = vmatprep.subr.bf16.mxu0 0
    %1216 = vmatpush1.bf16.msra.mxu0 0
    %1217 = vmatprep.subr.bf16.mxu0 0
    %1218 = vmatpush1.bf16.msra.mxu0 0
    %1219 = vmatprep.subr.bf16.mxu0 0
    %1220 = vmatpush1.bf16.msra.mxu0 0
    %1221 = vmatprep.subr.bf16.mxu0 0
    %1222 = vmatpush1.bf16.msra.mxu0 0
    %1223 = vmatprep.subr.bf16.mxu0 0
    %1224 = vmatpush1.bf16.msra.mxu0 0
    %1225 = vmatprep.subr.bf16.mxu0 0
    %1226 = vmatpush1.bf16.msra.mxu0 0
    %1227 = vmatprep.subr.bf16.mxu0 0
    %1228 = vmatpush1.bf16.msra.mxu0 0
    %1229 = vmatprep.subr.bf16.mxu0 0
    %1230 = vmatpush1.bf16.msra.mxu0 0
    %1231 = vmatprep.subr.bf16.mxu0 0
    %1232 = vmatpush1.bf16.msra.mxu0 0
    %1233 = vmatprep.subr.bf16.mxu0 0
    %1234 = vmatpush1.bf16.msra.mxu0 0
    %1235 = vmatprep.subr.bf16.mxu0 0
    %1236 = vmatpush1.bf16.msra.mxu0 0
    %1237 = vmatprep.mubr.bf16.mxu0 0
    %1238 = vmatmul.mubr.bf16.gmra.mrb[0].mxu0 %v1200
    %v1239 = vpop.f32.mrb[0].mxu0
    %v1240 = vadd.f32 0.0, %v1239
    %v1241 = vpop.f32.mrb[0].mxu0
    %v1242 = vpop.f32.mrb[0].mxu0
    %v1243 = vpop.f32.mrb[0].mxu0
    %1244 = vdwg.mxu0
    %1245 = vrot.lane.b32.xlu0 %v1122, 48
    %v1246 = vpop.permute.xlu0 %1245
    %v1248 = vsel %vm244, %v1196, 0
    %v1251 = vsel %vm274, %v1246, 0
    %1253 = vmatprep.subr.bf16.mxu0 0
    %1254 = vmatpush1.bf16.msra.mxu0 %v1251
    %1255 = vmatprep.subr.bf16.mxu0 0
    %1256 = vmatpush1.bf16.msra.mxu0 0
    %1257 = vmatprep.subr.bf16.mxu0 0
    %1258 = vmatpush1.bf16.msra.mxu0 0
    %1259 = vmatprep.subr.bf16.mxu0 0
    %1260 = vmatpush1.bf16.msra.mxu0 0
    %1261 = vmatprep.subr.bf16.mxu0 0
    %1262 = vmatpush1.bf16.msra.mxu0 0
    %1263 = vmatprep.subr.bf16.mxu0 0
    %1264 = vmatpush1.bf16.msra.mxu0 0
    %1265 = vmatprep.subr.bf16.mxu0 0
    %1266 = vmatpush1.bf16.msra.mxu0 0
    %1267 = vmatprep.subr.bf16.mxu0 0
    %1268 = vmatpush1.bf16.msra.mxu0 0
    %1269 = vmatprep.subr.bf16.mxu0 0
    %1270 = vmatpush1.bf16.msra.mxu0 0
    %1271 = vmatprep.subr.bf16.mxu0 0
    %1272 = vmatpush1.bf16.msra.mxu0 0
    %1273 = vmatprep.subr.bf16.mxu0 0
    %1274 = vmatpush1.bf16.msra.mxu0 0
    %1275 = vmatprep.subr.bf16.mxu0 0
    %1276 = vmatpush1.bf16.msra.mxu0 0
    %1277 = vmatprep.subr.bf16.mxu0 0
    %1278 = vmatpush1.bf16.msra.mxu0 0
    %1279 = vmatprep.subr.bf16.mxu0 0
    %1280 = vmatpush1.bf16.msra.mxu0 0
    %1281 = vmatprep.subr.bf16.mxu0 0
    %1282 = vmatpush1.bf16.msra.mxu0 0
    %1283 = vmatprep.subr.bf16.mxu0 0
    %1284 = vmatpush1.bf16.msra.mxu0 0
    %1285 = vmatprep.mubr.bf16.mxu0 0
    %1286 = vmatmul.mubr.bf16.gmra.mrb[0].mxu0 %v1248
    %v1287 = vpop.f32.mrb[0].mxu0
    %v1288 = vadd.f32 0.0, %v1287
    %v1289 = vpop.f32.mrb[0].mxu0
    %v1290 = vpop.f32.mrb[0].mxu0
    %v1291 = vpop.f32.mrb[0].mxu0
    %1292 = vdwg.mxu0
    %v1293 = vpack.c.bf16 %v1288, %v1240
    %1295 = vrot.lane.b32.xlu0 %v1293, 16
    %v1296 = vpop.permute.xlu0 %1295
    %vm1298 = vcmask 162944
    %1299 = vst.msk [vmem:[#allocation3] sm:$0xff] %vm1298, %v1296
    %v1300 = vld [vmem:[#allocation2] sm:$0xff]
    %v1302 = vunpack.c.l.b16 %v1300
    %v1303 = vunpack.c.h.b16 %v1300
    %v1304 = vpack.c.b16 %v1302, %v1302
    %1305 = vrot.lane.b32.xlu0 %v1304, 108
    %v1306 = vpop.permute.xlu0 %1305
    %1307 = vrot.lane.b32.xlu0 %v1304, 76
    %v1308 = vpop.permute.xlu0 %1307
    %v1310 = vsel %vm149, %v1306, 0
    %v1313 = vsel %vm149, %v1308, 0
    %1315 = vmatprep.subr.bf16.mxu0 0
    %1316 = vmatpush1.bf16.xpose.msra.mxu0 %v1313
    %1317 = vmatprep.subr.bf16.mxu0 0
    %1318 = vmatpush1.bf16.xpose.msra.mxu0 0
    %1319 = vmatprep.subr.bf16.mxu0 0
    %1320 = vmatpush1.bf16.xpose.msra.mxu0 0
    %1321 = vmatprep.subr.bf16.mxu0 0
    %1322 = vmatpush1.bf16.xpose.msra.mxu0 0
    %1323 = vmatprep.subr.bf16.mxu0 0
    %1324 = vmatpush1.bf16.xpose.msra.mxu0 0
    %1325 = vmatprep.subr.bf16.mxu0 0
    %1326 = vmatpush1.bf16.xpose.msra.mxu0 0
    %1327 = vmatprep.subr.bf16.mxu0 0
    %1328 = vmatpush1.bf16.xpose.msra.mxu0 0
    %1329 = vmatprep.subr.bf16.mxu0 0
    %1330 = vmatpush1.bf16.xpose.msra.mxu0 0
    %1331 = vmatprep.subr.bf16.mxu0 0
    %1332 = vmatpush1.bf16.xpose.msra.mxu0 0
    %1333 = vmatprep.subr.bf16.mxu0 0
    %1334 = vmatpush1.bf16.xpose.msra.mxu0 0
    %1335 = vmatprep.subr.bf16.mxu0 0
    %1336 = vmatpush1.bf16.xpose.msra.mxu0 0
    %1337 = vmatprep.subr.bf16.mxu0 0
    %1338 = vmatpush1.bf16.xpose.msra.mxu0 0
    %1339 = vmatprep.subr.bf16.mxu0 0
    %1340 = vmatpush1.bf16.xpose.msra.mxu0 0
    %1341 = vmatprep.subr.bf16.mxu0 0
    %1342 = vmatpush1.bf16.xpose.msra.mxu0 0
    %1343 = vmatprep.subr.bf16.mxu0 0
    %1344 = vmatpush1.bf16.xpose.msra.mxu0 0
    %1345 = vmatprep.subr.bf16.mxu0 0
    %1346 = vmatpush1.bf16.xpose.msra.mxu0 0
    %1347 = vmatprep.mubr.bf16.mxu0 0
    %1348 = vmatmul.mubr.bf16.gmra.mrb[0].mxu0 %v1310
    %v1349 = vpop.f32.mrb[0].mxu0
    %v1350 = vadd.f32 0.0, %v1349
    %v1351 = vpop.f32.mrb[0].mxu0
    %v1352 = vpop.f32.mrb[0].mxu0
    %v1353 = vpop.f32.mrb[0].mxu0
    %1354 = vdwg.mxu0
    %v1355 = vpack.c.b16 %v1303, %v1303
    %1356 = vrot.lane.b32.xlu0 %v1355, 108
    %v1357 = vpop.permute.xlu0 %1356
    %1358 = vrot.lane.b32.xlu0 %v1355, 76
    %v1359 = vpop.permute.xlu0 %1358
    %v1361 = vsel %vm149, %v1357, 0
    %v1364 = vsel %vm149, %v1359, 0
    %1366 = vmatprep.subr.bf16.mxu0 0
    %1367 = vmatpush1.bf16.xpose.msra.mxu0 %v1364
    %1368 = vmatprep.subr.bf16.mxu0 0
    %1369 = vmatpush1.bf16.xpose.msra.mxu0 0
    %1370 = vmatprep.subr.bf16.mxu0 0
    %1371 = vmatpush1.bf16.xpose.msra.mxu0 0
    %1372 = vmatprep.subr.bf16.mxu0 0
    %1373 = vmatpush1.bf16.xpose.msra.mxu0 0
    %1374 = vmatprep.subr.bf16.mxu0 0
    %1375 = vmatpush1.bf16.xpose.msra.mxu0 0
    %1376 = vmatprep.subr.bf16.mxu0 0
    %1377 = vmatpush1.bf16.xpose.msra.mxu0 0
    %1378 = vmatprep.subr.bf16.mxu0 0
    %1379 = vmatpush1.bf16.xpose.msra.mxu0 0
    %1380 = vmatprep.subr.bf16.mxu0 0
    %1381 = vmatpush1.bf16.xpose.msra.mxu0 0
    %1382 = vmatprep.subr.bf16.mxu0 0
    %1383 = vmatpush1.bf16.xpose.msra.mxu0 0
    %1384 = vmatprep.subr.bf16.mxu0 0
    %1385 = vmatpush1.bf16.xpose.msra.mxu0 0
    %1386 = vmatprep.subr.bf16.mxu0 0
    %1387 = vmatpush1.bf16.xpose.msra.mxu0 0
    %1388 = vmatprep.subr.bf16.mxu0 0
    %1389 = vmatpush1.bf16.xpose.msra.mxu0 0
    %1390 = vmatprep.subr.bf16.mxu0 0
    %1391 = vmatpush1.bf16.xpose.msra.mxu0 0
    %1392 = vmatprep.subr.bf16.mxu0 0
    %1393 = vmatpush1.bf16.xpose.msra.mxu0 0
    %1394 = vmatprep.subr.bf16.mxu0 0
    %1395 = vmatpush1.bf16.xpose.msra.mxu0 0
    %1396 = vmatprep.subr.bf16.mxu0 0
    %1397 = vmatpush1.bf16.xpose.msra.mxu0 0
    %1398 = vmatprep.mubr.bf16.mxu0 0
    %1399 = vmatmul.mubr.bf16.gmra.mrb[0].mxu0 %v1361
    %v1400 = vpop.f32.mrb[0].mxu0
    %v1401 = vadd.f32 0.0, %v1400
    %v1402 = vpop.f32.mrb[0].mxu0
    %v1403 = vpop.f32.mrb[0].mxu0
    %v1404 = vpop.f32.mrb[0].mxu0
    %1405 = vdwg.mxu0
    %v1406 = vsel %vm244, %v1350, -inf
    %1407 = vmax.xlane.f32.xlu0 %v1406
    %v1408 = vpop.xlane.xlu0 %1407
    %v1409 = vsel %vm244, %v1401, -inf
    %1410 = vmax.xlane.f32.xlu0 %v1409
    %v1411 = vpop.xlane.xlu0 %1410
    %v1412 = vsub.f32 %v1350, %v1408
    %v1413 = vsub.f32 %v1401, %v1411
    %v1414 = vmul.f32 %v1412, 1.442695
    %v1415 = vpow.pop %v1414
    %v1416 = vmul.f32 %v1413, 1.442695
    %v1417 = vpow.pop %v1416
    %v1418 = vsel %vm244, %v1415, 0.0
    %1419 = vadd.xlane.f32.xlu0 %v1418
    %v1420 = vpop.xlane.xlu0 %1419
    %v1421 = vsel %vm244, %v1417, 0.0
    %1422 = vadd.xlane.f32.xlu0 %v1421
    %v1423 = vpop.xlane.xlu0 %1422
    %v1424 = vrcp.pop %v1420
    %v1425 = vrcp.pop %v1423
    %v1426 = vmul.f32 %v1415, %v1424
    %v1427 = vmul.f32 %v1417, %v1425
    %v1428 = vpack.c.bf16 %v1426, %v1426
    %v1429 = vpack.c.bf16 %v1427, %v1427
    %1430 = vrot.lane.b32.xlu0 %v1304, 44
    %v1431 = vpop.permute.xlu0 %1430
    %v1433 = vsel %vm244, %v1428, 0
    %v1436 = vsel %vm274, %v1431, 0
    %1438 = vmatprep.subr.bf16.mxu0 0
    %1439 = vmatpush1.bf16.msra.mxu0 %v1436
    %1440 = vmatprep.subr.bf16.mxu0 0
    %1441 = vmatpush1.bf16.msra.mxu0 0
    %1442 = vmatprep.subr.bf16.mxu0 0
    %1443 = vmatpush1.bf16.msra.mxu0 0
    %1444 = vmatprep.subr.bf16.mxu0 0
    %1445 = vmatpush1.bf16.msra.mxu0 0
    %1446 = vmatprep.subr.bf16.mxu0 0
    %1447 = vmatpush1.bf16.msra.mxu0 0
    %1448 = vmatprep.subr.bf16.mxu0 0
    %1449 = vmatpush1.bf16.msra.mxu0 0
    %1450 = vmatprep.subr.bf16.mxu0 0
    %1451 = vmatpush1.bf16.msra.mxu0 0
    %1452 = vmatprep.subr.bf16.mxu0 0
    %1453 = vmatpush1.bf16.msra.mxu0 0
    %1454 = vmatprep.subr.bf16.mxu0 0
    %1455 = vmatpush1.bf16.msra.mxu0 0
    %1456 = vmatprep.subr.bf16.mxu0 0
    %1457 = vmatpush1.bf16.msra.mxu0 0
    %1458 = vmatprep.subr.bf16.mxu0 0
    %1459 = vmatpush1.bf16.msra.mxu0 0
    %1460 = vmatprep.subr.bf16.mxu0 0
    %1461 = vmatpush1.bf16.msra.mxu0 0
    %1462 = vmatprep.subr.bf16.mxu0 0
    %1463 = vmatpush1.bf16.msra.mxu0 0
    %1464 = vmatprep.subr.bf16.mxu0 0
    %1465 = vmatpush1.bf16.msra.mxu0 0
    %1466 = vmatprep.subr.bf16.mxu0 0
    %1467 = vmatpush1.bf16.msra.mxu0 0
    %1468 = vmatprep.subr.bf16.mxu0 0
    %1469 = vmatpush1.bf16.msra.mxu0 0
    %1470 = vmatprep.mubr.bf16.mxu0 0
    %1471 = vmatmul.mubr.bf16.gmra.mrb[0].mxu0 %v1433
    %v1472 = vpop.f32.mrb[0].mxu0
    %v1473 = vadd.f32 0.0, %v1472
    %v1474 = vpop.f32.mrb[0].mxu0
    %v1475 = vpop.f32.mrb[0].mxu0
    %v1476 = vpop.f32.mrb[0].mxu0
    %1477 = vdwg.mxu0
    %1478 = vrot.lane.b32.xlu0 %v1355, 44
    %v1479 = vpop.permute.xlu0 %1478
    %v1481 = vsel %vm244, %v1429, 0
    %v1484 = vsel %vm274, %v1479, 0
    %1486 = vmatprep.subr.bf16.mxu0 0
    %1487 = vmatpush1.bf16.msra.mxu0 %v1484
    %1488 = vmatprep.subr.bf16.mxu0 0
    %1489 = vmatpush1.bf16.msra.mxu0 0
    %1490 = vmatprep.subr.bf16.mxu0 0
    %1491 = vmatpush1.bf16.msra.mxu0 0
    %1492 = vmatprep.subr.bf16.mxu0 0
    %1493 = vmatpush1.bf16.msra.mxu0 0
    %1494 = vmatprep.subr.bf16.mxu0 0
    %1495 = vmatpush1.bf16.msra.mxu0 0
    %1496 = vmatprep.subr.bf16.mxu0 0
    %1497 = vmatpush1.bf16.msra.mxu0 0
    %1498 = vmatprep.subr.bf16.mxu0 0
    %1499 = vmatpush1.bf16.msra.mxu0 0
    %1500 = vmatprep.subr.bf16.mxu0 0
    %1501 = vmatpush1.bf16.msra.mxu0 0
    %1502 = vmatprep.subr.bf16.mxu0 0
    %1503 = vmatpush1.bf16.msra.mxu0 0
    %1504 = vmatprep.subr.bf16.mxu0 0
    %1505 = vmatpush1.bf16.msra.mxu0 0
    %1506 = vmatprep.subr.bf16.mxu0 0
    %1507 = vmatpush1.bf16.msra.mxu0 0
    %1508 = vmatprep.subr.bf16.mxu0 0
    %1509 = vmatpush1.bf16.msra.mxu0 0
    %1510 = vmatprep.subr.bf16.mxu0 0
    %1511 = vmatpush1.bf16.msra.mxu0 0
    %1512 = vmatprep.subr.bf16.mxu0 0
    %1513 = vmatpush1.bf16.msra.mxu0 0
    %1514 = vmatprep.subr.bf16.mxu0 0
    %1515 = vmatpush1.bf16.msra.mxu0 0
    %1516 = vmatprep.subr.bf16.mxu0 0
    %1517 = vmatpush1.bf16.msra.mxu0 0
    %1518 = vmatprep.mubr.bf16.mxu0 0
    %1519 = vmatmul.mubr.bf16.gmra.mrb[0].mxu0 %v1481
    %v1520 = vpop.f32.mrb[0].mxu0
    %v1521 = vadd.f32 0.0, %v1520
    %v1522 = vpop.f32.mrb[0].mxu0
    %v1523 = vpop.f32.mrb[0].mxu0
    %v1524 = vpop.f32.mrb[0].mxu0
    %1525 = vdwg.mxu0
    %v1526 = vpack.c.bf16 %v1521, %v1473
    %1528 = vrot.lane.b32.xlu0 %v1526, 20
    %v1529 = vpop.permute.xlu0 %1528
    %vm1531 = vcmask 195744
    %1532 = vst.msk [vmem:[#allocation3] sm:$0xff] %vm1531, %v1529
    %v1533 = vld [vmem:[#allocation2] sm:$0xff]
    %v1535 = vunpack.c.l.b16 %v1533
    %v1536 = vunpack.c.h.b16 %v1533
    %v1537 = vpack.c.b16 %v1535, %v1535
    %1538 = vrot.lane.b32.xlu0 %v1537, 104
    %v1539 = vpop.permute.xlu0 %1538
    %1540 = vrot.lane.b32.xlu0 %v1537, 72
    %v1541 = vpop.permute.xlu0 %1540
    %v1543 = vsel %vm149, %v1539, 0
    %v1546 = vsel %vm149, %v1541, 0
    %1548 = vmatprep.subr.bf16.mxu0 0
    %1549 = vmatpush1.bf16.xpose.msra.mxu0 %v1546
    %1550 = vmatprep.subr.bf16.mxu0 0
    %1551 = vmatpush1.bf16.xpose.msra.mxu0 0
    %1552 = vmatprep.subr.bf16.mxu0 0
    %1553 = vmatpush1.bf16.xpose.msra.mxu0 0
    %1554 = vmatprep.subr.bf16.mxu0 0
    %1555 = vmatpush1.bf16.xpose.msra.mxu0 0
    %1556 = vmatprep.subr.bf16.mxu0 0
    %1557 = vmatpush1.bf16.xpose.msra.mxu0 0
    %1558 = vmatprep.subr.bf16.mxu0 0
    %1559 = vmatpush1.bf16.xpose.msra.mxu0 0
    %1560 = vmatprep.subr.bf16.mxu0 0
    %1561 = vmatpush1.bf16.xpose.msra.mxu0 0
    %1562 = vmatprep.subr.bf16.mxu0 0
    %1563 = vmatpush1.bf16.xpose.msra.mxu0 0
    %1564 = vmatprep.subr.bf16.mxu0 0
    %1565 = vmatpush1.bf16.xpose.msra.mxu0 0
    %1566 = vmatprep.subr.bf16.mxu0 0
    %1567 = vmatpush1.bf16.xpose.msra.mxu0 0
    %1568 = vmatprep.subr.bf16.mxu0 0
    %1569 = vmatpush1.bf16.xpose.msra.mxu0 0
    %1570 = vmatprep.subr.bf16.mxu0 0
    %1571 = vmatpush1.bf16.xpose.msra.mxu0 0
    %1572 = vmatprep.subr.bf16.mxu0 0
    %1573 = vmatpush1.bf16.xpose.msra.mxu0 0
    %1574 = vmatprep.subr.bf16.mxu0 0
    %1575 = vmatpush1.bf16.xpose.msra.mxu0 0
    %1576 = vmatprep.subr.bf16.mxu0 0
    %1577 = vmatpush1.bf16.xpose.msra.mxu0 0
    %1578 = vmatprep.subr.bf16.mxu0 0
    %1579 = vmatpush1.bf16.xpose.msra.mxu0 0
    %1580 = vmatprep.mubr.bf16.mxu0 0
    %1581 = vmatmul.mubr.bf16.gmra.mrb[0].mxu0 %v1543
    %v1582 = vpop.f32.mrb[0].mxu0
    %v1583 = vadd.f32 0.0, %v1582
    %v1584 = vpop.f32.mrb[0].mxu0
    %v1585 = vpop.f32.mrb[0].mxu0
    %v1586 = vpop.f32.mrb[0].mxu0
    %1587 = vdwg.mxu0
    %v1588 = vpack.c.b16 %v1536, %v1536
    %1589 = vrot.lane.b32.xlu0 %v1588, 104
    %v1590 = vpop.permute.xlu0 %1589
    %1591 = vrot.lane.b32.xlu0 %v1588, 72
    %v1592 = vpop.permute.xlu0 %1591
    %v1594 = vsel %vm149, %v1590, 0
    %v1597 = vsel %vm149, %v1592, 0
    %1599 = vmatprep.subr.bf16.mxu0 0
    %1600 = vmatpush1.bf16.xpose.msra.mxu0 %v1597
    %1601 = vmatprep.subr.bf16.mxu0 0
    %1602 = vmatpush1.bf16.xpose.msra.mxu0 0
    %1603 = vmatprep.subr.bf16.mxu0 0
    %1604 = vmatpush1.bf16.xpose.msra.mxu0 0
    %1605 = vmatprep.subr.bf16.mxu0 0
    %1606 = vmatpush1.bf16.xpose.msra.mxu0 0
    %1607 = vmatprep.subr.bf16.mxu0 0
    %1608 = vmatpush1.bf16.xpose.msra.mxu0 0
    %1609 = vmatprep.subr.bf16.mxu0 0
    %1610 = vmatpush1.bf16.xpose.msra.mxu0 0
    %1611 = vmatprep.subr.bf16.mxu0 0
    %1612 = vmatpush1.bf16.xpose.msra.mxu0 0
    %1613 = vmatprep.subr.bf16.mxu0 0
    %1614 = vmatpush1.bf16.xpose.msra.mxu0 0
    %1615 = vmatprep.subr.bf16.mxu0 0
    %1616 = vmatpush1.bf16.xpose.msra.mxu0 0
    %1617 = vmatprep.subr.bf16.mxu0 0
    %1618 = vmatpush1.bf16.xpose.msra.mxu0 0
    %1619 = vmatprep.subr.bf16.mxu0 0
    %1620 = vmatpush1.bf16.xpose.msra.mxu0 0
    %1621 = vmatprep.subr.bf16.mxu0 0
    %1622 = vmatpush1.bf16.xpose.msra.mxu0 0
    %1623 = vmatprep.subr.bf16.mxu0 0
    %1624 = vmatpush1.bf16.xpose.msra.mxu0 0
    %1625 = vmatprep.subr.bf16.mxu0 0
    %1626 = vmatpush1.bf16.xpose.msra.mxu0 0
    %1627 = vmatprep.subr.bf16.mxu0 0
    %1628 = vmatpush1.bf16.xpose.msra.mxu0 0
    %1629 = vmatprep.subr.bf16.mxu0 0
    %1630 = vmatpush1.bf16.xpose.msra.mxu0 0
    %1631 = vmatprep.mubr.bf16.mxu0 0
    %1632 = vmatmul.mubr.bf16.gmra.mrb[0].mxu0 %v1594
    %v1633 = vpop.f32.mrb[0].mxu0
    %v1634 = vadd.f32 0.0, %v1633
    %v1635 = vpop.f32.mrb[0].mxu0
    %v1636 = vpop.f32.mrb[0].mxu0
    %v1637 = vpop.f32.mrb[0].mxu0
    %1638 = vdwg.mxu0
    %v1639 = vsel %vm244, %v1583, -inf
    %1640 = vmax.xlane.f32.xlu0 %v1639
    %v1641 = vpop.xlane.xlu0 %1640
    %v1642 = vsel %vm244, %v1634, -inf
    %1643 = vmax.xlane.f32.xlu0 %v1642
    %v1644 = vpop.xlane.xlu0 %1643
    %v1645 = vsub.f32 %v1583, %v1641
    %v1646 = vsub.f32 %v1634, %v1644
    %v1647 = vmul.f32 %v1645, 1.442695
    %v1648 = vpow.pop %v1647
    %v1649 = vmul.f32 %v1646, 1.442695
    %v1650 = vpow.pop %v1649
    %v1651 = vsel %vm244, %v1648, 0.0
    %1652 = vadd.xlane.f32.xlu0 %v1651
    %v1653 = vpop.xlane.xlu0 %1652
    %v1654 = vsel %vm244, %v1650, 0.0
    %1655 = vadd.xlane.f32.xlu0 %v1654
    %v1656 = vpop.xlane.xlu0 %1655
    %v1657 = vrcp.pop %v1653
    %v1658 = vrcp.pop %v1656
    %v1659 = vmul.f32 %v1648, %v1657
    %v1660 = vmul.f32 %v1650, %v1658
    %v1661 = vpack.c.bf16 %v1659, %v1659
    %v1662 = vpack.c.bf16 %v1660, %v1660
    %1663 = vrot.lane.b32.xlu0 %v1537, 40
    %v1664 = vpop.permute.xlu0 %1663
    %v1666 = vsel %vm244, %v1661, 0
    %v1669 = vsel %vm274, %v1664, 0
    %1671 = vmatprep.subr.bf16.mxu0 0
    %1672 = vmatpush1.bf16.msra.mxu0 %v1669
    %1673 = vmatprep.subr.bf16.mxu0 0
    %1674 = vmatpush1.bf16.msra.mxu0 0
    %1675 = vmatprep.subr.bf16.mxu0 0
    %1676 = vmatpush1.bf16.msra.mxu0 0
    %1677 = vmatprep.subr.bf16.mxu0 0
    %1678 = vmatpush1.bf16.msra.mxu0 0
    %1679 = vmatprep.subr.bf16.mxu0 0
    %1680 = vmatpush1.bf16.msra.mxu0 0
    %1681 = vmatprep.subr.bf16.mxu0 0
    %1682 = vmatpush1.bf16.msra.mxu0 0
    %1683 = vmatprep.subr.bf16.mxu0 0
    %1684 = vmatpush1.bf16.msra.mxu0 0
    %1685 = vmatprep.subr.bf16.mxu0 0
    %1686 = vmatpush1.bf16.msra.mxu0 0
    %1687 = vmatprep.subr.bf16.mxu0 0
    %1688 = vmatpush1.bf16.msra.mxu0 0
    %1689 = vmatprep.subr.bf16.mxu0 0
    %1690 = vmatpush1.bf16.msra.mxu0 0
    %1691 = vmatprep.subr.bf16.mxu0 0
    %1692 = vmatpush1.bf16.msra.mxu0 0
    %1693 = vmatprep.subr.bf16.mxu0 0
    %1694 = vmatpush1.bf16.msra.mxu0 0
    %1695 = vmatprep.subr.bf16.mxu0 0
    %1696 = vmatpush1.bf16.msra.mxu0 0
    %1697 = vmatprep.subr.bf16.mxu0 0
    %1698 = vmatpush1.bf16.msra.mxu0 0
    %1699 = vmatprep.subr.bf16.mxu0 0
    %1700 = vmatpush1.bf16.msra.mxu0 0
    %1701 = vmatprep.subr.bf16.mxu0 0
    %1702 = vmatpush1.bf16.msra.mxu0 0
    %1703 = vmatprep.mubr.bf16.mxu0 0
    %1704 = vmatmul.mubr.bf16.gmra.mrb[0].mxu0 %v1666
    %v1705 = vpop.f32.mrb[0].mxu0
    %v1706 = vadd.f32 0.0, %v1705
    %v1707 = vpop.f32.mrb[0].mxu0
    %v1708 = vpop.f32.mrb[0].mxu0
    %v1709 = vpop.f32.mrb[0].mxu0
    %1710 = vdwg.mxu0
    %1711 = vrot.lane.b32.xlu0 %v1588, 40
    %v1712 = vpop.permute.xlu0 %1711
    %v1714 = vsel %vm244, %v1662, 0
    %v1717 = vsel %vm274, %v1712, 0
    %1719 = vmatprep.subr.bf16.mxu0 0
    %1720 = vmatpush1.bf16.msra.mxu0 %v1717
    %1721 = vmatprep.subr.bf16.mxu0 0
    %1722 = vmatpush1.bf16.msra.mxu0 0
    %1723 = vmatprep.subr.bf16.mxu0 0
    %1724 = vmatpush1.bf16.msra.mxu0 0
    %1725 = vmatprep.subr.bf16.mxu0 0
    %1726 = vmatpush1.bf16.msra.mxu0 0
    %1727 = vmatprep.subr.bf16.mxu0 0
    %1728 = vmatpush1.bf16.msra.mxu0 0
    %1729 = vmatprep.subr.bf16.mxu0 0
    %1730 = vmatpush1.bf16.msra.mxu0 0
    %1731 = vmatprep.subr.bf16.mxu0 0
    %1732 = vmatpush1.bf16.msra.mxu0 0
    %1733 = vmatprep.subr.bf16.mxu0 0
    %1734 = vmatpush1.bf16.msra.mxu0 0
    %1735 = vmatprep.subr.bf16.mxu0 0
    %1736 = vmatpush1.bf16.msra.mxu0 0
    %1737 = vmatprep.subr.bf16.mxu0 0
    %1738 = vmatpush1.bf16.msra.mxu0 0
    %1739 = vmatprep.subr.bf16.mxu0 0
    %1740 = vmatpush1.bf16.msra.mxu0 0
    %1741 = vmatprep.subr.bf16.mxu0 0
    %1742 = vmatpush1.bf16.msra.mxu0 0
    %1743 = vmatprep.subr.bf16.mxu0 0
    %1744 = vmatpush1.bf16.msra.mxu0 0
    %1745 = vmatprep.subr.bf16.mxu0 0
    %1746 = vmatpush1.bf16.msra.mxu0 0
    %1747 = vmatprep.subr.bf16.mxu0 0
    %1748 = vmatpush1.bf16.msra.mxu0 0
    %1749 = vmatprep.subr.bf16.mxu0 0
    %1750 = vmatpush1.bf16.msra.mxu0 0
    %1751 = vmatprep.mubr.bf16.mxu0 0
    %1752 = vmatmul.mubr.bf16.gmra.mrb[0].mxu0 %v1714
    %v1753 = vpop.f32.mrb[0].mxu0
    %v1754 = vadd.f32 0.0, %v1753
    %v1755 = vpop.f32.mrb[0].mxu0
    %v1756 = vpop.f32.mrb[0].mxu0
    %v1757 = vpop.f32.mrb[0].mxu0
    %1758 = vdwg.mxu0
    %v1759 = vpack.c.bf16 %v1754, %v1706
    %1761 = vrot.lane.b32.xlu0 %v1759, 24
    %v1762 = vpop.permute.xlu0 %1761
    %vm1764 = vcmask 228544
    %1765 = vst.msk [vmem:[#allocation3] sm:$0xff] %vm1764, %v1762
    %v1766 = vld [vmem:[#allocation2] sm:$0xff]
    %v1768 = vunpack.c.l.b16 %v1766
    %v1769 = vunpack.c.h.b16 %v1766
    %v1770 = vpack.c.b16 %v1768, %v1768
    %1771 = vrot.lane.b32.xlu0 %v1770, 100
    %v1772 = vpop.permute.xlu0 %1771
    %1773 = vrot.lane.b32.xlu0 %v1770, 68
    %v1774 = vpop.permute.xlu0 %1773
    %v1776 = vsel %vm149, %v1772, 0
    %v1779 = vsel %vm149, %v1774, 0
    %1781 = vmatprep.subr.bf16.mxu0 0
    %1782 = vmatpush1.bf16.xpose.msra.mxu0 %v1779
    %1783 = vmatprep.subr.bf16.mxu0 0
    %1784 = vmatpush1.bf16.xpose.msra.mxu0 0
    %1785 = vmatprep.subr.bf16.mxu0 0
    %1786 = vmatpush1.bf16.xpose.msra.mxu0 0
    %1787 = vmatprep.subr.bf16.mxu0 0
    %1788 = vmatpush1.bf16.xpose.msra.mxu0 0
    %1789 = vmatprep.subr.bf16.mxu0 0
    %1790 = vmatpush1.bf16.xpose.msra.mxu0 0
    %1791 = vmatprep.subr.bf16.mxu0 0
    %1792 = vmatpush1.bf16.xpose.msra.mxu0 0
    %1793 = vmatprep.subr.bf16.mxu0 0
    %1794 = vmatpush1.bf16.xpose.msra.mxu0 0
    %1795 = vmatprep.subr.bf16.mxu0 0
    %1796 = vmatpush1.bf16.xpose.msra.mxu0 0
    %1797 = vmatprep.subr.bf16.mxu0 0
    %1798 = vmatpush1.bf16.xpose.msra.mxu0 0
    %1799 = vmatprep.subr.bf16.mxu0 0
    %1800 = vmatpush1.bf16.xpose.msra.mxu0 0
    %1801 = vmatprep.subr.bf16.mxu0 0
    %1802 = vmatpush1.bf16.xpose.msra.mxu0 0
    %1803 = vmatprep.subr.bf16.mxu0 0
    %1804 = vmatpush1.bf16.xpose.msra.mxu0 0
    %1805 = vmatprep.subr.bf16.mxu0 0
    %1806 = vmatpush1.bf16.xpose.msra.mxu0 0
    %1807 = vmatprep.subr.bf16.mxu0 0
    %1808 = vmatpush1.bf16.xpose.msra.mxu0 0
    %1809 = vmatprep.subr.bf16.mxu0 0
    %1810 = vmatpush1.bf16.xpose.msra.mxu0 0
    %1811 = vmatprep.subr.bf16.mxu0 0
    %1812 = vmatpush1.bf16.xpose.msra.mxu0 0
    %1813 = vmatprep.mubr.bf16.mxu0 0
    %1814 = vmatmul.mubr.bf16.gmra.mrb[0].mxu0 %v1776
    %v1815 = vpop.f32.mrb[0].mxu0
    %v1816 = vadd.f32 0.0, %v1815
    %v1817 = vpop.f32.mrb[0].mxu0
    %v1818 = vpop.f32.mrb[0].mxu0
    %v1819 = vpop.f32.mrb[0].mxu0
    %1820 = vdwg.mxu0
    %v1821 = vpack.c.b16 %v1769, %v1769
    %1822 = vrot.lane.b32.xlu0 %v1821, 100
    %v1823 = vpop.permute.xlu0 %1822
    %1824 = vrot.lane.b32.xlu0 %v1821, 68
    %v1825 = vpop.permute.xlu0 %1824
    %v1827 = vsel %vm149, %v1823, 0
    %v1830 = vsel %vm149, %v1825, 0
    %1832 = vmatprep.subr.bf16.mxu0 0
    %1833 = vmatpush1.bf16.xpose.msra.mxu0 %v1830
    %1834 = vmatprep.subr.bf16.mxu0 0
    %1835 = vmatpush1.bf16.xpose.msra.mxu0 0
    %1836 = vmatprep.subr.bf16.mxu0 0
    %1837 = vmatpush1.bf16.xpose.msra.mxu0 0
    %1838 = vmatprep.subr.bf16.mxu0 0
    %1839 = vmatpush1.bf16.xpose.msra.mxu0 0
    %1840 = vmatprep.subr.bf16.mxu0 0
    %1841 = vmatpush1.bf16.xpose.msra.mxu0 0
    %1842 = vmatprep.subr.bf16.mxu0 0
    %1843 = vmatpush1.bf16.xpose.msra.mxu0 0
    %1844 = vmatprep.subr.bf16.mxu0 0
    %1845 = vmatpush1.bf16.xpose.msra.mxu0 0
    %1846 = vmatprep.subr.bf16.mxu0 0
    %1847 = vmatpush1.bf16.xpose.msra.mxu0 0
    %1848 = vmatprep.subr.bf16.mxu0 0
    %1849 = vmatpush1.bf16.xpose.msra.mxu0 0
    %1850 = vmatprep.subr.bf16.mxu0 0
    %1851 = vmatpush1.bf16.xpose.msra.mxu0 0
    %1852 = vmatprep.subr.bf16.mxu0 0
    %1853 = vmatpush1.bf16.xpose.msra.mxu0 0
    %1854 = vmatprep.subr.bf16.mxu0 0
    %1855 = vmatpush1.bf16.xpose.msra.mxu0 0
    %1856 = vmatprep.subr.bf16.mxu0 0
    %1857 = vmatpush1.bf16.xpose.msra.mxu0 0
    %1858 = vmatprep.subr.bf16.mxu0 0
    %1859 = vmatpush1.bf16.xpose.msra.mxu0 0
    %1860 = vmatprep.subr.bf16.mxu0 0
    %1861 = vmatpush1.bf16.xpose.msra.mxu0 0
    %1862 = vmatprep.subr.bf16.mxu0 0
    %1863 = vmatpush1.bf16.xpose.msra.mxu0 0
    %1864 = vmatprep.mubr.bf16.mxu0 0
    %1865 = vmatmul.mubr.bf16.gmra.mrb[0].mxu0 %v1827
    %v1866 = vpop.f32.mrb[0].mxu0
    %v1867 = vadd.f32 0.0, %v1866
    %v1868 = vpop.f32.mrb[0].mxu0
    %v1869 = vpop.f32.mrb[0].mxu0
    %v1870 = vpop.f32.mrb[0].mxu0
    %1871 = vdwg.mxu0
    %v1872 = vsel %vm244, %v1816, -inf
    %1873 = vmax.xlane.f32.xlu0 %v1872
    %v1874 = vpop.xlane.xlu0 %1873
    %v1875 = vsel %vm244, %v1867, -inf
    %1876 = vmax.xlane.f32.xlu0 %v1875
    %v1877 = vpop.xlane.xlu0 %1876
    %v1878 = vsub.f32 %v1816, %v1874
    %v1879 = vsub.f32 %v1867, %v1877
    %v1880 = vmul.f32 %v1878, 1.442695
    %v1881 = vpow.pop %v1880
    %v1882 = vmul.f32 %v1879, 1.442695
    %v1883 = vpow.pop %v1882
    %v1884 = vsel %vm244, %v1881, 0.0
    %1885 = vadd.xlane.f32.xlu0 %v1884
    %v1886 = vpop.xlane.xlu0 %1885
    %v1887 = vsel %vm244, %v1883, 0.0
    %1888 = vadd.xlane.f32.xlu0 %v1887
    %v1889 = vpop.xlane.xlu0 %1888
    %v1890 = vrcp.pop %v1886
    %v1891 = vrcp.pop %v1889
    %v1892 = vmul.f32 %v1881, %v1890
    %v1893 = vmul.f32 %v1883, %v1891
    %v1894 = vpack.c.bf16 %v1892, %v1892
    %v1895 = vpack.c.bf16 %v1893, %v1893
    %1896 = vrot.lane.b32.xlu0 %v1770, 36
    %v1897 = vpop.permute.xlu0 %1896
    %v1899 = vsel %vm244, %v1894, 0
    %v1902 = vsel %vm274, %v1897, 0
    %1904 = vmatprep.subr.bf16.mxu0 0
    %1905 = vmatpush1.bf16.msra.mxu0 %v1902
    %1906 = vmatprep.subr.bf16.mxu0 0
    %1907 = vmatpush1.bf16.msra.mxu0 0
    %1908 = vmatprep.subr.bf16.mxu0 0
    %1909 = vmatpush1.bf16.msra.mxu0 0
    %1910 = vmatprep.subr.bf16.mxu0 0
    %1911 = vmatpush1.bf16.msra.mxu0 0
    %1912 = vmatprep.subr.bf16.mxu0 0
    %1913 = vmatpush1.bf16.msra.mxu0 0
    %1914 = vmatprep.subr.bf16.mxu0 0
    %1915 = vmatpush1.bf16.msra.mxu0 0
    %1916 = vmatprep.subr.bf16.mxu0 0
    %1917 = vmatpush1.bf16.msra.mxu0 0
    %1918 = vmatprep.subr.bf16.mxu0 0
    %1919 = vmatpush1.bf16.msra.mxu0 0
    %1920 = vmatprep.subr.bf16.mxu0 0
    %1921 = vmatpush1.bf16.msra.mxu0 0
    %1922 = vmatprep.subr.bf16.mxu0 0
    %1923 = vmatpush1.bf16.msra.mxu0 0
    %1924 = vmatprep.subr.bf16.mxu0 0
    %1925 = vmatpush1.bf16.msra.mxu0 0
    %1926 = vmatprep.subr.bf16.mxu0 0
    %1927 = vmatpush1.bf16.msra.mxu0 0
    %1928 = vmatprep.subr.bf16.mxu0 0
    %1929 = vmatpush1.bf16.msra.mxu0 0
    %1930 = vmatprep.subr.bf16.mxu0 0
    %1931 = vmatpush1.bf16.msra.mxu0 0
    %1932 = vmatprep.subr.bf16.mxu0 0
    %1933 = vmatpush1.bf16.msra.mxu0 0
    %1934 = vmatprep.subr.bf16.mxu0 0
    %1935 = vmatpush1.bf16.msra.mxu0 0
    %1936 = vmatprep.mubr.bf16.mxu0 0
    %1937 = vmatmul.mubr.bf16.gmra.mrb[0].mxu0 %v1899
    %v1938 = vpop.f32.mrb[0].mxu0
    %v1939 = vadd.f32 0.0, %v1938
    %v1940 = vpop.f32.mrb[0].mxu0
    %v1941 = vpop.f32.mrb[0].mxu0
    %v1942 = vpop.f32.mrb[0].mxu0
    %1943 = vdwg.mxu0
    %1944 = vrot.lane.b32.xlu0 %v1821, 36
    %v1945 = vpop.permute.xlu0 %1944
    %v1947 = vsel %vm244, %v1895, 0
    %v1950 = vsel %vm274, %v1945, 0
    %1952 = vmatprep.subr.bf16.mxu0 0
    %1953 = vmatpush1.bf16.msra.mxu0 %v1950
    %1954 = vmatprep.subr.bf16.mxu0 0
    %1955 = vmatpush1.bf16.msra.mxu0 0
    %1956 = vmatprep.subr.bf16.mxu0 0
    %1957 = vmatpush1.bf16.msra.mxu0 0
    %1958 = vmatprep.subr.bf16.mxu0 0
    %1959 = vmatpush1.bf16.msra.mxu0 0
    %1960 = vmatprep.subr.bf16.mxu0 0
    %1961 = vmatpush1.bf16.msra.mxu0 0
    %1962 = vmatprep.subr.bf16.mxu0 0
    %1963 = vmatpush1.bf16.msra.mxu0 0
    %1964 = vmatprep.subr.bf16.mxu0 0
    %1965 = vmatpush1.bf16.msra.mxu0 0
    %1966 = vmatprep.subr.bf16.mxu0 0
    %1967 = vmatpush1.bf16.msra.mxu0 0
    %1968 = vmatprep.subr.bf16.mxu0 0
    %1969 = vmatpush1.bf16.msra.mxu0 0
    %1970 = vmatprep.subr.bf16.mxu0 0
    %1971 = vmatpush1.bf16.msra.mxu0 0
    %1972 = vmatprep.subr.bf16.mxu0 0
    %1973 = vmatpush1.bf16.msra.mxu0 0
    %1974 = vmatprep.subr.bf16.mxu0 0
    %1975 = vmatpush1.bf16.msra.mxu0 0
    %1976 = vmatprep.subr.bf16.mxu0 0
    %1977 = vmatpush1.bf16.msra.mxu0 0
    %1978 = vmatprep.subr.bf16.mxu0 0
    %1979 = vmatpush1.bf16.msra.mxu0 0
    %1980 = vmatprep.subr.bf16.mxu0 0
    %1981 = vmatpush1.bf16.msra.mxu0 0
    %1982 = vmatprep.subr.bf16.mxu0 0
    %1983 = vmatpush1.bf16.msra.mxu0 0
    %1984 = vmatprep.mubr.bf16.mxu0 0
    %1985 = vmatmul.mubr.bf16.gmra.mrb[0].mxu0 %v1947
    %v1986 = vpop.f32.mrb[0].mxu0
    %v1987 = vadd.f32 0.0, %v1986
    %v1988 = vpop.f32.mrb[0].mxu0
    %v1989 = vpop.f32.mrb[0].mxu0
    %v1990 = vpop.f32.mrb[0].mxu0
    %1991 = vdwg.mxu0
    %v1992 = vpack.c.bf16 %v1987, %v1939
    %1994 = vrot.lane.b32.xlu0 %v1992, 28
    %v1995 = vpop.permute.xlu0 %1994
    %vm1997 = vcmask 261344
    %1998 = vst.msk [vmem:[#allocation3] sm:$0xff] %vm1997, %v1995
    %v1999 = vld [vmem:[#allocation3] sm:$0xff]
    %v2000 = vld [vmem:[#allocation9] sm:$0xf]
    %v2001 = vld [vmem:[#allocation9 + $0x4] sm:$0xf]
    %v2002 = vld [vmem:[#allocation9 + $0x8] sm:$0xf]
    %v2003 = vld [vmem:[#allocation9 + $0xc] sm:$0xf]
    %v2004 = vld [vmem:[%s4] sm:$0x1]
    %v2006 = vlaneseq
    %v2007 = vshrl.u32 %v2006, 7
    %v2008 = vsub.s32 0, %v2007
    %v2009 = vrot.slane %v2004, %v2008
    %v2015 = vunpack.c.l.b16 %v2000
    %v2016 = vunpack.c.l.b16 %v2001
    %v2017 = vunpack.c.l.b16 %v2002
    %v2018 = vunpack.c.l.b16 %v2003
    %v2019 = vpack.c.b16 %v2016, %v2015
    %v2020 = vpack.c.b16 %v2018, %v2017
    %v2024 = vsel %vm93, %v1999, 0
    %2026 = vmatprep.subr.bf16.mxu0 0
    %2027 = vmatpush1.bf16.msra.mxu0 %v2019
    %2028 = vmatprep.subr.bf16.mxu0 0
    %2029 = vmatpush1.bf16.msra.mxu0 %v2020
    %2030 = vmatprep.subr.bf16.mxu0 0
    %2031 = vmatpush1.bf16.msra.mxu0 0
    %2032 = vmatprep.subr.bf16.mxu0 0
    %2033 = vmatpush1.bf16.msra.mxu0 0
    %2034 = vmatprep.subr.bf16.mxu0 0
    %2035 = vmatpush1.bf16.msra.mxu0 0
    %2036 = vmatprep.subr.bf16.mxu0 0
    %2037 = vmatpush1.bf16.msra.mxu0 0
    %2038 = vmatprep.subr.bf16.mxu0 0
    %2039 = vmatpush1.bf16.msra.mxu0 0
    %2040 = vmatprep.subr.bf16.mxu0 0
    %2041 = vmatpush1.bf16.msra.mxu0 0
    %2042 = vmatprep.subr.bf16.mxu0 0
    %2043 = vmatpush1.bf16.msra.mxu0 0
    %2044 = vmatprep.subr.bf16.mxu0 0
    %2045 = vmatpush1.bf16.msra.mxu0 0
    %2046 = vmatprep.subr.bf16.mxu0 0
    %2047 = vmatpush1.bf16.msra.mxu0 0
    %2048 = vmatprep.subr.bf16.mxu0 0
    %2049 = vmatpush1.bf16.msra.mxu0 0
    %2050 = vmatprep.subr.bf16.mxu0 0
    %2051 = vmatpush1.bf16.msra.mxu0 0
    %2052 = vmatprep.subr.bf16.mxu0 0
    %2053 = vmatpush1.bf16.msra.mxu0 0
    %2054 = vmatprep.subr.bf16.mxu0 0
    %2055 = vmatpush1.bf16.msra.mxu0 0
    %2056 = vmatprep.subr.bf16.mxu0 0
    %2057 = vmatpush1.bf16.msra.mxu0 0
    %2058 = vmatprep.mubr.bf16.mxu0 0
    %2059 = vmatmul.mubr.bf16.gmra.mrb[0].mxu0 %v2024
    %v2060 = vpop.f32.mrb[0].mxu0
    %v2061 = vadd.f32 %v2009, %v2060
    %v2062 = vpop.f32.mrb[0].mxu0
    %v2063 = vpop.f32.mrb[0].mxu0
    %v2064 = vadd.f32 %v2009, %v2063
    %v2065 = vpop.f32.mrb[0].mxu0
    %2066 = vdwg.mxu0
    %2067 = vst.msk [vmem:[#allocation10] sm:$0xff] %vm93, %v2061
    %2068 = vst.msk [vmem:[#allocation10 + $0x8] sm:$0xff] %vm93, %v2064
    // Predicated region
    $region34: #{tpu_custom_call.1} parent=1 // pred_check
      _
    $region35: #{tpu_custom_call.1} parent=1 // pred_check_branch
      %2070 = sbr.rel (0) target = $region37
    $region36: #{tpu_custom_call.1} parent=1 // pred_region
      %s2072 = ssub.s32 256, 256
      %2073 = vsyncadd [#allocation6], %s2072
      %s2074 = sshll.u32 [#allocation10], 4
      %s2075 = int_to_ptr.vmem [resolvable:$true] %s2074
      %2080 = dma.vmem_to_hbm [thread:$0]  %s2075, 256, %s5, [#allocation6], 128, 128, 8
    $region37: #{tpu_custom_call.1} parent=1 // pred_fallthru
      _
    // Predicated region
    $region38: #{tpu_custom_call.1} parent=1 // pred_check
      _
    $region39: #{tpu_custom_call.1} parent=1 // pred_check_branch
      %2082 = sbr.rel (0) target = $region41
    $region40: #{tpu_custom_call.1} parent=1 // pred_region
      %2083 = dma.done [#allocation6], 256
    $region41: #{tpu_custom_call.1} parent=1 // pred_fallthru
      _
    %2084 = vsyncpa [#allocation5], 1
    %2085 = vsyncpa [#allocation8], 1
    %2086 = vsyncpa [#allocation6], 1

// kernel: tpu_custom_call.1
$region0: #{tpu_custom_call.1}
  #allocation0 [shape = 'u32[]', space=smem, size = 0x4, offset = 0x4, fixed_abs, tag = 'smem constant byte address 0x4 - core index']
  #allocation1 [shape = 'u32[144,128]{1,0:T(1,128)}', space=vmem, size = 0x12000, scoped, tag = 'internal scratch']
  #allocation2 [shape = 'bf16[16,96]{1,0:T(16,128)(2,1)}', space=vmem, size = 0x1000, scoped, tag = 'scratch operand']
  #allocation3 [shape = 'bf16[16,32]{1,0:T(16,128)(2,1)}', space=vmem, size = 0x1000, scoped, tag = 'scratch operand']
  %s0 = inlined_call_operand.hbm [shape: bf16[2,8,32], index: 0, kind: input, shape index: {}]
  %s1 = inlined_call_operand.hbm [shape: bf16[32,96], index: 1, kind: input, shape index: {}]
  %s2 = inlined_call_operand.vmem [shape: f32[1,96], index: 2, kind: input, shape index: {}]
  %s3 = inlined_call_operand.hbm [shape: bf16[32,32], index: 3, kind: input, shape index: {}]
  %s4 = inlined_call_operand.vmem [shape: f32[1,32], index: 4, kind: input, shape index: {}]
  %s5 = inlined_call_operand.hbm [shape: f32[2,8,32], index: 5, kind: output, shape index: {}]
  %s6 = sld [smem:[#allocation0]]
  $region42: #{tpu_custom_call.1} parent=0
    _
  %s8 = ssub.s32 1, %s6
  %s9 = scalar_select 0, %s8, %s6
  $region1: #{tpu_custom_call.1} parent=0
    #allocation4 [shape = 'u8[4096]{0}', space=vmem, size = 0x1000, scoped, tag = 'input window, operand 0, single buffered']
    #allocation5 [shape = 's32[1]{0}', space=sflag, size = 0x4, scoped, tag = 'scoped memory for tpu_custom_call.1']
    #allocation6 [shape = 's32[1]{0}', space=sflag, size = 0x4, scoped, tag = 'scoped memory for tpu_custom_call.1']
    #allocation7 [shape = 'u8[8192]{0}', space=vmem, size = 0x2000, scoped, tag = 'input window, operand 1, single buffered']
    #allocation8 [shape = 's32[1]{0}', space=sflag, size = 0x4, scoped, tag = 'scoped memory for tpu_custom_call.1']
    #allocation9 [shape = 'u8[8192]{0}', space=vmem, size = 0x2000, scoped, tag = 'input window, operand 3, single buffered']
    #allocation10 [shape = 'u8[8192]{0}', space=vmem, size = 0x2000, scoped, tag = 'output window, operand 0, single buffered']
    %10 = vsyncpa [#allocation5], 0
    %11 = vsyncpa [#allocation8], 0
    %12 = vsyncpa [#allocation6], 0
    // Predicated region
    $region2: #{tpu_custom_call.1} parent=1 // pred_check
      _
    $region3: #{tpu_custom_call.1} parent=1 // pred_check_branch
      %14 = sbr.rel (0) target = $region5
    $region4: #{tpu_custom_call.1} parent=1 // pred_region
      %s16 = ssub.s32 128, 128
      %17 = vsyncadd [#allocation5], %s16
      %s18 = sshll.u32 [#allocation4], 4
      %s19 = int_to_ptr.vmem [resolvable:$true] %s18
      %24 = dma.hbm_to_vmem [thread:$0]  %s0, 128, %s19, [#allocation5], 64, 64, 4
    $region5: #{tpu_custom_call.1} parent=1 // pred_fallthru
      _
    // Predicated region
    $region6: #{tpu_custom_call.1} parent=1 // pred_check
      _
    $region7: #{tpu_custom_call.1} parent=1 // pred_check_branch
      %26 = sbr.rel (0) target = $region9
    $region8: #{tpu_custom_call.1} parent=1 // pred_region
      %s28 = ssub.s32 256, 256
      %29 = vsyncadd [#allocation8], %s28
      %s30 = sshll.u32 [#allocation7], 4
      %s31 = int_to_ptr.vmem [resolvable:$true] %s30
      %36 = dma.hbm_to_vmem [thread:$0]  %s1, 256, %s31, [#allocation8], 64, 64, 4
    $region9: #{tpu_custom_call.1} parent=1 // pred_fallthru
      _
    // Predicated region
    $region10: #{tpu_custom_call.1} parent=1 // pred_check
      _
    $region11: #{tpu_custom_call.1} parent=1 // pred_check_branch
      %38 = sbr.rel (0) target = $region13
    $region12: #{tpu_custom_call.1} parent=1 // pred_region
      _
    $region13: #{tpu_custom_call.1} parent=1 // pred_fallthru
      _
    // Predicated region
    $region14: #{tpu_custom_call.1} parent=1 // pred_check
      _
    $region15: #{tpu_custom_call.1} parent=1 // pred_check_branch
      %40 = sbr.rel (0) target = $region17
    $region16: #{tpu_custom_call.1} parent=1 // pred_region
      %s42 = ssub.s32 256, 256
      %43 = vsyncadd [#allocation8], %s42
      %s44 = sshll.u32 [#allocation9], 4
      %s45 = int_to_ptr.vmem [resolvable:$true] %s44
      %50 = dma.hbm_to_vmem [thread:$0]  %s3, 256, %s45, [#allocation8], 64, 64, 4
    $region17: #{tpu_custom_call.1} parent=1 // pred_fallthru
      _
    // Predicated region
    $region18: #{tpu_custom_call.1} parent=1 // pred_check
      _
    $region19: #{tpu_custom_call.1} parent=1 // pred_check_branch
      %52 = sbr.rel (0) target = $region21
    $region20: #{tpu_custom_call.1} parent=1 // pred_region
      _
    $region21: #{tpu_custom_call.1} parent=1 // pred_fallthru
      _
    // Predicated region
    $region22: #{tpu_custom_call.1} parent=1 // pred_check
      _
    $region23: #{tpu_custom_call.1} parent=1 // pred_check_branch
      %54 = sbr.rel (0) target = $region25
    $region24: #{tpu_custom_call.1} parent=1 // pred_region
      %55 = dma.done [#allocation5], 128
    $region25: #{tpu_custom_call.1} parent=1 // pred_fallthru
      _
    // Predicated region
    $region26: #{tpu_custom_call.1} parent=1 // pred_check
      _
    $region27: #{tpu_custom_call.1} parent=1 // pred_check_branch
      %57 = sbr.rel (0) target = $region29
    $region28: #{tpu_custom_call.1} parent=1 // pred_region
      %58 = dma.done [#allocation8], 256
    $region29: #{tpu_custom_call.1} parent=1 // pred_fallthru
      _
    // Predicated region
    $region30: #{tpu_custom_call.1} parent=1 // pred_check
      _
    $region31: #{tpu_custom_call.1} parent=1 // pred_check_branch
      %60 = sbr.rel (0) target = $region33
    $region32: #{tpu_custom_call.1} parent=1 // pred_region
      %61 = dma.done [#allocation8], 256
    $region33: #{tpu_custom_call.1} parent=1 // pred_fallthru
      _
    %v63 = vld [vmem:[#allocation4] sm:$0xf]
    %v64 = vld [vmem:[#allocation4 + $0x4] sm:$0xf]
    %v65 = vld [vmem:[#allocation7] sm:$0xf]
    %v66 = vld [vmem:[#allocation7 + $0x4] sm:$0xf]
    %v67 = vld [vmem:[#allocation7 + $0x8] sm:$0xf]
    %v68 = vld [vmem:[#allocation7 + $0xc] sm:$0xf]
    %v69 = vld [vmem:[%s2] sm:$0x1]
    %v71 = vlaneseq
    %v72 = vshrl.u32 %v71, 7
    %v73 = vsub.s32 0, %v72
    %v74 = vrot.slane %v69, %v73
    %v78 = vunpack.c.l.b16 %v63
    %v79 = vunpack.c.l.b16 %v64
    %v80 = vpack.c.b16 %v79, %v78
    %v85 = vunpack.c.l.b16 %v65
    %v86 = vunpack.c.l.b16 %v66
    %v87 = vunpack.c.l.b16 %v67
    %v88 = vunpack.c.l.b16 %v68
    %v89 = vpack.c.b16 %v86, %v85
    %v90 = vpack.c.b16 %v88, %v87
    %vm93 = vcmask 261120
    %v95 = vsel %vm93, %v80, 0
    %97 = vmatprep.subr.bf16.mxu0 0
    %98 = vmatpush1.bf16.msra.mxu0 %v89
    %99 = vmatprep.subr.bf16.mxu0 0
    %100 = vmatpush1.bf16.msra.mxu0 %v90
    %101 = vmatprep.subr.bf16.mxu0 0
    %102 = vmatpush1.bf16.msra.mxu0 0
    %103 = vmatprep.subr.bf16.mxu0 0
    %104 = vmatpush1.bf16.msra.mxu0 0
    %105 = vmatprep.subr.bf16.mxu0 0
    %106 = vmatpush1.bf16.msra.mxu0 0
    %107 = vmatprep.subr.bf16.mxu0 0
    %108 = vmatpush1.bf16.msra.mxu0 0
    %109 = vmatprep.subr.bf16.mxu0 0
    %110 = vmatpush1.bf16.msra.mxu0 0
    %111 = vmatprep.subr.bf16.mxu0 0
    %112 = vmatpush1.bf16.msra.mxu0 0
    %113 = vmatprep.subr.bf16.mxu0 0
    %114 = vmatpush1.bf16.msra.mxu0 0
    %115 = vmatprep.subr.bf16.mxu0 0
    %116 = vmatpush1.bf16.msra.mxu0 0
    %117 = vmatprep.subr.bf16.mxu0 0
    %118 = vmatpush1.bf16.msra.mxu0 0
    %119 = vmatprep.subr.bf16.mxu0 0
    %120 = vmatpush1.bf16.msra.mxu0 0
    %121 = vmatprep.subr.bf16.mxu0 0
    %122 = vmatpush1.bf16.msra.mxu0 0
    %123 = vmatprep.subr.bf16.mxu0 0
    %124 = vmatpush1.bf16.msra.mxu0 0
    %125 = vmatprep.subr.bf16.mxu0 0
    %126 = vmatpush1.bf16.msra.mxu0 0
    %127 = vmatprep.subr.bf16.mxu0 0
    %128 = vmatpush1.bf16.msra.mxu0 0
    %129 = vmatprep.mubr.bf16.mxu0 0
    %130 = vmatmul.mubr.bf16.gmra.mrb[0].mxu0 %v95
    %v131 = vpop.f32.mrb[0].mxu0
    %v132 = vadd.f32 %v74, %v131
    %v133 = vpop.f32.mrb[0].mxu0
    %v134 = vpop.f32.mrb[0].mxu0
    %v135 = vadd.f32 %v74, %v134
    %v136 = vpop.f32.mrb[0].mxu0
    %137 = vdwg.mxu0
    %v138 = vpack.c.bf16 %v135, %v132
    %vm139 = vcmask 785408
    %140 = vst.msk [vmem:[#allocation2] sm:$0xff] %vm139, %v138
    %v141 = vld [vmem:[#allocation2] sm:$0xff]
    %v143 = vunpack.c.l.b16 %v141
    %v144 = vunpack.c.h.b16 %v141
    %v145 = vpack.c.b16 %v143, %v143
    %v146 = vpack.c.b16 %v144, %v144
    %147 = vrot.lane.b32.xlu0 %v145, 96
    %v148 = vpop.permute.xlu0 %147
    %vm149 = vcmask 31744
    %v151 = vsel %vm149, %v145, 0
    %v154 = vsel %vm149, %v148, 0
    %156 = vmatprep.subr.bf16.mxu0 0
    %157 = vmatpush1.bf16.xpose.msra.mxu0 %v154
    %158 = vmatprep.subr.bf16.mxu0 0
    %159 = vmatpush1.bf16.xpose.msra.mxu0 0
    %160 = vmatprep.subr.bf16.mxu0 0
    %161 = vmatpush1.bf16.xpose.msra.mxu0 0
    %162 = vmatprep.subr.bf16.mxu0 0
    %163 = vmatpush1.bf16.xpose.msra.mxu0 0
    %164 = vmatprep.subr.bf16.mxu0 0
    %165 = vmatpush1.bf16.xpose.msra.mxu0 0
    %166 = vmatprep.subr.bf16.mxu0 0
    %167 = vmatpush1.bf16.xpose.msra.mxu0 0
    %168 = vmatprep.subr.bf16.mxu0 0
    %169 = vmatpush1.bf16.xpose.msra.mxu0 0
    %170 = vmatprep.subr.bf16.mxu0 0
    %171 = vmatpush1.bf16.xpose.msra.mxu0 0
    %172 = vmatprep.subr.bf16.mxu0 0
    %173 = vmatpush1.bf16.xpose.msra.mxu0 0
    %174 = vmatprep.subr.bf16.mxu0 0
    %175 = vmatpush1.bf16.xpose.msra.mxu0 0
    %176 = vmatprep.subr.bf16.mxu0 0
    %177 = vmatpush1.bf16.xpose.msra.mxu0 0
    %178 = vmatprep.subr.bf16.mxu0 0
    %179 = vmatpush1.bf16.xpose.msra.mxu0 0
    %180 = vmatprep.subr.bf16.mxu0 0
    %181 = vmatpush1.bf16.xpose.msra.mxu0 0
    %182 = vmatprep.subr.bf16.mxu0 0
    %183 = vmatpush1.bf16.xpose.msra.mxu0 0
    %184 = vmatprep.subr.bf16.mxu0 0
    %185 = vmatpush1.bf16.xpose.msra.mxu0 0
    %186 = vmatprep.subr.bf16.mxu0 0
    %187 = vmatpush1.bf16.xpose.msra.mxu0 0
    %188 = vmatprep.mubr.bf16.mxu0 0
    %189 = vmatmul.mubr.bf16.gmra.mrb[0].mxu0 %v151
    %v190 = vpop.f32.mrb[0].mxu0
    %v191 = vadd.f32 0.0, %v190
    %v192 = vpop.f32.mrb[0].mxu0
    %v193 = vpop.f32.mrb[0].mxu0
    %v194 = vpop.f32.mrb[0].mxu0
    %195 = vdwg.mxu0
    %196 = vrot.lane.b32.xlu0 %v146, 96
    %v197 = vpop.permute.xlu0 %196
    %v199 = vsel %vm149, %v146, 0
    %v202 = vsel %vm149, %v197, 0
    %204 = vmatprep.subr.bf16.mxu0 0
    %205 = vmatpush1.bf16.xpose.msra.mxu0 %v202
    %206 = vmatprep.subr.bf16.mxu0 0
    %207 = vmatpush1.bf16.xpose.msra.mxu0 0
    %208 = vmatprep.subr.bf16.mxu0 0
    %209 = vmatpush1.bf16.xpose.msra.mxu0 0
    %210 = vmatprep.subr.bf16.mxu0 0
    %211 = vmatpush1.bf16.xpose.msra.mxu0 0
    %212 = vmatprep.subr.bf16.mxu0 0
    %213 = vmatpush1.bf16.xpose.msra.mxu0 0
    %214 = vmatprep.subr.bf16.mxu0 0
    %215 = vmatpush1.bf16.xpose.msra.mxu0 0
    %216 = vmatprep.subr.bf16.mxu0 0
    %217 = vmatpush1.bf16.xpose.msra.mxu0 0
    %218 = vmatprep.subr.bf16.mxu0 0
    %219 = vmatpush1.bf16.xpose.msra.mxu0 0
    %220 = vmatprep.subr.bf16.mxu0 0
    %221 = vmatpush1.bf16.xpose.msra.mxu0 0
    %222 = vmatprep.subr.bf16.mxu0 0
    %223 = vmatpush1.bf16.xpose.msra.mxu0 0
    %224 = vmatprep.subr.bf16.mxu0 0
    %225 = vmatpush1.bf16.xpose.msra.mxu0 0
    %226 = vmatprep.subr.bf16.mxu0 0
    %227 = vmatpush1.bf16.xpose.msra.mxu0 0
    %228 = vmatprep.subr.bf16.mxu0 0
    %229 = vmatpush1.bf16.xpose.msra.mxu0 0
    %230 = vmatprep.subr.bf16.mxu0 0
    %231 = vmatpush1.bf16.xpose.msra.mxu0 0
    %232 = vmatprep.subr.bf16.mxu0 0
    %233 = vmatpush1.bf16.xpose.msra.mxu0 0
    %234 = vmatprep.subr.bf16.mxu0 0
    %235 = vmatpush1.bf16.xpose.msra.mxu0 0
    %236 = vmatprep.mubr.bf16.mxu0 0
    %237 = vmatmul.mubr.bf16.gmra.mrb[0].mxu0 %v199
    %v238 = vpop.f32.mrb[0].mxu0
    %v239 = vadd.f32 0.0, %v238
    %v240 = vpop.f32.mrb[0].mxu0
    %v241 = vpop.f32.mrb[0].mxu0
    %v242 = vpop.f32.mrb[0].mxu0
    %243 = vdwg.mxu0
    %vm244 = vcmask 64512
    %v245 = vsel %vm244, %v191, -inf
    %246 = vmax.xlane.f32.xlu0 %v245
    %v247 = vpop.xlane.xlu0 %246
    %v248 = vsel %vm244, %v239, -inf
    %249 = vmax.xlane.f32.xlu0 %v248
    %v250 = vpop.xlane.xlu0 %249
    %v251 = vsub.f32 %v191, %v247
    %v252 = vsub.f32 %v239, %v250
    %v253 = vmul.f32 %v251, 1.442695
    %v254 = vpow.pop %v253
    %v255 = vmul.f32 %v252, 1.442695
    %v256 = vpow.pop %v255
    %v257 = vsel %vm244, %v254, 0.0
    %258 = vadd.xlane.f32.xlu0 %v257
    %v259 = vpop.xlane.xlu0 %258
    %v260 = vsel %vm244, %v256, 0.0
    %261 = vadd.xlane.f32.xlu0 %v260
    %v262 = vpop.xlane.xlu0 %261
    %v263 = vrcp.pop %v259
    %v264 = vrcp.pop %v262
    %v265 = vmul.f32 %v254, %v263
    %v266 = vmul.f32 %v256, %v264
    %v267 = vpack.c.bf16 %v265, %v265
    %v268 = vpack.c.bf16 %v266, %v266
    %269 = vrot.lane.b32.xlu0 %v145, 64
    %v270 = vpop.permute.xlu0 %269
    %v272 = vsel %vm244, %v267, 0
    %vm274 = vcmask 1043456
    %v276 = vsel %vm274, %v270, 0
    %278 = vmatprep.subr.bf16.mxu0 0
    %279 = vmatpush1.bf16.msra.mxu0 %v276
    %280 = vmatprep.subr.bf16.mxu0 0
    %281 = vmatpush1.bf16.msra.mxu0 0
    %282 = vmatprep.subr.bf16.mxu0 0
    %283 = vmatpush1.bf16.msra.mxu0 0
    %284 = vmatprep.subr.bf16.mxu0 0
    %285 = vmatpush1.bf16.msra.mxu0 0
    %286 = vmatprep.subr.bf16.mxu0 0
    %287 = vmatpush1.bf16.msra.mxu0 0
    %288 = vmatprep.subr.bf16.mxu0 0
    %289 = vmatpush1.bf16.msra.mxu0 0
    %290 = vmatprep.subr.bf16.mxu0 0
    %291 = vmatpush1.bf16.msra.mxu0 0
    %292 = vmatprep.subr.bf16.mxu0 0
    %293 = vmatpush1.bf16.msra.mxu0 0
    %294 = vmatprep.subr.bf16.mxu0 0
    %295 = vmatpush1.bf16.msra.mxu0 0
    %296 = vmatprep.subr.bf16.mxu0 0
    %297 = vmatpush1.bf16.msra.mxu0 0
    %298 = vmatprep.subr.bf16.mxu0 0
    %299 = vmatpush1.bf16.msra.mxu0 0
    %300 = vmatprep.subr.bf16.mxu0 0
    %301 = vmatpush1.bf16.msra.mxu0 0
    %302 = vmatprep.subr.bf16.mxu0 0
    %303 = vmatpush1.bf16.msra.mxu0 0
    %304 = vmatprep.subr.bf16.mxu0 0
    %305 = vmatpush1.bf16.msra.mxu0 0
    %306 = vmatprep.subr.bf16.mxu0 0
    %307 = vmatpush1.bf16.msra.mxu0 0
    %308 = vmatprep.subr.bf16.mxu0 0
    %309 = vmatpush1.bf16.msra.mxu0 0
    %310 = vmatprep.mubr.bf16.mxu0 0
    %311 = vmatmul.mubr.bf16.gmra.mrb[0].mxu0 %v272
    %v312 = vpop.f32.mrb[0].mxu0
    %v313 = vadd.f32 0.0, %v312
    %v314 = vpop.f32.mrb[0].mxu0
    %v315 = vpop.f32.mrb[0].mxu0
    %v316 = vpop.f32.mrb[0].mxu0
    %317 = vdwg.mxu0
    %318 = vrot.lane.b32.xlu0 %v146, 64
    %v319 = vpop.permute.xlu0 %318
    %v321 = vsel %vm244, %v268, 0
    %v324 = vsel %vm274, %v319, 0
    %326 = vmatprep.subr.bf16.mxu0 0
    %327 = vmatpush1.bf16.msra.mxu0 %v324
    %328 = vmatprep.subr.bf16.mxu0 0
    %329 = vmatpush1.bf16.msra.mxu0 0
    %330 = vmatprep.subr.bf16.mxu0 0
    %331 = vmatpush1.bf16.msra.mxu0 0
    %332 = vmatprep.subr.bf16.mxu0 0
    %333 = vmatpush1.bf16.msra.mxu0 0
    %334 = vmatprep.subr.bf16.mxu0 0
    %335 = vmatpush1.bf16.msra.mxu0 0
    %336 = vmatprep.subr.bf16.mxu0 0
    %337 = vmatpush1.bf16.msra.mxu0 0
    %338 = vmatprep.subr.bf16.mxu0 0
    %339 = vmatpush1.bf16.msra.mxu0 0
    %340 = vmatprep.subr.bf16.mxu0 0
    %341 = vmatpush1.bf16.msra.mxu0 0
    %342 = vmatprep.subr.bf16.mxu0 0
    %343 = vmatpush1.bf16.msra.mxu0 0
    %344 = vmatprep.subr.bf16.mxu0 0
    %345 = vmatpush1.bf16.msra.mxu0 0
    %346 = vmatprep.subr.bf16.mxu0 0
    %347 = vmatpush1.bf16.msra.mxu0 0
    %348 = vmatprep.subr.bf16.mxu0 0
    %349 = vmatpush1.bf16.msra.mxu0 0
    %350 = vmatprep.subr.bf16.mxu0 0
    %351 = vmatpush1.bf16.msra.mxu0 0
    %352 = vmatprep.subr.bf16.mxu0 0
    %353 = vmatpush1.bf16.msra.mxu0 0
    %354 = vmatprep.subr.bf16.mxu0 0
    %355 = vmatpush1.bf16.msra.mxu0 0
    %356 = vmatprep.subr.bf16.mxu0 0
    %357 = vmatpush1.bf16.msra.mxu0 0
    %358 = vmatprep.mubr.bf16.mxu0 0
    %359 = vmatmul.mubr.bf16.gmra.mrb[0].mxu0 %v321
    %v360 = vpop.f32.mrb[0].mxu0
    %v361 = vadd.f32 0.0, %v360
    %v362 = vpop.f32.mrb[0].mxu0
    %v363 = vpop.f32.mrb[0].mxu0
    %v364 = vpop.f32.mrb[0].mxu0
    %365 = vdwg.mxu0
    %v366 = vpack.c.bf16 %v361, %v313
    %367 = vst.msk [vmem:[#allocation3] sm:$0xff] %vm149, %v366
    %v368 = vld [vmem:[#allocation2] sm:$0xff]
    %v370 = vunpack.c.l.b16 %v368
    %v371 = vunpack.c.h.b16 %v368
    %v372 = vpack.c.b16 %v370, %v370
    %373 = vrot.lane.b32.xlu0 %v372, 124
    %v374 = vpop.permute.xlu0 %373
    %375 = vrot.lane.b32.xlu0 %v372, 92
    %v376 = vpop.permute.xlu0 %375
    %v378 = vsel %vm149, %v374, 0
    %v381 = vsel %vm149, %v376, 0
    %383 = vmatprep.subr.bf16.mxu0 0
    %384 = vmatpush1.bf16.xpose.msra.mxu0 %v381
    %385 = vmatprep.subr.bf16.mxu0 0
    %386 = vmatpush1.bf16.xpose.msra.mxu0 0
    %387 = vmatprep.subr.bf16.mxu0 0
    %388 = vmatpush1.bf16.xpose.msra.mxu0 0
    %389 = vmatprep.subr.bf16.mxu0 0
    %390 = vmatpush1.bf16.xpose.msra.mxu0 0
    %391 = vmatprep.subr.bf16.mxu0 0
    %392 = vmatpush1.bf16.xpose.msra.mxu0 0
    %393 = vmatprep.subr.bf16.mxu0 0
    %394 = vmatpush1.bf16.xpose.msra.mxu0 0
    %395 = vmatprep.subr.bf16.mxu0 0
    %396 = vmatpush1.bf16.xpose.msra.mxu0 0
    %397 = vmatprep.subr.bf16.mxu0 0
    %398 = vmatpush1.bf16.xpose.msra.mxu0 0
    %399 = vmatprep.subr.bf16.mxu0 0
    %400 = vmatpush1.bf16.xpose.msra.mxu0 0
    %401 = vmatprep.subr.bf16.mxu0 0
    %402 = vmatpush1.bf16.xpose.msra.mxu0 0
    %403 = vmatprep.subr.bf16.mxu0 0
    %404 = vmatpush1.bf16.xpose.msra.mxu0 0
    %405 = vmatprep.subr.bf16.mxu0 0
    %406 = vmatpush1.bf16.xpose.msra.mxu0 0
    %407 = vmatprep.subr.bf16.mxu0 0
    %408 = vmatpush1.bf16.xpose.msra.mxu0 0
    %409 = vmatprep.subr.bf16.mxu0 0
    %410 = vmatpush1.bf16.xpose.msra.mxu0 0
    %411 = vmatprep.subr.bf16.mxu0 0
    %412 = vmatpush1.bf16.xpose.msra.mxu0 0
    %413 = vmatprep.subr.bf16.mxu0 0
    %414 = vmatpush1.bf16.xpose.msra.mxu0 0
    %415 = vmatprep.mubr.bf16.mxu0 0
    %416 = vmatmul.mubr.bf16.gmra.mrb[0].mxu0 %v378
    %v417 = vpop.f32.mrb[0].mxu0
    %v418 = vadd.f32 0.0, %v417
    %v419 = vpop.f32.mrb[0].mxu0
    %v420 = vpop.f32.mrb[0].mxu0
    %v421 = vpop.f32.mrb[0].mxu0
    %422 = vdwg.mxu0
    %v423 = vpack.c.b16 %v371, %v371
    %424 = vrot.lane.b32.xlu0 %v423, 124
    %v425 = vpop.permute.xlu0 %424
    %426 = vrot.lane.b32.xlu0 %v423, 92
    %v427 = vpop.permute.xlu0 %426
    %v429 = vsel %vm149, %v425, 0
    %v432 = vsel %vm149, %v427, 0
    %434 = vmatprep.subr.bf16.mxu0 0
    %435 = vmatpush1.bf16.xpose.msra.mxu0 %v432
    %436 = vmatprep.subr.bf16.mxu0 0
    %437 = vmatpush1.bf16.xpose.msra.mxu0 0
    %438 = vmatprep.subr.bf16.mxu0 0
    %439 = vmatpush1.bf16.xpose.msra.mxu0 0
    %440 = vmatprep.subr.bf16.mxu0 0
    %441 = vmatpush1.bf16.xpose.msra.mxu0 0
    %442 = vmatprep.subr.bf16.mxu0 0
    %443 = vmatpush1.bf16.xpose.msra.mxu0 0
    %444 = vmatprep.subr.bf16.mxu0 0
    %445 = vmatpush1.bf16.xpose.msra.mxu0 0
    %446 = vmatprep.subr.bf16.mxu0 0
    %447 = vmatpush1.bf16.xpose.msra.mxu0 0
    %448 = vmatprep.subr.bf16.mxu0 0
    %449 = vmatpush1.bf16.xpose.msra.mxu0 0
    %450 = vmatprep.subr.bf16.mxu0 0
    %451 = vmatpush1.bf16.xpose.msra.mxu0 0
    %452 = vmatprep.subr.bf16.mxu0 0
    %453 = vmatpush1.bf16.xpose.msra.mxu0 0
    %454 = vmatprep.subr.bf16.mxu0 0
    %455 = vmatpush1.bf16.xpose.msra.mxu0 0
    %456 = vmatprep.subr.bf16.mxu0 0
    %457 = vmatpush1.bf16.xpose.msra.mxu0 0
    %458 = vmatprep.subr.bf16.mxu0 0
    %459 = vmatpush1.bf16.xpose.msra.mxu0 0
    %460 = vmatprep.subr.bf16.mxu0 0
    %461 = vmatpush1.bf16.xpose.msra.mxu0 0
    %462 = vmatprep.subr.bf16.mxu0 0
    %463 = vmatpush1.bf16.xpose.msra.mxu0 0
    %464 = vmatprep.subr.bf16.mxu0 0
    %465 = vmatpush1.bf16.xpose.msra.mxu0 0
    %466 = vmatprep.mubr.bf16.mxu0 0
    %467 = vmatmul.mubr.bf16.gmra.mrb[0].mxu0 %v429
    %v468 = vpop.f32.mrb[0].mxu0
    %v469 = vadd.f32 0.0, %v468
    %v470 = vpop.f32.mrb[0].mxu0
    %v471 = vpop.f32.mrb[0].mxu0
    %v472 = vpop.f32.mrb[0].mxu0
    %473 = vdwg.mxu0
    %v474 = vsel %vm244, %v418, -inf
    %475 = vmax.xlane.f32.xlu0 %v474
    %v476 = vpop.xlane.xlu0 %475
    %v477 = vsel %vm244, %v469, -inf
    %478 = vmax.xlane.f32.xlu0 %v477
    %v479 = vpop.xlane.xlu0 %478
    %v480 = vsub.f32 %v418, %v476
    %v481 = vsub.f32 %v469, %v479
    %v482 = vmul.f32 %v480, 1.442695
    %v483 = vpow.pop %v482
    %v484 = vmul.f32 %v481, 1.442695
    %v485 = vpow.pop %v484
    %v486 = vsel %vm244, %v483, 0.0
    %487 = vadd.xlane.f32.xlu0 %v486
    %v488 = vpop.xlane.xlu0 %487
    %v489 = vsel %vm244, %v485, 0.0
    %490 = vadd.xlane.f32.xlu0 %v489
    %v491 = vpop.xlane.xlu0 %490
    %v492 = vrcp.pop %v488
    %v493 = vrcp.pop %v491
    %v494 = vmul.f32 %v483, %v492
    %v495 = vmul.f32 %v485, %v493
    %v496 = vpack.c.bf16 %v494, %v494
    %v497 = vpack.c.bf16 %v495, %v495
    %498 = vrot.lane.b32.xlu0 %v372, 60
    %v499 = vpop.permute.xlu0 %498
    %v501 = vsel %vm244, %v496, 0
    %v504 = vsel %vm274, %v499, 0
    %506 = vmatprep.subr.bf16.mxu0 0
    %507 = vmatpush1.bf16.msra.mxu0 %v504
    %508 = vmatprep.subr.bf16.mxu0 0
    %509 = vmatpush1.bf16.msra.mxu0 0
    %510 = vmatprep.subr.bf16.mxu0 0
    %511 = vmatpush1.bf16.msra.mxu0 0
    %512 = vmatprep.subr.bf16.mxu0 0
    %513 = vmatpush1.bf16.msra.mxu0 0
    %514 = vmatprep.subr.bf16.mxu0 0
    %515 = vmatpush1.bf16.msra.mxu0 0
    %516 = vmatprep.subr.bf16.mxu0 0
    %517 = vmatpush1.bf16.msra.mxu0 0
    %518 = vmatprep.subr.bf16.mxu0 0
    %519 = vmatpush1.bf16.msra.mxu0 0
    %520 = vmatprep.subr.bf16.mxu0 0
    %521 = vmatpush1.bf16.msra.mxu0 0
    %522 = vmatprep.subr.bf16.mxu0 0
    %523 = vmatpush1.bf16.msra.mxu0 0
    %524 = vmatprep.subr.bf16.mxu0 0
    %525 = vmatpush1.bf16.msra.mxu0 0
    %526 = vmatprep.subr.bf16.mxu0 0
    %527 = vmatpush1.bf16.msra.mxu0 0
    %528 = vmatprep.subr.bf16.mxu0 0
    %529 = vmatpush1.bf16.msra.mxu0 0
    %530 = vmatprep.subr.bf16.mxu0 0
    %531 = vmatpush1.bf16.msra.mxu0 0
    %532 = vmatprep.subr.bf16.mxu0 0
    %533 = vmatpush1.bf16.msra.mxu0 0
    %534 = vmatprep.subr.bf16.mxu0 0
    %535 = vmatpush1.bf16.msra.mxu0 0
    %536 = vmatprep.subr.bf16.mxu0 0
    %537 = vmatpush1.bf16.msra.mxu0 0
    %538 = vmatprep.mubr.bf16.mxu0 0
    %539 = vmatmul.mubr.bf16.gmra.mrb[0].mxu0 %v501
    %v540 = vpop.f32.mrb[0].mxu0
    %v541 = vadd.f32 0.0, %v540
    %v542 = vpop.f32.mrb[0].mxu0
    %v543 = vpop.f32.mrb[0].mxu0
    %v544 = vpop.f32.mrb[0].mxu0
    %545 = vdwg.mxu0
    %546 = vrot.lane.b32.xlu0 %v423, 60
    %v547 = vpop.permute.xlu0 %546
    %v549 = vsel %vm244, %v497, 0
    %v552 = vsel %vm274, %v547, 0
    %554 = vmatprep.subr.bf16.mxu0 0
    %555 = vmatpush1.bf16.msra.mxu0 %v552
    %556 = vmatprep.subr.bf16.mxu0 0
    %557 = vmatpush1.bf16.msra.mxu0 0
    %558 = vmatprep.subr.bf16.mxu0 0
    %559 = vmatpush1.bf16.msra.mxu0 0
    %560 = vmatprep.subr.bf16.mxu0 0
    %561 = vmatpush1.bf16.msra.mxu0 0
    %562 = vmatprep.subr.bf16.mxu0 0
    %563 = vmatpush1.bf16.msra.mxu0 0
    %564 = vmatprep.subr.bf16.mxu0 0
    %565 = vmatpush1.bf16.msra.mxu0 0
    %566 = vmatprep.subr.bf16.mxu0 0
    %567 = vmatpush1.bf16.msra.mxu0 0
    %568 = vmatprep.subr.bf16.mxu0 0
    %569 = vmatpush1.bf16.msra.mxu0 0
    %570 = vmatprep.subr.bf16.mxu0 0
    %571 = vmatpush1.bf16.msra.mxu0 0
    %572 = vmatprep.subr.bf16.mxu0 0
    %573 = vmatpush1.bf16.msra.mxu0 0
    %574 = vmatprep.subr.bf16.mxu0 0
    %575 = vmatpush1.bf16.msra.mxu0 0
    %576 = vmatprep.subr.bf16.mxu0 0
    %577 = vmatpush1.bf16.msra.mxu0 0
    %578 = vmatprep.subr.bf16.mxu0 0
    %579 = vmatpush1.bf16.msra.mxu0 0
    %580 = vmatprep.subr.bf16.mxu0 0
    %581 = vmatpush1.bf16.msra.mxu0 0
    %582 = vmatprep.subr.bf16.mxu0 0
    %583 = vmatpush1.bf16.msra.mxu0 0
    %584 = vmatprep.subr.bf16.mxu0 0
    %585 = vmatpush1.bf16.msra.mxu0 0
    %586 = vmatprep.mubr.bf16.mxu0 0
    %587 = vmatmul.mubr.bf16.gmra.mrb[0].mxu0 %v549
    %v588 = vpop.f32.mrb[0].mxu0
    %v589 = vadd.f32 0.0, %v588
    %v590 = vpop.f32.mrb[0].mxu0
    %v591 = vpop.f32.mrb[0].mxu0
    %v592 = vpop.f32.mrb[0].mxu0
    %593 = vdwg.mxu0
    %v594 = vpack.c.bf16 %v589, %v541
    %596 = vrot.lane.b32.xlu0 %v594, 4
    %v597 = vpop.permute.xlu0 %596
    %vm599 = vcmask 64544
    %600 = vst.msk [vmem:[#allocation3] sm:$0xff] %vm599, %v597
    %v601 = vld [vmem:[#allocation2] sm:$0xff]
    %v603 = vunpack.c.l.b16 %v601
    %v604 = vunpack.c.h.b16 %v601
    %v605 = vpack.c.b16 %v603, %v603
    %606 = vrot.lane.b32.xlu0 %v605, 120
    %v607 = vpop.permute.xlu0 %606
    %608 = vrot.lane.b32.xlu0 %v605, 88
    %v609 = vpop.permute.xlu0 %608
    %v611 = vsel %vm149, %v607, 0
    %v614 = vsel %vm149, %v609, 0
    %616 = vmatprep.subr.bf16.mxu0 0
    %617 = vmatpush1.bf16.xpose.msra.mxu0 %v614
    %618 = vmatprep.subr.bf16.mxu0 0
    %619 = vmatpush1.bf16.xpose.msra.mxu0 0
    %620 = vmatprep.subr.bf16.mxu0 0
    %621 = vmatpush1.bf16.xpose.msra.mxu0 0
    %622 = vmatprep.subr.bf16.mxu0 0
    %623 = vmatpush1.bf16.xpose.msra.mxu0 0
    %624 = vmatprep.subr.bf16.mxu0 0
    %625 = vmatpush1.bf16.xpose.msra.mxu0 0
    %626 = vmatprep.subr.bf16.mxu0 0
    %627 = vmatpush1.bf16.xpose.msra.mxu0 0
    %628 = vmatprep.subr.bf16.mxu0 0
    %629 = vmatpush1.bf16.xpose.msra.mxu0 0
    %630 = vmatprep.subr.bf16.mxu0 0
    %631 = vmatpush1.bf16.xpose.msra.mxu0 0
    %632 = vmatprep.subr.bf16.mxu0 0
    %633 = vmatpush1.bf16.xpose.msra.mxu0 0
    %634 = vmatprep.subr.bf16.mxu0 0
    %635 = vmatpush1.bf16.xpose.msra.mxu0 0
    %636 = vmatprep.subr.bf16.mxu0 0
    %637 = vmatpush1.bf16.xpose.msra.mxu0 0
    %638 = vmatprep.subr.bf16.mxu0 0
    %639 = vmatpush1.bf16.xpose.msra.mxu0 0
    %640 = vmatprep.subr.bf16.mxu0 0
    %641 = vmatpush1.bf16.xpose.msra.mxu0 0
    %642 = vmatprep.subr.bf16.mxu0 0
    %643 = vmatpush1.bf16.xpose.msra.mxu0 0
    %644 = vmatprep.subr.bf16.mxu0 0
    %645 = vmatpush1.bf16.xpose.msra.mxu0 0
    %646 = vmatprep.subr.bf16.mxu0 0
    %647 = vmatpush1.bf16.xpose.msra.mxu0 0
    %648 = vmatprep.mubr.bf16.mxu0 0
    %649 = vmatmul.mubr.bf16.gmra.mrb[0].mxu0 %v611
    %v650 = vpop.f32.mrb[0].mxu0
    %v651 = vadd.f32 0.0, %v650
    %v652 = vpop.f32.mrb[0].mxu0
    %v653 = vpop.f32.mrb[0].mxu0
    %v654 = vpop.f32.mrb[0].mxu0
    %655 = vdwg.mxu0
    %v656 = vpack.c.b16 %v604, %v604
    %657 = vrot.lane.b32.xlu0 %v656, 120
    %v658 = vpop.permute.xlu0 %657
    %659 = vrot.lane.b32.xlu0 %v656, 88
    %v660 = vpop.permute.xlu0 %659
    %v662 = vsel %vm149, %v658, 0
    %v665 = vsel %vm149, %v660, 0
    %667 = vmatprep.subr.bf16.mxu0 0
    %668 = vmatpush1.bf16.xpose.msra.mxu0 %v665
    %669 = vmatprep.subr.bf16.mxu0 0
    %670 = vmatpush1.bf16.xpose.msra.mxu0 0
    %671 = vmatprep.subr.bf16.mxu0 0
    %672 = vmatpush1.bf16.xpose.msra.mxu0 0
    %673 = vmatprep.subr.bf16.mxu0 0
    %674 = vmatpush1.bf16.xpose.msra.mxu0 0
    %675 = vmatprep.subr.bf16.mxu0 0
    %676 = vmatpush1.bf16.xpose.msra.mxu0 0
    %677 = vmatprep.subr.bf16.mxu0 0
    %678 = vmatpush1.bf16.xpose.msra.mxu0 0
    %679 = vmatprep.subr.bf16.mxu0 0
    %680 = vmatpush1.bf16.xpose.msra.mxu0 0
    %681 = vmatprep.subr.bf16.mxu0 0
    %682 = vmatpush1.bf16.xpose.msra.mxu0 0
    %683 = vmatprep.subr.bf16.mxu0 0
    %684 = vmatpush1.bf16.xpose.msra.mxu0 0
    %685 = vmatprep.subr.bf16.mxu0 0
    %686 = vmatpush1.bf16.xpose.msra.mxu0 0
    %687 = vmatprep.subr.bf16.mxu0 0
    %688 = vmatpush1.bf16.xpose.msra.mxu0 0
    %689 = vmatprep.subr.bf16.mxu0 0
    %690 = vmatpush1.bf16.xpose.msra.mxu0 0
    %691 = vmatprep.subr.bf16.mxu0 0
    %692 = vmatpush1.bf16.xpose.msra.mxu0 0
    %693 = vmatprep.subr.bf16.mxu0 0
    %694 = vmatpush1.bf16.xpose.msra.mxu0 0
    %695 = vmatprep.subr.bf16.mxu0 0
    %696 = vmatpush1.bf16.xpose.msra.mxu0 0
    %697 = vmatprep.subr.bf16.mxu0 0
    %698 = vmatpush1.bf16.xpose.msra.mxu0 0
    %699 = vmatprep.mubr.bf16.mxu0 0
    %700 = vmatmul.mubr.bf16.gmra.mrb[0].mxu0 %v662
    %v701 = vpop.f32.mrb[0].mxu0
    %v702 = vadd.f32 0.0, %v701
    %v703 = vpop.f32.mrb[0].mxu0
    %v704 = vpop.f32.mrb[0].mxu0
    %v705 = vpop.f32.mrb[0].mxu0
    %706 = vdwg.mxu0
    %v707 = vsel %vm244, %v651, -inf
    %708 = vmax.xlane.f32.xlu0 %v707
    %v709 = vpop.xlane.xlu0 %708
    %v710 = vsel %vm244, %v702, -inf
    %711 = vmax.xlane.f32.xlu0 %v710
    %v712 = vpop.xlane.xlu0 %711
    %v713 = vsub.f32 %v651, %v709
    %v714 = vsub.f32 %v702, %v712
    %v715 = vmul.f32 %v713, 1.442695
    %v716 = vpow.pop %v715
    %v717 = vmul.f32 %v714, 1.442695
    %v718 = vpow.pop %v717
    %v719 = vsel %vm244, %v716, 0.0
    %720 = vadd.xlane.f32.xlu0 %v719
    %v721 = vpop.xlane.xlu0 %720
    %v722 = vsel %vm244, %v718, 0.0
    %723 = vadd.xlane.f32.xlu0 %v722
    %v724 = vpop.xlane.xlu0 %723
    %v725 = vrcp.pop %v721
    %v726 = vrcp.pop %v724
    %v727 = vmul.f32 %v716, %v725
    %v728 = vmul.f32 %v718, %v726
    %v729 = vpack.c.bf16 %v727, %v727
    %v730 = vpack.c.bf16 %v728, %v728
    %731 = vrot.lane.b32.xlu0 %v605, 56
    %v732 = vpop.permute.xlu0 %731
    %v734 = vsel %vm244, %v729, 0
    %v737 = vsel %vm274, %v732, 0
    %739 = vmatprep.subr.bf16.mxu0 0
    %740 = vmatpush1.bf16.msra.mxu0 %v737
    %741 = vmatprep.subr.bf16.mxu0 0
    %742 = vmatpush1.bf16.msra.mxu0 0
    %743 = vmatprep.subr.bf16.mxu0 0
    %744 = vmatpush1.bf16.msra.mxu0 0
    %745 = vmatprep.subr.bf16.mxu0 0
    %746 = vmatpush1.bf16.msra.mxu0 0
    %747 = vmatprep.subr.bf16.mxu0 0
    %748 = vmatpush1.bf16.msra.mxu0 0
    %749 = vmatprep.subr.bf16.mxu0 0
    %750 = vmatpush1.bf16.msra.mxu0 0
    %751 = vmatprep.subr.bf16.mxu0 0
    %752 = vmatpush1.bf16.msra.mxu0 0
    %753 = vmatprep.subr.bf16.mxu0 0
    %754 = vmatpush1.bf16.msra.mxu0 0
    %755 = vmatprep.subr.bf16.mxu0 0
    %756 = vmatpush1.bf16.msra.mxu0 0
    %757 = vmatprep.subr.bf16.mxu0 0
    %758 = vmatpush1.bf16.msra.mxu0 0
    %759 = vmatprep.subr.bf16.mxu0 0
    %760 = vmatpush1.bf16.msra.mxu0 0
    %761 = vmatprep.subr.bf16.mxu0 0
    %762 = vmatpush1.bf16.msra.mxu0 0
    %763 = vmatprep.subr.bf16.mxu0 0
    %764 = vmatpush1.bf16.msra.mxu0 0
    %765 = vmatprep.subr.bf16.mxu0 0
    %766 = vmatpush1.bf16.msra.mxu0 0
    %767 = vmatprep.subr.bf16.mxu0 0
    %768 = vmatpush1.bf16.msra.mxu0 0
    %769 = vmatprep.subr.bf16.mxu0 0
    %770 = vmatpush1.bf16.msra.mxu0 0
    %771 = vmatprep.mubr.bf16.mxu0 0
    %772 = vmatmul.mubr.bf16.gmra.mrb[0].mxu0 %v734
    %v773 = vpop.f32.mrb[0].mxu0
    %v774 = vadd.f32 0.0, %v773
    %v775 = vpop.f32.mrb[0].mxu0
    %v776 = vpop.f32.mrb[0].mxu0
    %v777 = vpop.f32.mrb[0].mxu0
    %778 = vdwg.mxu0
    %779 = vrot.lane.b32.xlu0 %v656, 56
    %v780 = vpop.permute.xlu0 %779
    %v782 = vsel %vm244, %v730, 0
    %v785 = vsel %vm274, %v780, 0
    %787 = vmatprep.subr.bf16.mxu0 0
    %788 = vmatpush1.bf16.msra.mxu0 %v785
    %789 = vmatprep.subr.bf16.mxu0 0
    %790 = vmatpush1.bf16.msra.mxu0 0
    %791 = vmatprep.subr.bf16.mxu0 0
    %792 = vmatpush1.bf16.msra.mxu0 0
    %793 = vmatprep.subr.bf16.mxu0 0
    %794 = vmatpush1.bf16.msra.mxu0 0
    %795 = vmatprep.subr.bf16.mxu0 0
    %796 = vmatpush1.bf16.msra.mxu0 0
    %797 = vmatprep.subr.bf16.mxu0 0
    %798 = vmatpush1.bf16.msra.mxu0 0
    %799 = vmatprep.subr.bf16.mxu0 0
    %800 = vmatpush1.bf16.msra.mxu0 0
    %801 = vmatprep.subr.bf16.mxu0 0
    %802 = vmatpush1.bf16.msra.mxu0 0
    %803 = vmatprep.subr.bf16.mxu0 0
    %804 = vmatpush1.bf16.msra.mxu0 0
    %805 = vmatprep.subr.bf16.mxu0 0
    %806 = vmatpush1.bf16.msra.mxu0 0
    %807 = vmatprep.subr.bf16.mxu0 0
    %808 = vmatpush1.bf16.msra.mxu0 0
    %809 = vmatprep.subr.bf16.mxu0 0
    %810 = vmatpush1.bf16.msra.mxu0 0
    %811 = vmatprep.subr.bf16.mxu0 0
    %812 = vmatpush1.bf16.msra.mxu0 0
    %813 = vmatprep.subr.bf16.mxu0 0
    %814 = vmatpush1.bf16.msra.mxu0 0
    %815 = vmatprep.subr.bf16.mxu0 0
    %816 = vmatpush1.bf16.msra.mxu0 0
    %817 = vmatprep.subr.bf16.mxu0 0
    %818 = vmatpush1.bf16.msra.mxu0 0
    %819 = vmatprep.mubr.bf16.mxu0 0
    %820 = vmatmul.mubr.bf16.gmra.mrb[0].mxu0 %v782
    %v821 = vpop.f32.mrb[0].mxu0
    %v822 = vadd.f32 0.0, %v821
    %v823 = vpop.f32.mrb[0].mxu0
    %v824 = vpop.f32.mrb[0].mxu0
    %v825 = vpop.f32.mrb[0].mxu0
    %826 = vdwg.mxu0
    %v827 = vpack.c.bf16 %v822, %v774
    %829 = vrot.lane.b32.xlu0 %v827, 8
    %v830 = vpop.permute.xlu0 %829
    %vm832 = vcmask 97344
    %833 = vst.msk [vmem:[#allocation3] sm:$0xff] %vm832, %v830
    %v834 = vld [vmem:[#allocation2] sm:$0xff]
    %v836 = vunpack.c.l.b16 %v834
    %v837 = vunpack.c.h.b16 %v834
    %v838 = vpack.c.b16 %v836, %v836
    %839 = vrot.lane.b32.xlu0 %v838, 116
    %v840 = vpop.permute.xlu0 %839
    %841 = vrot.lane.b32.xlu0 %v838, 84
    %v842 = vpop.permute.xlu0 %841
    %v844 = vsel %vm149, %v840, 0
    %v847 = vsel %vm149, %v842, 0
    %849 = vmatprep.subr.bf16.mxu0 0
    %850 = vmatpush1.bf16.xpose.msra.mxu0 %v847
    %851 = vmatprep.subr.bf16.mxu0 0
    %852 = vmatpush1.bf16.xpose.msra.mxu0 0
    %853 = vmatprep.subr.bf16.mxu0 0
    %854 = vmatpush1.bf16.xpose.msra.mxu0 0
    %855 = vmatprep.subr.bf16.mxu0 0
    %856 = vmatpush1.bf16.xpose.msra.mxu0 0
    %857 = vmatprep.subr.bf16.mxu0 0
    %858 = vmatpush1.bf16.xpose.msra.mxu0 0
    %859 = vmatprep.subr.bf16.mxu0 0
    %860 = vmatpush1.bf16.xpose.msra.mxu0 0
    %861 = vmatprep.subr.bf16.mxu0 0
    %862 = vmatpush1.bf16.xpose.msra.mxu0 0
    %863 = vmatprep.subr.bf16.mxu0 0
    %864 = vmatpush1.bf16.xpose.msra.mxu0 0
    %865 = vmatprep.subr.bf16.mxu0 0
    %866 = vmatpush1.bf16.xpose.msra.mxu0 0
    %867 = vmatprep.subr.bf16.mxu0 0
    %868 = vmatpush1.bf16.xpose.msra.mxu0 0
    %869 = vmatprep.subr.bf16.mxu0 0
    %870 = vmatpush1.bf16.xpose.msra.mxu0 0
    %871 = vmatprep.subr.bf16.mxu0 0
    %872 = vmatpush1.bf16.xpose.msra.mxu0 0
    %873 = vmatprep.subr.bf16.mxu0 0
    %874 = vmatpush1.bf16.xpose.msra.mxu0 0
    %875 = vmatprep.subr.bf16.mxu0 0
    %876 = vmatpush1.bf16.xpose.msra.mxu0 0
    %877 = vmatprep.subr.bf16.mxu0 0
    %878 = vmatpush1.bf16.xpose.msra.mxu0 0
    %879 = vmatprep.subr.bf16.mxu0 0
    %880 = vmatpush1.bf16.xpose.msra.mxu0 0
    %881 = vmatprep.mubr.bf16.mxu0 0
    %882 = vmatmul.mubr.bf16.gmra.mrb[0].mxu0 %v844
    %v883 = vpop.f32.mrb[0].mxu0
    %v884 = vadd.f32 0.0, %v883
    %v885 = vpop.f32.mrb[0].mxu0
    %v886 = vpop.f32.mrb[0].mxu0
    %v887 = vpop.f32.mrb[0].mxu0
    %888 = vdwg.mxu0
    %v889 = vpack.c.b16 %v837, %v837
    %890 = vrot.lane.b32.xlu0 %v889, 116
    %v891 = vpop.permute.xlu0 %890
    %892 = vrot.lane.b32.xlu0 %v889, 84
    %v893 = vpop.permute.xlu0 %892
    %v895 = vsel %vm149, %v891, 0
    %v898 = vsel %vm149, %v893, 0
    %900 = vmatprep.subr.bf16.mxu0 0
    %901 = vmatpush1.bf16.xpose.msra.mxu0 %v898
    %902 = vmatprep.subr.bf16.mxu0 0
    %903 = vmatpush1.bf16.xpose.msra.mxu0 0
    %904 = vmatprep.subr.bf16.mxu0 0
    %905 = vmatpush1.bf16.xpose.msra.mxu0 0
    %906 = vmatprep.subr.bf16.mxu0 0
    %907 = vmatpush1.bf16.xpose.msra.mxu0 0
    %908 = vmatprep.subr.bf16.mxu0 0
    %909 = vmatpush1.bf16.xpose.msra.mxu0 0
    %910 = vmatprep.subr.bf16.mxu0 0
    %911 = vmatpush1.bf16.xpose.msra.mxu0 0
    %912 = vmatprep.subr.bf16.mxu0 0
    %913 = vmatpush1.bf16.xpose.msra.mxu0 0
    %914 = vmatprep.subr.bf16.mxu0 0
    %915 = vmatpush1.bf16.xpose.msra.mxu0 0
    %916 = vmatprep.subr.bf16.mxu0 0
    %917 = vmatpush1.bf16.xpose.msra.mxu0 0
    %918 = vmatprep.subr.bf16.mxu0 0
    %919 = vmatpush1.bf16.xpose.msra.mxu0 0
    %920 = vmatprep.subr.bf16.mxu0 0
    %921 = vmatpush1.bf16.xpose.msra.mxu0 0
    %922 = vmatprep.subr.bf16.mxu0 0
    %923 = vmatpush1.bf16.xpose.msra.mxu0 0
    %924 = vmatprep.subr.bf16.mxu0 0
    %925 = vmatpush1.bf16.xpose.msra.mxu0 0
    %926 = vmatprep.subr.bf16.mxu0 0
    %927 = vmatpush1.bf16.xpose.msra.mxu0 0
    %928 = vmatprep.subr.bf16.mxu0 0
    %929 = vmatpush1.bf16.xpose.msra.mxu0 0
    %930 = vmatprep.subr.bf16.mxu0 0
    %931 = vmatpush1.bf16.xpose.msra.mxu0 0
    %932 = vmatprep.mubr.bf16.mxu0 0
    %933 = vmatmul.mubr.bf16.gmra.mrb[0].mxu0 %v895
    %v934 = vpop.f32.mrb[0].mxu0
    %v935 = vadd.f32 0.0, %v934
    %v936 = vpop.f32.mrb[0].mxu0
    %v937 = vpop.f32.mrb[0].mxu0
    %v938 = vpop.f32.mrb[0].mxu0
    %939 = vdwg.mxu0
    %v940 = vsel %vm244, %v884, -inf
    %941 = vmax.xlane.f32.xlu0 %v940
    %v942 = vpop.xlane.xlu0 %941
    %v943 = vsel %vm244, %v935, -inf
    %944 = vmax.xlane.f32.xlu0 %v943
    %v945 = vpop.xlane.xlu0 %944
    %v946 = vsub.f32 %v884, %v942
    %v947 = vsub.f32 %v935, %v945
    %v948 = vmul.f32 %v946, 1.442695
    %v949 = vpow.pop %v948
    %v950 = vmul.f32 %v947, 1.442695
    %v951 = vpow.pop %v950
    %v952 = vsel %vm244, %v949, 0.0
    %953 = vadd.xlane.f32.xlu0 %v952
    %v954 = vpop.xlane.xlu0 %953
    %v955 = vsel %vm244, %v951, 0.0
    %956 = vadd.xlane.f32.xlu0 %v955
    %v957 = vpop.xlane.xlu0 %956
    %v958 = vrcp.pop %v954
    %v959 = vrcp.pop %v957
    %v960 = vmul.f32 %v949, %v958
    %v961 = vmul.f32 %v951, %v959
    %v962 = vpack.c.bf16 %v960, %v960
    %v963 = vpack.c.bf16 %v961, %v961
    %964 = vrot.lane.b32.xlu0 %v838, 52
    %v965 = vpop.permute.xlu0 %964
    %v967 = vsel %vm244, %v962, 0
    %v970 = vsel %vm274, %v965, 0
    %972 = vmatprep.subr.bf16.mxu0 0
    %973 = vmatpush1.bf16.msra.mxu0 %v970
    %974 = vmatprep.subr.bf16.mxu0 0
    %975 = vmatpush1.bf16.msra.mxu0 0
    %976 = vmatprep.subr.bf16.mxu0 0
    %977 = vmatpush1.bf16.msra.mxu0 0
    %978 = vmatprep.subr.bf16.mxu0 0
    %979 = vmatpush1.bf16.msra.mxu0 0
    %980 = vmatprep.subr.bf16.mxu0 0
    %981 = vmatpush1.bf16.msra.mxu0 0
    %982 = vmatprep.subr.bf16.mxu0 0
    %983 = vmatpush1.bf16.msra.mxu0 0
    %984 = vmatprep.subr.bf16.mxu0 0
    %985 = vmatpush1.bf16.msra.mxu0 0
    %986 = vmatprep.subr.bf16.mxu0 0
    %987 = vmatpush1.bf16.msra.mxu0 0
    %988 = vmatprep.subr.bf16.mxu0 0
    %989 = vmatpush1.bf16.msra.mxu0 0
    %990 = vmatprep.subr.bf16.mxu0 0
    %991 = vmatpush1.bf16.msra.mxu0 0
    %992 = vmatprep.subr.bf16.mxu0 0
    %993 = vmatpush1.bf16.msra.mxu0 0
    %994 = vmatprep.subr.bf16.mxu0 0
    %995 = vmatpush1.bf16.msra.mxu0 0
    %996 = vmatprep.subr.bf16.mxu0 0
    %997 = vmatpush1.bf16.msra.mxu0 0
    %998 = vmatprep.subr.bf16.mxu0 0
    %999 = vmatpush1.bf16.msra.mxu0 0
    %1000 = vmatprep.subr.bf16.mxu0 0
    %1001 = vmatpush1.bf16.msra.mxu0 0
    %1002 = vmatprep.subr.bf16.mxu0 0
    %1003 = vmatpush1.bf16.msra.mxu0 0
    %1004 = vmatprep.mubr.bf16.mxu0 0
    %1005 = vmatmul.mubr.bf16.gmra.mrb[0].mxu0 %v967
    %v1006 = vpop.f32.mrb[0].mxu0
    %v1007 = vadd.f32 0.0, %v1006
    %v1008 = vpop.f32.mrb[0].mxu0
    %v1009 = vpop.f32.mrb[0].mxu0
    %v1010 = vpop.f32.mrb[0].mxu0
    %1011 = vdwg.mxu0
    %1012 = vrot.lane.b32.xlu0 %v889, 52
    %v1013 = vpop.permute.xlu0 %1012
    %v1015 = vsel %vm244, %v963, 0
    %v1018 = vsel %vm274, %v1013, 0
    %1020 = vmatprep.subr.bf16.mxu0 0
    %1021 = vmatpush1.bf16.msra.mxu0 %v1018
    %1022 = vmatprep.subr.bf16.mxu0 0
    %1023 = vmatpush1.bf16.msra.mxu0 0
    %1024 = vmatprep.subr.bf16.mxu0 0
    %1025 = vmatpush1.bf16.msra.mxu0 0
    %1026 = vmatprep.subr.bf16.mxu0 0
    %1027 = vmatpush1.bf16.msra.mxu0 0
    %1028 = vmatprep.subr.bf16.mxu0 0
    %1029 = vmatpush1.bf16.msra.mxu0 0
    %1030 = vmatprep.subr.bf16.mxu0 0
    %1031 = vmatpush1.bf16.msra.mxu0 0
    %1032 = vmatprep.subr.bf16.mxu0 0
    %1033 = vmatpush1.bf16.msra.mxu0 0
    %1034 = vmatprep.subr.bf16.mxu0 0
    %1035 = vmatpush1.bf16.msra.mxu0 0
    %1036 = vmatprep.subr.bf16.mxu0 0
    %1037 = vmatpush1.bf16.msra.mxu0 0
    %1038 = vmatprep.subr.bf16.mxu0 0
    %1039 = vmatpush1.bf16.msra.mxu0 0
    %1040 = vmatprep.subr.bf16.mxu0 0
    %1041 = vmatpush1.bf16.msra.mxu0 0
    %1042 = vmatprep.subr.bf16.mxu0 0
    %1043 = vmatpush1.bf16.msra.mxu0 0
    %1044 = vmatprep.subr.bf16.mxu0 0
    %1045 = vmatpush1.bf16.msra.mxu0 0
    %1046 = vmatprep.subr.bf16.mxu0 0
    %1047 = vmatpush1.bf16.msra.mxu0 0
    %1048 = vmatprep.subr.bf16.mxu0 0
    %1049 = vmatpush1.bf16.msra.mxu0 0
    %1050 = vmatprep.subr.bf16.mxu0 0
    %1051 = vmatpush1.bf16.msra.mxu0 0
    %1052 = vmatprep.mubr.bf16.mxu0 0
    %1053 = vmatmul.mubr.bf16.gmra.mrb[0].mxu0 %v1015
    %v1054 = vpop.f32.mrb[0].mxu0
    %v1055 = vadd.f32 0.0, %v1054
    %v1056 = vpop.f32.mrb[0].mxu0
    %v1057 = vpop.f32.mrb[0].mxu0
    %v1058 = vpop.f32.mrb[0].mxu0
    %1059 = vdwg.mxu0
    %v1060 = vpack.c.bf16 %v1055, %v1007
    %1062 = vrot.lane.b32.xlu0 %v1060, 12
    %v1063 = vpop.permute.xlu0 %1062
    %vm1065 = vcmask 130144
    %1066 = vst.msk [vmem:[#allocation3] sm:$0xff] %vm1065, %v1063
    %v1067 = vld [vmem:[#allocation2] sm:$0xff]
    %v1069 = vunpack.c.l.b16 %v1067
    %v1070 = vunpack.c.h.b16 %v1067
    %v1071 = vpack.c.b16 %v1069, %v1069
    %1072 = vrot.lane.b32.xlu0 %v1071, 112
    %v1073 = vpop.permute.xlu0 %1072
    %1074 = vrot.lane.b32.xlu0 %v1071, 80
    %v1075 = vpop.permute.xlu0 %1074
    %v1077 = vsel %vm149, %v1073, 0
    %v1080 = vsel %vm149, %v1075, 0
    %1082 = vmatprep.subr.bf16.mxu0 0
    %1083 = vmatpush1.bf16.xpose.msra.mxu0 %v1080
    %1084 = vmatprep.subr.bf16.mxu0 0
    %1085 = vmatpush1.bf16.xpose.msra.mxu0 0
    %1086 = vmatprep.subr.bf16.mxu0 0
    %1087 = vmatpush1.bf16.xpose.msra.mxu0 0
    %1088 = vmatprep.subr.bf16.mxu0 0
    %1089 = vmatpush1.bf16.xpose.msra.mxu0 0
    %1090 = vmatprep.subr.bf16.mxu0 0
    %1091 = vmatpush1.bf16.xpose.msra.mxu0 0
    %1092 = vmatprep.subr.bf16.mxu0 0
    %1093 = vmatpush1.bf16.xpose.msra.mxu0 0
    %1094 = vmatprep.subr.bf16.mxu0 0
    %1095 = vmatpush1.bf16.xpose.msra.mxu0 0
    %1096 = vmatprep.subr.bf16.mxu0 0
    %1097 = vmatpush1.bf16.xpose.msra.mxu0 0
    %1098 = vmatprep.subr.bf16.mxu0 0
    %1099 = vmatpush1.bf16.xpose.msra.mxu0 0
    %1100 = vmatprep.subr.bf16.mxu0 0
    %1101 = vmatpush1.bf16.xpose.msra.mxu0 0
    %1102 = vmatprep.subr.bf16.mxu0 0
    %1103 = vmatpush1.bf16.xpose.msra.mxu0 0
    %1104 = vmatprep.subr.bf16.mxu0 0
    %1105 = vmatpush1.bf16.xpose.msra.mxu0 0
    %1106 = vmatprep.subr.bf16.mxu0 0
    %1107 = vmatpush1.bf16.xpose.msra.mxu0 0
    %1108 = vmatprep.subr.bf16.mxu0 0
    %1109 = vmatpush1.bf16.xpose.msra.mxu0 0
    %1110 = vmatprep.subr.bf16.mxu0 0
    %1111 = vmatpush1.bf16.xpose.msra.mxu0 0
    %1112 = vmatprep.subr.bf16.mxu0 0
    %1113 = vmatpush1.bf16.xpose.msra.mxu0 0
    %1114 = vmatprep.mubr.bf16.mxu0 0
    %1115 = vmatmul.mubr.bf16.gmra.mrb[0].mxu0 %v1077
    %v1116 = vpop.f32.mrb[0].mxu0
    %v1117 = vadd.f32 0.0, %v1116
    %v1118 = vpop.f32.mrb[0].mxu0
    %v1119 = vpop.f32.mrb[0].mxu0
    %v1120 = vpop.f32.mrb[0].mxu0
    %1121 = vdwg.mxu0
    %v1122 = vpack.c.b16 %v1070, %v1070
    %1123 = vrot.lane.b32.xlu0 %v1122, 112
    %v1124 = vpop.permute.xlu0 %1123
    %1125 = vrot.lane.b32.xlu0 %v1122, 80
    %v1126 = vpop.permute.xlu0 %1125
    %v1128 = vsel %vm149, %v1124, 0
    %v1131 = vsel %vm149, %v1126, 0
    %1133 = vmatprep.subr.bf16.mxu0 0
    %1134 = vmatpush1.bf16.xpose.msra.mxu0 %v1131
    %1135 = vmatprep.subr.bf16.mxu0 0
    %1136 = vmatpush1.bf16.xpose.msra.mxu0 0
    %1137 = vmatprep.subr.bf16.mxu0 0
    %1138 = vmatpush1.bf16.xpose.msra.mxu0 0
    %1139 = vmatprep.subr.bf16.mxu0 0
    %1140 = vmatpush1.bf16.xpose.msra.mxu0 0
    %1141 = vmatprep.subr.bf16.mxu0 0
    %1142 = vmatpush1.bf16.xpose.msra.mxu0 0
    %1143 = vmatprep.subr.bf16.mxu0 0
    %1144 = vmatpush1.bf16.xpose.msra.mxu0 0
    %1145 = vmatprep.subr.bf16.mxu0 0
    %1146 = vmatpush1.bf16.xpose.msra.mxu0 0
    %1147 = vmatprep.subr.bf16.mxu0 0
    %1148 = vmatpush1.bf16.xpose.msra.mxu0 0
    %1149 = vmatprep.subr.bf16.mxu0 0
    %1150 = vmatpush1.bf16.xpose.msra.mxu0 0
    %1151 = vmatprep.subr.bf16.mxu0 0
    %1152 = vmatpush1.bf16.xpose.msra.mxu0 0
    %1153 = vmatprep.subr.bf16.mxu0 0
    %1154 = vmatpush1.bf16.xpose.msra.mxu0 0
    %1155 = vmatprep.subr.bf16.mxu0 0
    %1156 = vmatpush1.bf16.xpose.msra.mxu0 0
    %1157 = vmatprep.subr.bf16.mxu0 0
    %1158 = vmatpush1.bf16.xpose.msra.mxu0 0
    %1159 = vmatprep.subr.bf16.mxu0 0
    %1160 = vmatpush1.bf16.xpose.msra.mxu0 0
    %1161 = vmatprep.subr.bf16.mxu0 0
    %1162 = vmatpush1.bf16.xpose.msra.mxu0 0
    %1163 = vmatprep.subr.bf16.mxu0 0
    %1164 = vmatpush1.bf16.xpose.msra.mxu0 0
    %1165 = vmatprep.mubr.bf16.mxu0 0
    %1166 = vmatmul.mubr.bf16.gmra.mrb[0].mxu0 %v1128
    %v1167 = vpop.f32.mrb[0].mxu0
    %v1168 = vadd.f32 0.0, %v1167
    %v1169 = vpop.f32.mrb[0].mxu0
    %v1170 = vpop.f32.mrb[0].mxu0
    %v1171 = vpop.f32.mrb[0].mxu0
    %1172 = vdwg.mxu0
    %v1173 = vsel %vm244, %v1117, -inf
    %1174 = vmax.xlane.f32.xlu0 %v1173
    %v1175 = vpop.xlane.xlu0 %1174
    %v1176 = vsel %vm244, %v1168, -inf
    %1177 = vmax.xlane.f32.xlu0 %v1176
    %v1178 = vpop.xlane.xlu0 %1177
    %v1179 = vsub.f32 %v1117, %v1175
    %v1180 = vsub.f32 %v1168, %v1178
    %v1181 = vmul.f32 %v1179, 1.442695
    %v1182 = vpow.pop %v1181
    %v1183 = vmul.f32 %v1180, 1.442695
    %v1184 = vpow.pop %v1183
    %v1185 = vsel %vm244, %v1182, 0.0
    %1186 = vadd.xlane.f32.xlu0 %v1185
    %v1187 = vpop.xlane.xlu0 %1186
    %v1188 = vsel %vm244, %v1184, 0.0
    %1189 = vadd.xlane.f32.xlu0 %v1188
    %v1190 = vpop.xlane.xlu0 %1189
    %v1191 = vrcp.pop %v1187
    %v1192 = vrcp.pop %v1190
    %v1193 = vmul.f32 %v1182, %v1191
    %v1194 = vmul.f32 %v1184, %v1192
    %v1195 = vpack.c.bf16 %v1193, %v1193
    %v1196 = vpack.c.bf16 %v1194, %v1194
    %1197 = vrot.lane.b32.xlu0 %v1071, 48
    %v1198 = vpop.permute.xlu0 %1197
    %v1200 = vsel %vm244, %v1195, 0
    %v1203 = vsel %vm274, %v1198, 0
    %1205 = vmatprep.subr.bf16.mxu0 0
    %1206 = vmatpush1.bf16.msra.mxu0 %v1203
    %1207 = vmatprep.subr.bf16.mxu0 0
    %1208 = vmatpush1.bf16.msra.mxu0 0
    %1209 = vmatprep.subr.bf16.mxu0 0
    %1210 = vmatpush1.bf16.msra.mxu0 0
    %1211 = vmatprep.subr.bf16.mxu0 0
    %1212 = vmatpush1.bf16.msra.mxu0 0
    %1213 = vmatprep.subr.bf16.mxu0 0
    %1214 = vmatpush1.bf16.msra.mxu0 0
    %1215 = vmatprep.subr.bf16.mxu0 0
    %1216 = vmatpush1.bf16.msra.mxu0 0
    %1217 = vmatprep.subr.bf16.mxu0 0
    %1218 = vmatpush1.bf16.msra.mxu0 0
    %1219 = vmatprep.subr.bf16.mxu0 0
    %1220 = vmatpush1.bf16.msra.mxu0 0
    %1221 = vmatprep.subr.bf16.mxu0 0
    %1222 = vmatpush1.bf16.msra.mxu0 0
    %1223 = vmatprep.subr.bf16.mxu0 0
    %1224 = vmatpush1.bf16.msra.mxu0 0
    %1225 = vmatprep.subr.bf16.mxu0 0
    %1226 = vmatpush1.bf16.msra.mxu0 0
    %1227 = vmatprep.subr.bf16.mxu0 0
    %1228 = vmatpush1.bf16.msra.mxu0 0
    %1229 = vmatprep.subr.bf16.mxu0 0
    %1230 = vmatpush1.bf16.msra.mxu0 0
    %1231 = vmatprep.subr.bf16.mxu0 0
    %1232 = vmatpush1.bf16.msra.mxu0 0
    %1233 = vmatprep.subr.bf16.mxu0 0
    %1234 = vmatpush1.bf16.msra.mxu0 0
    %1235 = vmatprep.subr.bf16.mxu0 0
    %1236 = vmatpush1.bf16.msra.mxu0 0
    %1237 = vmatprep.mubr.bf16.mxu0 0
    %1238 = vmatmul.mubr.bf16.gmra.mrb[0].mxu0 %v1200
    %v1239 = vpop.f32.mrb[0].mxu0
    %v1240 = vadd.f32 0.0, %v1239
    %v1241 = vpop.f32.mrb[0].mxu0
    %v1242 = vpop.f32.mrb[0].mxu0
    %v1243 = vpop.f32.mrb[0].mxu0
    %1244 = vdwg.mxu0
    %1245 = vrot.lane.b32.xlu0 %v1122, 48
    %v1246 = vpop.permute.xlu0 %1245
    %v1248 = vsel %vm244, %v1196, 0
    %v1251 = vsel %vm274, %v1246, 0
    %1253 = vmatprep.subr.bf16.mxu0 0
    %1254 = vmatpush1.bf16.msra.mxu0 %v1251
    %1255 = vmatprep.subr.bf16.mxu0 0
    %1256 = vmatpush1.bf16.msra.mxu0 0
    %1257 = vmatprep.subr.bf16.mxu0 0
    %1258 = vmatpush1.bf16.msra.mxu0 0
    %1259 = vmatprep.subr.bf16.mxu0 0
    %1260 = vmatpush1.bf16.msra.mxu0 0
    %1261 = vmatprep.subr.bf16.mxu0 0
    %1262 = vmatpush1.bf16.msra.mxu0 0
    %1263 = vmatprep.subr.bf16.mxu0 0
    %1264 = vmatpush1.bf16.msra.mxu0 0
    %1265 = vmatprep.subr.bf16.mxu0 0
    %1266 = vmatpush1.bf16.msra.mxu0 0
    %1267 = vmatprep.subr.bf16.mxu0 0
    %1268 = vmatpush1.bf16.msra.mxu0 0
    %1269 = vmatprep.subr.bf16.mxu0 0
    %1270 = vmatpush1.bf16.msra.mxu0 0
    %1271 = vmatprep.subr.bf16.mxu0 0
    %1272 = vmatpush1.bf16.msra.mxu0 0
    %1273 = vmatprep.subr.bf16.mxu0 0
    %1274 = vmatpush1.bf16.msra.mxu0 0
    %1275 = vmatprep.subr.bf16.mxu0 0
    %1276 = vmatpush1.bf16.msra.mxu0 0
    %1277 = vmatprep.subr.bf16.mxu0 0
    %1278 = vmatpush1.bf16.msra.mxu0 0
    %1279 = vmatprep.subr.bf16.mxu0 0
    %1280 = vmatpush1.bf16.msra.mxu0 0
    %1281 = vmatprep.subr.bf16.mxu0 0
    %1282 = vmatpush1.bf16.msra.mxu0 0
    %1283 = vmatprep.subr.bf16.mxu0 0
    %1284 = vmatpush1.bf16.msra.mxu0 0
    %1285 = vmatprep.mubr.bf16.mxu0 0
    %1286 = vmatmul.mubr.bf16.gmra.mrb[0].mxu0 %v1248
    %v1287 = vpop.f32.mrb[0].mxu0
    %v1288 = vadd.f32 0.0, %v1287
    %v1289 = vpop.f32.mrb[0].mxu0
    %v1290 = vpop.f32.mrb[0].mxu0
    %v1291 = vpop.f32.mrb[0].mxu0
    %1292 = vdwg.mxu0
    %v1293 = vpack.c.bf16 %v1288, %v1240
    %1295 = vrot.lane.b32.xlu0 %v1293, 16
    %v1296 = vpop.permute.xlu0 %1295
    %vm1298 = vcmask 162944
    %1299 = vst.msk [vmem:[#allocation3] sm:$0xff] %vm1298, %v1296
    %v1300 = vld [vmem:[#allocation2] sm:$0xff]
    %v1302 = vunpack.c.l.b16 %v1300
    %v1303 = vunpack.c.h.b16 %v1300
    %v1304 = vpack.c.b16 %v1302, %v1302
    %1305 = vrot.lane.b32.xlu0 %v1304, 108
    %v1306 = vpop.permute.xlu0 %1305
    %1307 = vrot.lane.b32.xlu0 %v1304, 76
    %v1308 = vpop.permute.xlu0 %1307
    %v1310 = vsel %vm149, %v1306, 0
    %v1313 = vsel %vm149, %v1308, 0
    %1315 = vmatprep.subr.bf16.mxu0 0
    %1316 = vmatpush1.bf16.xpose.msra.mxu0 %v1313
    %1317 = vmatprep.subr.bf16.mxu0 0
    %1318 = vmatpush1.bf16.xpose.msra.mxu0 0
    %1319 = vmatprep.subr.bf16.mxu0 0
    %1320 = vmatpush1.bf16.xpose.msra.mxu0 0
    %1321 = vmatprep.subr.bf16.mxu0 0
    %1322 = vmatpush1.bf16.xpose.msra.mxu0 0
    %1323 = vmatprep.subr.bf16.mxu0 0
    %1324 = vmatpush1.bf16.xpose.msra.mxu0 0
    %1325 = vmatprep.subr.bf16.mxu0 0
    %1326 = vmatpush1.bf16.xpose.msra.mxu0 0
    %1327 = vmatprep.subr.bf16.mxu0 0
    %1328 = vmatpush1.bf16.xpose.msra.mxu0 0
    %1329 = vmatprep.subr.bf16.mxu0 0
    %1330 = vmatpush1.bf16.xpose.msra.mxu0 0
    %1331 = vmatprep.subr.bf16.mxu0 0
    %1332 = vmatpush1.bf16.xpose.msra.mxu0 0
    %1333 = vmatprep.subr.bf16.mxu0 0
    %1334 = vmatpush1.bf16.xpose.msra.mxu0 0
    %1335 = vmatprep.subr.bf16.mxu0 0
    %1336 = vmatpush1.bf16.xpose.msra.mxu0 0
    %1337 = vmatprep.subr.bf16.mxu0 0
    %1338 = vmatpush1.bf16.xpose.msra.mxu0 0
    %1339 = vmatprep.subr.bf16.mxu0 0
    %1340 = vmatpush1.bf16.xpose.msra.mxu0 0
    %1341 = vmatprep.subr.bf16.mxu0 0
    %1342 = vmatpush1.bf16.xpose.msra.mxu0 0
    %1343 = vmatprep.subr.bf16.mxu0 0
    %1344 = vmatpush1.bf16.xpose.msra.mxu0 0
    %1345 = vmatprep.subr.bf16.mxu0 0
    %1346 = vmatpush1.bf16.xpose.msra.mxu0 0
    %1347 = vmatprep.mubr.bf16.mxu0 0
    %1348 = vmatmul.mubr.bf16.gmra.mrb[0].mxu0 %v1310
    %v1349 = vpop.f32.mrb[0].mxu0
    %v1350 = vadd.f32 0.0, %v1349
    %v1351 = vpop.f32.mrb[0].mxu0
    %v1352 = vpop.f32.mrb[0].mxu0
    %v1353 = vpop.f32.mrb[0].mxu0
    %1354 = vdwg.mxu0
    %v1355 = vpack.c.b16 %v1303, %v1303
    %1356 = vrot.lane.b32.xlu0 %v1355, 108
    %v1357 = vpop.permute.xlu0 %1356
    %1358 = vrot.lane.b32.xlu0 %v1355, 76
    %v1359 = vpop.permute.xlu0 %1358
    %v1361 = vsel %vm149, %v1357, 0
    %v1364 = vsel %vm149, %v1359, 0
    %1366 = vmatprep.subr.bf16.mxu0 0
    %1367 = vmatpush1.bf16.xpose.msra.mxu0 %v1364
    %1368 = vmatprep.subr.bf16.mxu0 0
    %1369 = vmatpush1.bf16.xpose.msra.mxu0 0
    %1370 = vmatprep.subr.bf16.mxu0 0
    %1371 = vmatpush1.bf16.xpose.msra.mxu0 0
    %1372 = vmatprep.subr.bf16.mxu0 0
    %1373 = vmatpush1.bf16.xpose.msra.mxu0 0
    %1374 = vmatprep.subr.bf16.mxu0 0
    %1375 = vmatpush1.bf16.xpose.msra.mxu0 0
    %1376 = vmatprep.subr.bf16.mxu0 0
    %1377 = vmatpush1.bf16.xpose.msra.mxu0 0
    %1378 = vmatprep.subr.bf16.mxu0 0
    %1379 = vmatpush1.bf16.xpose.msra.mxu0 0
    %1380 = vmatprep.subr.bf16.mxu0 0
    %1381 = vmatpush1.bf16.xpose.msra.mxu0 0
    %1382 = vmatprep.subr.bf16.mxu0 0
    %1383 = vmatpush1.bf16.xpose.msra.mxu0 0
    %1384 = vmatprep.subr.bf16.mxu0 0
    %1385 = vmatpush1.bf16.xpose.msra.mxu0 0
    %1386 = vmatprep.subr.bf16.mxu0 0
    %1387 = vmatpush1.bf16.xpose.msra.mxu0 0
    %1388 = vmatprep.subr.bf16.mxu0 0
    %1389 = vmatpush1.bf16.xpose.msra.mxu0 0
    %1390 = vmatprep.subr.bf16.mxu0 0
    %1391 = vmatpush1.bf16.xpose.msra.mxu0 0
    %1392 = vmatprep.subr.bf16.mxu0 0
    %1393 = vmatpush1.bf16.xpose.msra.mxu0 0
    %1394 = vmatprep.subr.bf16.mxu0 0
    %1395 = vmatpush1.bf16.xpose.msra.mxu0 0
    %1396 = vmatprep.subr.bf16.mxu0 0
    %1397 = vmatpush1.bf16.xpose.msra.mxu0 0
    %1398 = vmatprep.mubr.bf16.mxu0 0
    %1399 = vmatmul.mubr.bf16.gmra.mrb[0].mxu0 %v1361
    %v1400 = vpop.f32.mrb[0].mxu0
    %v1401 = vadd.f32 0.0, %v1400
    %v1402 = vpop.f32.mrb[0].mxu0
    %v1403 = vpop.f32.mrb[0].mxu0
    %v1404 = vpop.f32.mrb[0].mxu0
    %1405 = vdwg.mxu0
    %v1406 = vsel %vm244, %v1350, -inf
    %1407 = vmax.xlane.f32.xlu0 %v1406
    %v1408 = vpop.xlane.xlu0 %1407
    %v1409 = vsel %vm244, %v1401, -inf
    %1410 = vmax.xlane.f32.xlu0 %v1409
    %v1411 = vpop.xlane.xlu0 %1410
    %v1412 = vsub.f32 %v1350, %v1408
    %v1413 = vsub.f32 %v1401, %v1411
    %v1414 = vmul.f32 %v1412, 1.442695
    %v1415 = vpow.pop %v1414
    %v1416 = vmul.f32 %v1413, 1.442695
    %v1417 = vpow.pop %v1416
    %v1418 = vsel %vm244, %v1415, 0.0
    %1419 = vadd.xlane.f32.xlu0 %v1418
    %v1420 = vpop.xlane.xlu0 %1419
    %v1421 = vsel %vm244, %v1417, 0.0
    %1422 = vadd.xlane.f32.xlu0 %v1421
    %v1423 = vpop.xlane.xlu0 %1422
    %v1424 = vrcp.pop %v1420
    %v1425 = vrcp.pop %v1423
    %v1426 = vmul.f32 %v1415, %v1424
    %v1427 = vmul.f32 %v1417, %v1425
    %v1428 = vpack.c.bf16 %v1426, %v1426
    %v1429 = vpack.c.bf16 %v1427, %v1427
    %1430 = vrot.lane.b32.xlu0 %v1304, 44
    %v1431 = vpop.permute.xlu0 %1430
    %v1433 = vsel %vm244, %v1428, 0
    %v1436 = vsel %vm274, %v1431, 0
    %1438 = vmatprep.subr.bf16.mxu0 0
    %1439 = vmatpush1.bf16.msra.mxu0 %v1436
    %1440 = vmatprep.subr.bf16.mxu0 0
    %1441 = vmatpush1.bf16.msra.mxu0 0
    %1442 = vmatprep.subr.bf16.mxu0 0
    %1443 = vmatpush1.bf16.msra.mxu0 0
    %1444 = vmatprep.subr.bf16.mxu0 0
    %1445 = vmatpush1.bf16.msra.mxu0 0
    %1446 = vmatprep.subr.bf16.mxu0 0
    %1447 = vmatpush1.bf16.msra.mxu0 0
    %1448 = vmatprep.subr.bf16.mxu0 0
    %1449 = vmatpush1.bf16.msra.mxu0 0
    %1450 = vmatprep.subr.bf16.mxu0 0
    %1451 = vmatpush1.bf16.msra.mxu0 0
    %1452 = vmatprep.subr.bf16.mxu0 0
    %1453 = vmatpush1.bf16.msra.mxu0 0
    %1454 = vmatprep.subr.bf16.mxu0 0
    %1455 = vmatpush1.bf16.msra.mxu0 0
    %1456 = vmatprep.subr.bf16.mxu0 0
    %1457 = vmatpush1.bf16.msra.mxu0 0
    %1458 = vmatprep.subr.bf16.mxu0 0
    %1459 = vmatpush1.bf16.msra.mxu0 0
    %1460 = vmatprep.subr.bf16.mxu0 0
    %1461 = vmatpush1.bf16.msra.mxu0 0
    %1462 = vmatprep.subr.bf16.mxu0 0
    %1463 = vmatpush1.bf16.msra.mxu0 0
    %1464 = vmatprep.subr.bf16.mxu0 0
    %1465 = vmatpush1.bf16.msra.mxu0 0
    %1466 = vmatprep.subr.bf16.mxu0 0
    %1467 = vmatpush1.bf16.msra.mxu0 0
    %1468 = vmatprep.subr.bf16.mxu0 0
    %1469 = vmatpush1.bf16.msra.mxu0 0
    %1470 = vmatprep.mubr.bf16.mxu0 0
    %1471 = vmatmul.mubr.bf16.gmra.mrb[0].mxu0 %v1433
    %v1472 = vpop.f32.mrb[0].mxu0
    %v1473 = vadd.f32 0.0, %v1472
    %v1474 = vpop.f32.mrb[0].mxu0
    %v1475 = vpop.f32.mrb[0].mxu0
    %v1476 = vpop.f32.mrb[0].mxu0
    %1477 = vdwg.mxu0
    %1478 = vrot.lane.b32.xlu0 %v1355, 44
    %v1479 = vpop.permute.xlu0 %1478
    %v1481 = vsel %vm244, %v1429, 0
    %v1484 = vsel %vm274, %v1479, 0
    %1486 = vmatprep.subr.bf16.mxu0 0
    %1487 = vmatpush1.bf16.msra.mxu0 %v1484
    %1488 = vmatprep.subr.bf16.mxu0 0
    %1489 = vmatpush1.bf16.msra.mxu0 0
    %1490 = vmatprep.subr.bf16.mxu0 0
    %1491 = vmatpush1.bf16.msra.mxu0 0
    %1492 = vmatprep.subr.bf16.mxu0 0
    %1493 = vmatpush1.bf16.msra.mxu0 0
    %1494 = vmatprep.subr.bf16.mxu0 0
    %1495 = vmatpush1.bf16.msra.mxu0 0
    %1496 = vmatprep.subr.bf16.mxu0 0
    %1497 = vmatpush1.bf16.msra.mxu0 0
    %1498 = vmatprep.subr.bf16.mxu0 0
    %1499 = vmatpush1.bf16.msra.mxu0 0
    %1500 = vmatprep.subr.bf16.mxu0 0
    %1501 = vmatpush1.bf16.msra.mxu0 0
    %1502 = vmatprep.subr.bf16.mxu0 0
    %1503 = vmatpush1.bf16.msra.mxu0 0
    %1504 = vmatprep.subr.bf16.mxu0 0
    %1505 = vmatpush1.bf16.msra.mxu0 0
    %1506 = vmatprep.subr.bf16.mxu0 0
    %1507 = vmatpush1.bf16.msra.mxu0 0
    %1508 = vmatprep.subr.bf16.mxu0 0
    %1509 = vmatpush1.bf16.msra.mxu0 0
    %1510 = vmatprep.subr.bf16.mxu0 0
    %1511 = vmatpush1.bf16.msra.mxu0 0
    %1512 = vmatprep.subr.bf16.mxu0 0
    %1513 = vmatpush1.bf16.msra.mxu0 0
    %1514 = vmatprep.subr.bf16.mxu0 0
    %1515 = vmatpush1.bf16.msra.mxu0 0
    %1516 = vmatprep.subr.bf16.mxu0 0
    %1517 = vmatpush1.bf16.msra.mxu0 0
    %1518 = vmatprep.mubr.bf16.mxu0 0
    %1519 = vmatmul.mubr.bf16.gmra.mrb[0].mxu0 %v1481
    %v1520 = vpop.f32.mrb[0].mxu0
    %v1521 = vadd.f32 0.0, %v1520
    %v1522 = vpop.f32.mrb[0].mxu0
    %v1523 = vpop.f32.mrb[0].mxu0
    %v1524 = vpop.f32.mrb[0].mxu0
    %1525 = vdwg.mxu0
    %v1526 = vpack.c.bf16 %v1521, %v1473
    %1528 = vrot.lane.b32.xlu0 %v1526, 20
    %v1529 = vpop.permute.xlu0 %1528
    %vm1531 = vcmask 195744
    %1532 = vst.msk [vmem:[#allocation3] sm:$0xff] %vm1531, %v1529
    %v1533 = vld [vmem:[#allocation2] sm:$0xff]
    %v1535 = vunpack.c.l.b16 %v1533
    %v1536 = vunpack.c.h.b16 %v1533
    %v1537 = vpack.c.b16 %v1535, %v1535
    %1538 = vrot.lane.b32.xlu0 %v1537, 104
    %v1539 = vpop.permute.xlu0 %1538
    %1540 = vrot.lane.b32.xlu0 %v1537, 72
    %v1541 = vpop.permute.xlu0 %1540
    %v1543 = vsel %vm149, %v1539, 0
    %v1546 = vsel %vm149, %v1541, 0
    %1548 = vmatprep.subr.bf16.mxu0 0
    %1549 = vmatpush1.bf16.xpose.msra.mxu0 %v1546
    %1550 = vmatprep.subr.bf16.mxu0 0
    %1551 = vmatpush1.bf16.xpose.msra.mxu0 0
    %1552 = vmatprep.subr.bf16.mxu0 0
    %1553 = vmatpush1.bf16.xpose.msra.mxu0 0
    %1554 = vmatprep.subr.bf16.mxu0 0
    %1555 = vmatpush1.bf16.xpose.msra.mxu0 0
    %1556 = vmatprep.subr.bf16.mxu0 0
    %1557 = vmatpush1.bf16.xpose.msra.mxu0 0
    %1558 = vmatprep.subr.bf16.mxu0 0
    %1559 = vmatpush1.bf16.xpose.msra.mxu0 0
    %1560 = vmatprep.subr.bf16.mxu0 0
    %1561 = vmatpush1.bf16.xpose.msra.mxu0 0
    %1562 = vmatprep.subr.bf16.mxu0 0
    %1563 = vmatpush1.bf16.xpose.msra.mxu0 0
    %1564 = vmatprep.subr.bf16.mxu0 0
    %1565 = vmatpush1.bf16.xpose.msra.mxu0 0
    %1566 = vmatprep.subr.bf16.mxu0 0
    %1567 = vmatpush1.bf16.xpose.msra.mxu0 0
    %1568 = vmatprep.subr.bf16.mxu0 0
    %1569 = vmatpush1.bf16.xpose.msra.mxu0 0
    %1570 = vmatprep.subr.bf16.mxu0 0
    %1571 = vmatpush1.bf16.xpose.msra.mxu0 0
    %1572 = vmatprep.subr.bf16.mxu0 0
    %1573 = vmatpush1.bf16.xpose.msra.mxu0 0
    %1574 = vmatprep.subr.bf16.mxu0 0
    %1575 = vmatpush1.bf16.xpose.msra.mxu0 0
    %1576 = vmatprep.subr.bf16.mxu0 0
    %1577 = vmatpush1.bf16.xpose.msra.mxu0 0
    %1578 = vmatprep.subr.bf16.mxu0 0
    %1579 = vmatpush1.bf16.xpose.msra.mxu0 0
    %1580 = vmatprep.mubr.bf16.mxu0 0
    %1581 = vmatmul.mubr.bf16.gmra.mrb[0].mxu0 %v1543
    %v1582 = vpop.f32.mrb[0].mxu0
    %v1583 = vadd.f32 0.0, %v1582
    %v1584 = vpop.f32.mrb[0].mxu0
    %v1585 = vpop.f32.mrb[0].mxu0
    %v1586 = vpop.f32.mrb[0].mxu0
    %1587 = vdwg.mxu0
    %v1588 = vpack.c.b16 %v1536, %v1536
    %1589 = vrot.lane.b32.xlu0 %v1588, 104
    %v1590 = vpop.permute.xlu0 %1589
    %1591 = vrot.lane.b32.xlu0 %v1588, 72
    %v1592 = vpop.permute.xlu0 %1591
    %v1594 = vsel %vm149, %v1590, 0
    %v1597 = vsel %vm149, %v1592, 0
    %1599 = vmatprep.subr.bf16.mxu0 0
    %1600 = vmatpush1.bf16.xpose.msra.mxu0 %v1597
    %1601 = vmatprep.subr.bf16.mxu0 0
    %1602 = vmatpush1.bf16.xpose.msra.mxu0 0
    %1603 = vmatprep.subr.bf16.mxu0 0
    %1604 = vmatpush1.bf16.xpose.msra.mxu0 0
    %1605 = vmatprep.subr.bf16.mxu0 0
    %1606 = vmatpush1.bf16.xpose.msra.mxu0 0
    %1607 = vmatprep.subr.bf16.mxu0 0
    %1608 = vmatpush1.bf16.xpose.msra.mxu0 0
    %1609 = vmatprep.subr.bf16.mxu0 0
    %1610 = vmatpush1.bf16.xpose.msra.mxu0 0
    %1611 = vmatprep.subr.bf16.mxu0 0
    %1612 = vmatpush1.bf16.xpose.msra.mxu0 0
    %1613 = vmatprep.subr.bf16.mxu0 0
    %1614 = vmatpush1.bf16.xpose.msra.mxu0 0
    %1615 = vmatprep.subr.bf16.mxu0 0
    %1616 = vmatpush1.bf16.xpose.msra.mxu0 0
    %1617 = vmatprep.subr.bf16.mxu0 0
    %1618 = vmatpush1.bf16.xpose.msra.mxu0 0
    %1619 = vmatprep.subr.bf16.mxu0 0
    %1620 = vmatpush1.bf16.xpose.msra.mxu0 0
    %1621 = vmatprep.subr.bf16.mxu0 0
    %1622 = vmatpush1.bf16.xpose.msra.mxu0 0
    %1623 = vmatprep.subr.bf16.mxu0 0
    %1624 = vmatpush1.bf16.xpose.msra.mxu0 0
    %1625 = vmatprep.subr.bf16.mxu0 0
    %1626 = vmatpush1.bf16.xpose.msra.mxu0 0
    %1627 = vmatprep.subr.bf16.mxu0 0
    %1628 = vmatpush1.bf16.xpose.msra.mxu0 0
    %1629 = vmatprep.subr.bf16.mxu0 0
    %1630 = vmatpush1.bf16.xpose.msra.mxu0 0
    %1631 = vmatprep.mubr.bf16.mxu0 0
    %1632 = vmatmul.mubr.bf16.gmra.mrb[0].mxu0 %v1594
    %v1633 = vpop.f32.mrb[0].mxu0
    %v1634 = vadd.f32 0.0, %v1633
    %v1635 = vpop.f32.mrb[0].mxu0
    %v1636 = vpop.f32.mrb[0].mxu0
    %v1637 = vpop.f32.mrb[0].mxu0
    %1638 = vdwg.mxu0
    %v1639 = vsel %vm244, %v1583, -inf
    %1640 = vmax.xlane.f32.xlu0 %v1639
    %v1641 = vpop.xlane.xlu0 %1640
    %v1642 = vsel %vm244, %v1634, -inf
    %1643 = vmax.xlane.f32.xlu0 %v1642
    %v1644 = vpop.xlane.xlu0 %1643
    %v1645 = vsub.f32 %v1583, %v1641
    %v1646 = vsub.f32 %v1634, %v1644
    %v1647 = vmul.f32 %v1645, 1.442695
    %v1648 = vpow.pop %v1647
    %v1649 = vmul.f32 %v1646, 1.442695
    %v1650 = vpow.pop %v1649
    %v1651 = vsel %vm244, %v1648, 0.0
    %1652 = vadd.xlane.f32.xlu0 %v1651
    %v1653 = vpop.xlane.xlu0 %1652
    %v1654 = vsel %vm244, %v1650, 0.0
    %1655 = vadd.xlane.f32.xlu0 %v1654
    %v1656 = vpop.xlane.xlu0 %1655
    %v1657 = vrcp.pop %v1653
    %v1658 = vrcp.pop %v1656
    %v1659 = vmul.f32 %v1648, %v1657
    %v1660 = vmul.f32 %v1650, %v1658
    %v1661 = vpack.c.bf16 %v1659, %v1659
    %v1662 = vpack.c.bf16 %v1660, %v1660
    %1663 = vrot.lane.b32.xlu0 %v1537, 40
    %v1664 = vpop.permute.xlu0 %1663
    %v1666 = vsel %vm244, %v1661, 0
    %v1669 = vsel %vm274, %v1664, 0
    %1671 = vmatprep.subr.bf16.mxu0 0
    %1672 = vmatpush1.bf16.msra.mxu0 %v1669
    %1673 = vmatprep.subr.bf16.mxu0 0
    %1674 = vmatpush1.bf16.msra.mxu0 0
    %1675 = vmatprep.subr.bf16.mxu0 0
    %1676 = vmatpush1.bf16.msra.mxu0 0
    %1677 = vmatprep.subr.bf16.mxu0 0
    %1678 = vmatpush1.bf16.msra.mxu0 0
    %1679 = vmatprep.subr.bf16.mxu0 0
    %1680 = vmatpush1.bf16.msra.mxu0 0
    %1681 = vmatprep.subr.bf16.mxu0 0
    %1682 = vmatpush1.bf16.msra.mxu0 0
    %1683 = vmatprep.subr.bf16.mxu0 0
    %1684 = vmatpush1.bf16.msra.mxu0 0
    %1685 = vmatprep.subr.bf16.mxu0 0
    %1686 = vmatpush1.bf16.msra.mxu0 0
    %1687 = vmatprep.subr.bf16.mxu0 0
    %1688 = vmatpush1.bf16.msra.mxu0 0
    %1689 = vmatprep.subr.bf16.mxu0 0
    %1690 = vmatpush1.bf16.msra.mxu0 0
    %1691 = vmatprep.subr.bf16.mxu0 0
    %1692 = vmatpush1.bf16.msra.mxu0 0
    %1693 = vmatprep.subr.bf16.mxu0 0
    %1694 = vmatpush1.bf16.msra.mxu0 0
    %1695 = vmatprep.subr.bf16.mxu0 0
    %1696 = vmatpush1.bf16.msra.mxu0 0
    %1697 = vmatprep.subr.bf16.mxu0 0
    %1698 = vmatpush1.bf16.msra.mxu0 0
    %1699 = vmatprep.subr.bf16.mxu0 0
    %1700 = vmatpush1.bf16.msra.mxu0 0
    %1701 = vmatprep.subr.bf16.mxu0 0
    %1702 = vmatpush1.bf16.msra.mxu0 0
    %1703 = vmatprep.mubr.bf16.mxu0 0
    %1704 = vmatmul.mubr.bf16.gmra.mrb[0].mxu0 %v1666
    %v1705 = vpop.f32.mrb[0].mxu0
    %v1706 = vadd.f32 0.0, %v1705
    %v1707 = vpop.f32.mrb[0].mxu0
    %v1708 = vpop.f32.mrb[0].mxu0
    %v1709 = vpop.f32.mrb[0].mxu0
    %1710 = vdwg.mxu0
    %1711 = vrot.lane.b32.xlu0 %v1588, 40
    %v1712 = vpop.permute.xlu0 %1711
    %v1714 = vsel %vm244, %v1662, 0
    %v1717 = vsel %vm274, %v1712, 0
    %1719 = vmatprep.subr.bf16.mxu0 0
    %1720 = vmatpush1.bf16.msra.mxu0 %v1717
    %1721 = vmatprep.subr.bf16.mxu0 0
    %1722 = vmatpush1.bf16.msra.mxu0 0
    %1723 = vmatprep.subr.bf16.mxu0 0
    %1724 = vmatpush1.bf16.msra.mxu0 0
    %1725 = vmatprep.subr.bf16.mxu0 0
    %1726 = vmatpush1.bf16.msra.mxu0 0
    %1727 = vmatprep.subr.bf16.mxu0 0
    %1728 = vmatpush1.bf16.msra.mxu0 0
    %1729 = vmatprep.subr.bf16.mxu0 0
    %1730 = vmatpush1.bf16.msra.mxu0 0
    %1731 = vmatprep.subr.bf16.mxu0 0
    %1732 = vmatpush1.bf16.msra.mxu0 0
    %1733 = vmatprep.subr.bf16.mxu0 0
    %1734 = vmatpush1.bf16.msra.mxu0 0
    %1735 = vmatprep.subr.bf16.mxu0 0
    %1736 = vmatpush1.bf16.msra.mxu0 0
    %1737 = vmatprep.subr.bf16.mxu0 0
    %1738 = vmatpush1.bf16.msra.mxu0 0
    %1739 = vmatprep.subr.bf16.mxu0 0
    %1740 = vmatpush1.bf16.msra.mxu0 0
    %1741 = vmatprep.subr.bf16.mxu0 0
    %1742 = vmatpush1.bf16.msra.mxu0 0
    %1743 = vmatprep.subr.bf16.mxu0 0
    %1744 = vmatpush1.bf16.msra.mxu0 0
    %1745 = vmatprep.subr.bf16.mxu0 0
    %1746 = vmatpush1.bf16.msra.mxu0 0
    %1747 = vmatprep.subr.bf16.mxu0 0
    %1748 = vmatpush1.bf16.msra.mxu0 0
    %1749 = vmatprep.subr.bf16.mxu0 0
    %1750 = vmatpush1.bf16.msra.mxu0 0
    %1751 = vmatprep.mubr.bf16.mxu0 0
    %1752 = vmatmul.mubr.bf16.gmra.mrb[0].mxu0 %v1714
    %v1753 = vpop.f32.mrb[0].mxu0
    %v1754 = vadd.f32 0.0, %v1753
    %v1755 = vpop.f32.mrb[0].mxu0
    %v1756 = vpop.f32.mrb[0].mxu0
    %v1757 = vpop.f32.mrb[0].mxu0
    %1758 = vdwg.mxu0
    %v1759 = vpack.c.bf16 %v1754, %v1706
    %1761 = vrot.lane.b32.xlu0 %v1759, 24
    %v1762 = vpop.permute.xlu0 %1761
    %vm1764 = vcmask 228544
    %1765 = vst.msk [vmem:[#allocation3] sm:$0xff] %vm1764, %v1762
    %v1766 = vld [vmem:[#allocation2] sm:$0xff]
    %v1768 = vunpack.c.l.b16 %v1766
    %v1769 = vunpack.c.h.b16 %v1766
    %v1770 = vpack.c.b16 %v1768, %v1768
    %1771 = vrot.lane.b32.xlu0 %v1770, 100
    %v1772 = vpop.permute.xlu0 %1771
    %1773 = vrot.lane.b32.xlu0 %v1770, 68
    %v1774 = vpop.permute.xlu0 %1773
    %v1776 = vsel %vm149, %v1772, 0
    %v1779 = vsel %vm149, %v1774, 0
    %1781 = vmatprep.subr.bf16.mxu0 0
    %1782 = vmatpush1.bf16.xpose.msra.mxu0 %v1779
    %1783 = vmatprep.subr.bf16.mxu0 0
    %1784 = vmatpush1.bf16.xpose.msra.mxu0 0
    %1785 = vmatprep.subr.bf16.mxu0 0
    %1786 = vmatpush1.bf16.xpose.msra.mxu0 0
    %1787 = vmatprep.subr.bf16.mxu0 0
    %1788 = vmatpush1.bf16.xpose.msra.mxu0 0
    %1789 = vmatprep.subr.bf16.mxu0 0
    %1790 = vmatpush1.bf16.xpose.msra.mxu0 0
    %1791 = vmatprep.subr.bf16.mxu0 0
    %1792 = vmatpush1.bf16.xpose.msra.mxu0 0
    %1793 = vmatprep.subr.bf16.mxu0 0
    %1794 = vmatpush1.bf16.xpose.msra.mxu0 0
    %1795 = vmatprep.subr.bf16.mxu0 0
    %1796 = vmatpush1.bf16.xpose.msra.mxu0 0
    %1797 = vmatprep.subr.bf16.mxu0 0
    %1798 = vmatpush1.bf16.xpose.msra.mxu0 0
    %1799 = vmatprep.subr.bf16.mxu0 0
    %1800 = vmatpush1.bf16.xpose.msra.mxu0 0
    %1801 = vmatprep.subr.bf16.mxu0 0
    %1802 = vmatpush1.bf16.xpose.msra.mxu0 0
    %1803 = vmatprep.subr.bf16.mxu0 0
    %1804 = vmatpush1.bf16.xpose.msra.mxu0 0
    %1805 = vmatprep.subr.bf16.mxu0 0
    %1806 = vmatpush1.bf16.xpose.msra.mxu0 0
    %1807 = vmatprep.subr.bf16.mxu0 0
    %1808 = vmatpush1.bf16.xpose.msra.mxu0 0
    %1809 = vmatprep.subr.bf16.mxu0 0
    %1810 = vmatpush1.bf16.xpose.msra.mxu0 0
    %1811 = vmatprep.subr.bf16.mxu0 0
    %1812 = vmatpush1.bf16.xpose.msra.mxu0 0
    %1813 = vmatprep.mubr.bf16.mxu0 0
    %1814 = vmatmul.mubr.bf16.gmra.mrb[0].mxu0 %v1776
    %v1815 = vpop.f32.mrb[0].mxu0
    %v1816 = vadd.f32 0.0, %v1815
    %v1817 = vpop.f32.mrb[0].mxu0
    %v1818 = vpop.f32.mrb[0].mxu0
    %v1819 = vpop.f32.mrb[0].mxu0
    %1820 = vdwg.mxu0
    %v1821 = vpack.c.b16 %v1769, %v1769
    %1822 = vrot.lane.b32.xlu0 %v1821, 100
    %v1823 = vpop.permute.xlu0 %1822
    %1824 = vrot.lane.b32.xlu0 %v1821, 68
    %v1825 = vpop.permute.xlu0 %1824
    %v1827 = vsel %vm149, %v1823, 0
    %v1830 = vsel %vm149, %v1825, 0
    %1832 = vmatprep.subr.bf16.mxu0 0
    %1833 = vmatpush1.bf16.xpose.msra.mxu0 %v1830
    %1834 = vmatprep.subr.bf16.mxu0 0
    %1835 = vmatpush1.bf16.xpose.msra.mxu0 0
    %1836 = vmatprep.subr.bf16.mxu0 0
    %1837 = vmatpush1.bf16.xpose.msra.mxu0 0
    %1838 = vmatprep.subr.bf16.mxu0 0
    %1839 = vmatpush1.bf16.xpose.msra.mxu0 0
    %1840 = vmatprep.subr.bf16.mxu0 0
    %1841 = vmatpush1.bf16.xpose.msra.mxu0 0
    %1842 = vmatprep.subr.bf16.mxu0 0
    %1843 = vmatpush1.bf16.xpose.msra.mxu0 0
    %1844 = vmatprep.subr.bf16.mxu0 0
    %1845 = vmatpush1.bf16.xpose.msra.mxu0 0
    %1846 = vmatprep.subr.bf16.mxu0 0
    %1847 = vmatpush1.bf16.xpose.msra.mxu0 0
    %1848 = vmatprep.subr.bf16.mxu0 0
    %1849 = vmatpush1.bf16.xpose.msra.mxu0 0
    %1850 = vmatprep.subr.bf16.mxu0 0
    %1851 = vmatpush1.bf16.xpose.msra.mxu0 0
    %1852 = vmatprep.subr.bf16.mxu0 0
    %1853 = vmatpush1.bf16.xpose.msra.mxu0 0
    %1854 = vmatprep.subr.bf16.mxu0 0
    %1855 = vmatpush1.bf16.xpose.msra.mxu0 0
    %1856 = vmatprep.subr.bf16.mxu0 0
    %1857 = vmatpush1.bf16.xpose.msra.mxu0 0
    %1858 = vmatprep.subr.bf16.mxu0 0
    %1859 = vmatpush1.bf16.xpose.msra.mxu0 0
    %1860 = vmatprep.subr.bf16.mxu0 0
    %1861 = vmatpush1.bf16.xpose.msra.mxu0 0
    %1862 = vmatprep.subr.bf16.mxu0 0
    %1863 = vmatpush1.bf16.xpose.msra.mxu0 0
    %1864 = vmatprep.mubr.bf16.mxu0 0
    %1865 = vmatmul.mubr.bf16.gmra.mrb[0].mxu0 %v1827
    %v1866 = vpop.f32.mrb[0].mxu0
    %v1867 = vadd.f32 0.0, %v1866
    %v1868 = vpop.f32.mrb[0].mxu0
    %v1869 = vpop.f32.mrb[0].mxu0
    %v1870 = vpop.f32.mrb[0].mxu0
    %1871 = vdwg.mxu0
    %v1872 = vsel %vm244, %v1816, -inf
    %1873 = vmax.xlane.f32.xlu0 %v1872
    %v1874 = vpop.xlane.xlu0 %1873
    %v1875 = vsel %vm244, %v1867, -inf
    %1876 = vmax.xlane.f32.xlu0 %v1875
    %v1877 = vpop.xlane.xlu0 %1876
    %v1878 = vsub.f32 %v1816, %v1874
    %v1879 = vsub.f32 %v1867, %v1877
    %v1880 = vmul.f32 %v1878, 1.442695
    %v1881 = vpow.pop %v1880
    %v1882 = vmul.f32 %v1879, 1.442695
    %v1883 = vpow.pop %v1882
    %v1884 = vsel %vm244, %v1881, 0.0
    %1885 = vadd.xlane.f32.xlu0 %v1884
    %v1886 = vpop.xlane.xlu0 %1885
    %v1887 = vsel %vm244, %v1883, 0.0
    %1888 = vadd.xlane.f32.xlu0 %v1887
    %v1889 = vpop.xlane.xlu0 %1888
    %v1890 = vrcp.pop %v1886
    %v1891 = vrcp.pop %v1889
    %v1892 = vmul.f32 %v1881, %v1890
    %v1893 = vmul.f32 %v1883, %v1891
    %v1894 = vpack.c.bf16 %v1892, %v1892
    %v1895 = vpack.c.bf16 %v1893, %v1893
    %1896 = vrot.lane.b32.xlu0 %v1770, 36
    %v1897 = vpop.permute.xlu0 %1896
    %v1899 = vsel %vm244, %v1894, 0
    %v1902 = vsel %vm274, %v1897, 0
    %1904 = vmatprep.subr.bf16.mxu0 0
    %1905 = vmatpush1.bf16.msra.mxu0 %v1902
    %1906 = vmatprep.subr.bf16.mxu0 0
    %1907 = vmatpush1.bf16.msra.mxu0 0
    %1908 = vmatprep.subr.bf16.mxu0 0
    %1909 = vmatpush1.bf16.msra.mxu0 0
    %1910 = vmatprep.subr.bf16.mxu0 0
    %1911 = vmatpush1.bf16.msra.mxu0 0
    %1912 = vmatprep.subr.bf16.mxu0 0
    %1913 = vmatpush1.bf16.msra.mxu0 0
    %1914 = vmatprep.subr.bf16.mxu0 0
    %1915 = vmatpush1.bf16.msra.mxu0 0
    %1916 = vmatprep.subr.bf16.mxu0 0
    %1917 = vmatpush1.bf16.msra.mxu0 0
    %1918 = vmatprep.subr.bf16.mxu0 0
    %1919 = vmatpush1.bf16.msra.mxu0 0
    %1920 = vmatprep.subr.bf16.mxu0 0
    %1921 = vmatpush1.bf16.msra.mxu0 0
    %1922 = vmatprep.subr.bf16.mxu0 0
    %1923 = vmatpush1.bf16.msra.mxu0 0
    %1924 = vmatprep.subr.bf16.mxu0 0
    %1925 = vmatpush1.bf16.msra.mxu0 0
    %1926 = vmatprep.subr.bf16.mxu0 0
    %1927 = vmatpush1.bf16.msra.mxu0 0
    %1928 = vmatprep.subr.bf16.mxu0 0
    %1929 = vmatpush1.bf16.msra.mxu0 0
    %1930 = vmatprep.subr.bf16.mxu0 0
    %1931 = vmatpush1.bf16.msra.mxu0 0
    %1932 = vmatprep.subr.bf16.mxu0 0
    %1933 = vmatpush1.bf16.msra.mxu0 0
    %1934 = vmatprep.subr.bf16.mxu0 0
    %1935 = vmatpush1.bf16.msra.mxu0 0
    %1936 = vmatprep.mubr.bf16.mxu0 0
    %1937 = vmatmul.mubr.bf16.gmra.mrb[0].mxu0 %v1899
    %v1938 = vpop.f32.mrb[0].mxu0
    %v1939 = vadd.f32 0.0, %v1938
    %v1940 = vpop.f32.mrb[0].mxu0
    %v1941 = vpop.f32.mrb[0].mxu0
    %v1942 = vpop.f32.mrb[0].mxu0
    %1943 = vdwg.mxu0
    %1944 = vrot.lane.b32.xlu0 %v1821, 36
    %v1945 = vpop.permute.xlu0 %1944
    %v1947 = vsel %vm244, %v1895, 0
    %v1950 = vsel %vm274, %v1945, 0
    %1952 = vmatprep.subr.bf16.mxu0 0
    %1953 = vmatpush1.bf16.msra.mxu0 %v1950
    %1954 = vmatprep.subr.bf16.mxu0 0
    %1955 = vmatpush1.bf16.msra.mxu0 0
    %1956 = vmatprep.subr.bf16.mxu0 0
    %1957 = vmatpush1.bf16.msra.mxu0 0
    %1958 = vmatprep.subr.bf16.mxu0 0
    %1959 = vmatpush1.bf16.msra.mxu0 0
    %1960 = vmatprep.subr.bf16.mxu0 0
    %1961 = vmatpush1.bf16.msra.mxu0 0
    %1962 = vmatprep.subr.bf16.mxu0 0
    %1963 = vmatpush1.bf16.msra.mxu0 0
    %1964 = vmatprep.subr.bf16.mxu0 0
    %1965 = vmatpush1.bf16.msra.mxu0 0
    %1966 = vmatprep.subr.bf16.mxu0 0
    %1967 = vmatpush1.bf16.msra.mxu0 0
    %1968 = vmatprep.subr.bf16.mxu0 0
    %1969 = vmatpush1.bf16.msra.mxu0 0
    %1970 = vmatprep.subr.bf16.mxu0 0
    %1971 = vmatpush1.bf16.msra.mxu0 0
    %1972 = vmatprep.subr.bf16.mxu0 0
    %1973 = vmatpush1.bf16.msra.mxu0 0
    %1974 = vmatprep.subr.bf16.mxu0 0
    %1975 = vmatpush1.bf16.msra.mxu0 0
    %1976 = vmatprep.subr.bf16.mxu0 0
    %1977 = vmatpush1.bf16.msra.mxu0 0
    %1978 = vmatprep.subr.bf16.mxu0 0
    %1979 = vmatpush1.bf16.msra.mxu0 0
    %1980 = vmatprep.subr.bf16.mxu0 0
    %1981 = vmatpush1.bf16.msra.mxu0 0
    %1982 = vmatprep.subr.bf16.mxu0 0
    %1983 = vmatpush1.bf16.msra.mxu0 0
    %1984 = vmatprep.mubr.bf16.mxu0 0
    %1985 = vmatmul.mubr.bf16.gmra.mrb[0].mxu0 %v1947
    %v1986 = vpop.f32.mrb[0].mxu0
    %v1987 = vadd.f32 0.0, %v1986
    %v1988 = vpop.f32.mrb[0].mxu0
    %v1989 = vpop.f32.mrb[0].mxu0
    %v1990 = vpop.f32.mrb[0].mxu0
    %1991 = vdwg.mxu0
    %v1992 = vpack.c.bf16 %v1987, %v1939
    %1994 = vrot.lane.b32.xlu0 %v1992, 28
    %v1995 = vpop.permute.xlu0 %1994
    %vm1997 = vcmask 261344
    %1998 = vst.msk [vmem:[#allocation3] sm:$0xff] %vm1997, %v1995
    %v1999 = vld [vmem:[#allocation3] sm:$0xff]
    %v2000 = vld [vmem:[#allocation9] sm:$0xf]
    %v2001 = vld [vmem:[#allocation9 + $0x4] sm:$0xf]
    %v2002 = vld [vmem:[#allocation9 + $0x8] sm:$0xf]
    %v2003 = vld [vmem:[#allocation9 + $0xc] sm:$0xf]
    %v2004 = vld [vmem:[%s4] sm:$0x1]
    %v2006 = vlaneseq
    %v2007 = vshrl.u32 %v2006, 7
    %v2008 = vsub.s32 0, %v2007
    %v2009 = vrot.slane %v2004, %v2008
    %v2015 = vunpack.c.l.b16 %v2000
    %v2016 = vunpack.c.l.b16 %v2001
    %v2017 = vunpack.c.l.b16 %v2002
    %v2018 = vunpack.c.l.b16 %v2003
    %v2019 = vpack.c.b16 %v2016, %v2015
    %v2020 = vpack.c.b16 %v2018, %v2017
    %v2024 = vsel %vm93, %v1999, 0
    %2026 = vmatprep.subr.bf16.mxu0 0
    %2027 = vmatpush1.bf16.msra.mxu0 %v2019
    %2028 = vmatprep.subr.bf16.mxu0 0
    %2029 = vmatpush1.bf16.msra.mxu0 %v2020
    %2030 = vmatprep.subr.bf16.mxu0 0
    %2031 = vmatpush1.bf16.msra.mxu0 0
    %2032 = vmatprep.subr.bf16.mxu0 0
    %2033 = vmatpush1.bf16.msra.mxu0 0
    %2034 = vmatprep.subr.bf16.mxu0 0
    %2035 = vmatpush1.bf16.msra.mxu0 0
    %2036 = vmatprep.subr.bf16.mxu0 0
    %2037 = vmatpush1.bf16.msra.mxu0 0
    %2038 = vmatprep.subr.bf16.mxu0 0
    %2039 = vmatpush1.bf16.msra.mxu0 0
    %2040 = vmatprep.subr.bf16.mxu0 0
    %2041 = vmatpush1.bf16.msra.mxu0 0
    %2042 = vmatprep.subr.bf16.mxu0 0
    %2043 = vmatpush1.bf16.msra.mxu0 0
    %2044 = vmatprep.subr.bf16.mxu0 0
    %2045 = vmatpush1.bf16.msra.mxu0 0
    %2046 = vmatprep.subr.bf16.mxu0 0
    %2047 = vmatpush1.bf16.msra.mxu0 0
    %2048 = vmatprep.subr.bf16.mxu0 0
    %2049 = vmatpush1.bf16.msra.mxu0 0
    %2050 = vmatprep.subr.bf16.mxu0 0
    %2051 = vmatpush1.bf16.msra.mxu0 0
    %2052 = vmatprep.subr.bf16.mxu0 0
    %2053 = vmatpush1.bf16.msra.mxu0 0
    %2054 = vmatprep.subr.bf16.mxu0 0
    %2055 = vmatpush1.bf16.msra.mxu0 0
    %2056 = vmatprep.subr.bf16.mxu0 0
    %2057 = vmatpush1.bf16.msra.mxu0 0
    %2058 = vmatprep.mubr.bf16.mxu0 0
    %2059 = vmatmul.mubr.bf16.gmra.mrb[0].mxu0 %v2024
    %v2060 = vpop.f32.mrb[0].mxu0
    %v2061 = vadd.f32 %v2009, %v2060
    %v2062 = vpop.f32.mrb[0].mxu0
    %v2063 = vpop.f32.mrb[0].mxu0
    %v2064 = vadd.f32 %v2009, %v2063
    %v2065 = vpop.f32.mrb[0].mxu0
    %2066 = vdwg.mxu0
    %2067 = vst.msk [vmem:[#allocation10] sm:$0xff] %vm93, %v2061
    %2068 = vst.msk [vmem:[#allocation10 + $0x8] sm:$0xff] %vm93, %v2064
    // Predicated region
    $region34: #{tpu_custom_call.1} parent=1 // pred_check
      _
    $region35: #{tpu_custom_call.1} parent=1 // pred_check_branch
      %2070 = sbr.rel (0) target = $region37
    $region36: #{tpu_custom_call.1} parent=1 // pred_region
      %s2072 = ssub.s32 256, 256
      %2073 = vsyncadd [#allocation6], %s2072
      %s2074 = sshll.u32 [#allocation10], 4
      %s2075 = int_to_ptr.vmem [resolvable:$true] %s2074
      %2080 = dma.vmem_to_hbm [thread:$0]  %s2075, 256, %s5, [#allocation6], 128, 128, 8
    $region37: #{tpu_custom_call.1} parent=1 // pred_fallthru
      _
    // Predicated region
    $region38: #{tpu_custom_call.1} parent=1 // pred_check
      _
    $region39: #{tpu_custom_call.1} parent=1 // pred_check_branch
      %2082 = sbr.rel (0) target = $region41
    $region40: #{tpu_custom_call.1} parent=1 // pred_region
      %2083 = dma.done [#allocation6], 256
    $region41: #{tpu_custom_call.1} parent=1 // pred_fallthru
      _
    %2084 = vsyncpa [#allocation5], 1
    %2085 = vsyncpa [#allocation8], 1
    %2086 = vsyncpa [#allocation6], 1

</llo_original>
